<compile_context>
chip_gen: v7x
topology: tpu7x:2x2x1
jax: 0.10.0
libtpu: 0.0.40
codegen_flags: <defaults>
</compile_context>

<pallas_src>
import functools
import math

import jax
import jax.numpy as jnp
from jax import lax
from jax.experimental import pallas as pl
from jax.experimental.pallas import tpu as pltpu


CFG = dict(vocab=128, hidden=32, heads=2, layers=2, intermediate=64,
           max_pos=32, num_labels=3)
NL_PAD = 128   # lane-dense classifier output width (sliced to num_labels outside)
ROWS_OUT = 8   # sublane-dense output rows (>= batch, multiple of 8)


# ----------------------------------------------------------------------------
# Single fused BERT kernel (grid=(1,), all weights VMEM-resident)
# ----------------------------------------------------------------------------

def _bert_kernel(emb_ref, bias_ref, emb_g_ref, emb_b_ref,
                 wq_ref, bq_ref, wk_ref, bk_ref, wv_ref, bv_ref,
                 wo_ref, bo_ref, ln1g_ref, ln1b_ref,
                 wi_ref, bi_ref, wf_ref, bf_ref, ln2g_ref, ln2b_ref,
                 pool_w_ref, pool_b_ref, cls_w_ref, cls_b_ref,
                 logits_ref,
                 *, B, S, nH, Dh, L, eps):
    H = nH * Dh
    M = B * S
    scale = 1.0 / math.sqrt(Dh)

    def _ln(x, g, b):
        mean = jnp.mean(x, axis=-1, keepdims=True)
        xc = x - mean
        var = jnp.mean(xc * xc, axis=-1, keepdims=True)
        return xc * lax.rsqrt(var + eps) * g + b

    # Embedding LayerNorm (embedding dropout is identity at inference).
    x = _ln(emb_ref[...], emb_g_ref[...], emb_b_ref[...])          # (M, H) f32

    # Additive attention-mask bias, broadcast over query rows: (B, 1, S).
    bias3 = bias_ref[...].reshape(B, 1, S)

    def layer_body(l, x):
        xb = x.astype(jnp.bfloat16)
        # Separate lane-aligned Q/K/V projections (bf16 in, f32 accumulate).
        q = jnp.dot(xb, wq_ref[l], preferred_element_type=jnp.float32) + bq_ref[l]
        k = jnp.dot(xb, wk_ref[l], preferred_element_type=jnp.float32) + bk_ref[l]
        v = jnp.dot(xb, wv_ref[l], preferred_element_type=jnp.float32) + bv_ref[l]

        # Multi-head self-attention: per head, one batched-over-B contraction per
        # stage (static head loop, nH tiny); single head-merge concat.
        head_ctx = []
        for h in range(nH):
            c0 = h * Dh
            qh = q[:, c0:c0 + Dh].reshape(B, S, Dh).astype(jnp.bfloat16)
            kh = k[:, c0:c0 + Dh].reshape(B, S, Dh).astype(jnp.bfloat16)
            vh = v[:, c0:c0 + Dh].reshape(B, S, Dh).astype(jnp.bfloat16)
            s = jnp.einsum('bqd,bkd->bqk', qh, kh,
                           preferred_element_type=jnp.float32) * scale
            s = s + bias3
            s = s - jnp.max(s, axis=-1, keepdims=True)
            p = jnp.exp(s)
            p = p / jnp.sum(p, axis=-1, keepdims=True)    # exact softmax divide
            ctx_h = jnp.einsum('bqk,bkd->bqd', p.astype(jnp.bfloat16), vh,
                               preferred_element_type=jnp.float32)
            head_ctx.append(ctx_h.reshape(M, Dh))
        ctx = jnp.concatenate(head_ctx, axis=1)                     # (M, H)

        # Attention output projection + Add&LayerNorm.
        attn_out = jnp.dot(ctx.astype(jnp.bfloat16), wo_ref[l],
                           preferred_element_type=jnp.float32) + bo_ref[l]
        x = _ln(attn_out + x, ln1g_ref[l], ln1b_ref[l])

        # FFN: up-proj + GELU, down-proj, Add&LayerNorm.
        xb = x.astype(jnp.bfloat16)
        inter = jnp.dot(xb, wi_ref[l], preferred_element_type=jnp.float32) + bi_ref[l]
        # TODO(synk): HF BERT uses exact erf-based GELU; tanh approximation here.
        c = math.sqrt(2.0 / math.pi)
        inter = 0.5 * inter * (1.0 + jnp.tanh(
            c * (inter + 0.044715 * inter * inter * inter)))
        ffn_out = jnp.dot(inter.astype(jnp.bfloat16), wf_ref[l],
                          preferred_element_type=jnp.float32) + bf_ref[l]
        return _ln(ffn_out + x, ln2g_ref[l], ln2b_ref[l])

    x = lax.fori_loop(0, L, layer_body, x, unroll=True)

    # Gather the [CLS] row of every sequence with a constant selector matmul
    # (MXU-friendly, no cross-sublane shuffles); rows >= B are zero-padded so
    # the tail runs on a dense (ROWS_OUT, H) tile.
    rows = lax.broadcasted_iota(jnp.int32, (ROWS_OUT, M), 0)
    cols = lax.broadcasted_iota(jnp.int32, (ROWS_OUT, M), 1)
    sel = jnp.where((cols == rows * S) & (rows < B), 1.0, 0.0).astype(jnp.bfloat16)
    cls = jnp.dot(sel, x.astype(jnp.bfloat16), preferred_element_type=jnp.float32)

    # Pooler (tanh) + dropout (identity at inference) + classifier Linear + ReLU.
    pooled = jnp.tanh(jnp.dot(cls.astype(jnp.bfloat16), pool_w_ref[...],
                              preferred_element_type=jnp.float32) + pool_b_ref[...])
    logits = jnp.dot(pooled.astype(jnp.bfloat16), cls_w_ref[...],
                     preferred_element_type=jnp.float32) + cls_b_ref[...]
    logits_ref[...] = jnp.maximum(logits, 0.0).astype(logits_ref.dtype)


# ----------------------------------------------------------------------------
# Parameters (deterministic synthetic init; per-layer weights stacked on axis 0)
# ----------------------------------------------------------------------------

def init_params(key, cfg):
    H, I, L = cfg["hidden"], cfg["intermediate"], cfg["layers"]

    def nrm(k, shape, dtype=jnp.float32):
        return (0.02 * jax.random.normal(k, shape, jnp.float32)).astype(dtype)

    keys = iter(jax.random.split(key, 16 + 8 * L))
    p = {
        "word_emb": nrm(next(keys), (cfg["vocab"], H)),
        "pos_emb": nrm(next(keys), (cfg["max_pos"], H)),
        "type_emb": nrm(next(keys), (2, H)),
        "emb_ln_g": jnp.ones((1, H), jnp.float32),
        "emb_ln_b": jnp.zeros((1, H), jnp.float32),
        "pool_w": nrm(next(keys), (H, H), jnp.bfloat16),   # bf16 matmul weight
        "pool_b": jnp.zeros((1, H), jnp.float32),
        "cls_w": nrm(next(keys), (H, cfg["num_labels"])),  # padded + cast in wrapper
        "cls_b": jnp.zeros((cfg["num_labels"],), jnp.float32),
    }

    def stack(shape):
        return jnp.stack([nrm(next(keys), shape, jnp.bfloat16) for _ in range(L)])

    p["wq"], p["wk"], p["wv"] = stack((H, H)), stack((H, H)), stack((H, H))
    p["wo"] = stack((H, H))
    p["wi"] = stack((H, I))
    p["wf"] = stack((I, H))
    p["bq"] = jnp.zeros((L, 1, H), jnp.float32)
    p["bk"] = jnp.zeros((L, 1, H), jnp.float32)
    p["bv"] = jnp.zeros((L, 1, H), jnp.float32)
    p["bo"] = jnp.zeros((L, 1, H), jnp.float32)
    p["ln1_g"] = jnp.ones((L, 1, H), jnp.float32)
    p["ln1_b"] = jnp.zeros((L, 1, H), jnp.float32)
    p["bi"] = jnp.zeros((L, 1, I), jnp.float32)
    p["bf"] = jnp.zeros((L, 1, H), jnp.float32)
    p["ln2_g"] = jnp.ones((L, 1, H), jnp.float32)
    p["ln2_b"] = jnp.zeros((L, 1, H), jnp.float32)
    return p


# ----------------------------------------------------------------------------
# Forward pass (embedding gather is XLA glue; everything else is one kernel)
# ----------------------------------------------------------------------------

def bert_classifier_forward(params, input_ids, mask, cfg):
    B, S = input_ids.shape
    H, nH, L = cfg["hidden"], cfg["heads"], cfg["layers"]
    Dh = H // nH
    M = B * S

    # Embeddings (gather is glue); token_type_ids = 0.
    emb = (params["word_emb"][input_ids]
           + params["pos_emb"][:S][None, :, :]
           + params["type_emb"][0][None, None, :]).reshape(M, H).astype(jnp.float32)

    # Extended attention mask: (1 - mask) * -10000, shape (B, S).
    bias = (1.0 - mask.astype(jnp.float32)) * -10000.0

    # Lane-pad classifier weights to 128 output lanes (dense stores), cast to bf16.
    cls_w_pad = jnp.zeros((H, NL_PAD), jnp.float32).at[:, :cfg["num_labels"]].set(
        params["cls_w"]).astype(jnp.bfloat16)
    cls_b_pad = jnp.zeros((1, NL_PAD), jnp.float32).at[0, :cfg["num_labels"]].set(
        params["cls_b"])

    args = (emb, bias, params["emb_ln_g"], params["emb_ln_b"],
            params["wq"], params["bq"], params["wk"], params["bk"],
            params["wv"], params["bv"], params["wo"], params["bo"],
            params["ln1_g"], params["ln1_b"], params["wi"], params["bi"],
            params["wf"], params["bf"], params["ln2_g"], params["ln2_b"],
            params["pool_w"], params["pool_b"], cls_w_pad, cls_b_pad)

    def full(shape):
        return pl.BlockSpec(shape, lambda i: (0,) * len(shape))

    kernel = functools.partial(_bert_kernel, B=B, S=S, nH=nH, Dh=Dh, L=L, eps=1e-12)

    logits_pad = pl.pallas_call(
        kernel,
        out_shape=jax.ShapeDtypeStruct((ROWS_OUT, NL_PAD), jnp.float32),
        grid=(1,),   # all weights fit VMEM at these shapes: single step, no layer pipeline
        in_specs=[full(a.shape) for a in args],
        out_specs=pl.BlockSpec((ROWS_OUT, NL_PAD), lambda i: (0, 0)),
        compiler_params=pltpu.CompilerParams(
            dimension_semantics=("arbitrary",),
            vmem_limit_bytes=48 * 1024 * 1024),   # fits v7x 64 MiB, lifts v5e 16 MiB default
    )(*args)

    # Slice the real batch rows and real label columns.
    return logits_pad[:B, :cfg["num_labels"]]


# ----------------------------------------------------------------------------
# Main
# ----------------------------------------------------------------------------

if __name__ == "__main__":
    key = jax.random.PRNGKey(0)
    k_param, k_ids = jax.random.split(key)

    B, S = 2, 8
    params = init_params(k_param, CFG)
    input_ids = jax.random.randint(k_ids, (B, S), 0, CFG["vocab"], dtype=jnp.int32)
    # second sequence has two padding positions masked out
    mask = jnp.array([[1, 1, 1, 1, 1, 1, 1, 1],
                      [1, 1, 1, 1, 1, 1, 0, 0]], dtype=jnp.int32)

    fwd = jax.jit(functools.partial(bert_classifier_forward, cfg=CFG))
    out = jax.block_until_ready(fwd(params, input_ids, mask))

    assert out.shape == (B, CFG["num_labels"])
    assert out.dtype == jnp.float32
    assert bool(jnp.all(out >= 0.0))  # ReLU output
    print("KERNEL_OK")
</pallas_src>

<mosaic_0001>
module attributes {stable_mosaic.version = 11 : i64} {
  func.func @_bert_kernel(%arg0: i32, %arg1: memref<16x32xf32, #tpu.memory_space<vmem>>, %arg2: memref<2x8xf32, #tpu.memory_space<vmem>>, %arg3: memref<1x32xf32, #tpu.memory_space<vmem>>, %arg4: memref<1x32xf32, #tpu.memory_space<vmem>>, %arg5: memref<2x32x32xbf16, #tpu.memory_space<vmem>>, %arg6: memref<2x1x32xf32, #tpu.memory_space<vmem>>, %arg7: memref<2x32x32xbf16, #tpu.memory_space<vmem>>, %arg8: memref<2x1x32xf32, #tpu.memory_space<vmem>>, %arg9: memref<2x32x32xbf16, #tpu.memory_space<vmem>>, %arg10: memref<2x1x32xf32, #tpu.memory_space<vmem>>, %arg11: memref<2x32x32xbf16, #tpu.memory_space<vmem>>, %arg12: memref<2x1x32xf32, #tpu.memory_space<vmem>>, %arg13: memref<2x1x32xf32, #tpu.memory_space<vmem>>, %arg14: memref<2x1x32xf32, #tpu.memory_space<vmem>>, %arg15: memref<2x32x64xbf16, #tpu.memory_space<vmem>>, %arg16: memref<2x1x64xf32, #tpu.memory_space<vmem>>, %arg17: memref<2x64x32xbf16, #tpu.memory_space<vmem>>, %arg18: memref<2x1x32xf32, #tpu.memory_space<vmem>>, %arg19: memref<2x1x32xf32, #tpu.memory_space<vmem>>, %arg20: memref<2x1x32xf32, #tpu.memory_space<vmem>>, %arg21: memref<32x32xbf16, #tpu.memory_space<vmem>>, %arg22: memref<1x32xf32, #tpu.memory_space<vmem>>, %arg23: memref<32x128xbf16, #tpu.memory_space<vmem>>, %arg24: memref<1x128xf32, #tpu.memory_space<vmem>>, %arg25: memref<8x128xf32, #tpu.memory_space<vmem>>) attributes {dimension_semantics = [#tpu.dimension_semantics<arbitrary>], iteration_bounds = array<i64: 1>, scalar_prefetch = 0 : i64, scratch_operands = 0 : i64, tpu.core_type = #tpu.core_type<tc>, window_params = [{pipeline_mode = #tpu.pipeline_mode<synchronous>, transform_indices = @transform_0, window_bounds = array<i64: 16, 32>}, {pipeline_mode = #tpu.pipeline_mode<synchronous>, transform_indices = @transform_1, window_bounds = array<i64: 2, 8>}, {pipeline_mode = #tpu.pipeline_mode<synchronous>, transform_indices = @transform_2, window_bounds = array<i64: 1, 32>}, {pipeline_mode = #tpu.pipeline_mode<synchronous>, transform_indices = @transform_3, window_bounds = array<i64: 1, 32>}, {pipeline_mode = #tpu.pipeline_mode<synchronous>, transform_indices = @transform_4, window_bounds = array<i64: 2, 32, 32>}, {pipeline_mode = #tpu.pipeline_mode<synchronous>, transform_indices = @transform_5, window_bounds = array<i64: 2, 1, 32>}, {pipeline_mode = #tpu.pipeline_mode<synchronous>, transform_indices = @transform_6, window_bounds = array<i64: 2, 32, 32>}, {pipeline_mode = #tpu.pipeline_mode<synchronous>, transform_indices = @transform_7, window_bounds = array<i64: 2, 1, 32>}, {pipeline_mode = #tpu.pipeline_mode<synchronous>, transform_indices = @transform_8, window_bounds = array<i64: 2, 32, 32>}, {pipeline_mode = #tpu.pipeline_mode<synchronous>, transform_indices = @transform_9, window_bounds = array<i64: 2, 1, 32>}, {pipeline_mode = #tpu.pipeline_mode<synchronous>, transform_indices = @transform_10, window_bounds = array<i64: 2, 32, 32>}, {pipeline_mode = #tpu.pipeline_mode<synchronous>, transform_indices = @transform_11, window_bounds = array<i64: 2, 1, 32>}, {pipeline_mode = #tpu.pipeline_mode<synchronous>, transform_indices = @transform_12, window_bounds = array<i64: 2, 1, 32>}, {pipeline_mode = #tpu.pipeline_mode<synchronous>, transform_indices = @transform_13, window_bounds = array<i64: 2, 1, 32>}, {pipeline_mode = #tpu.pipeline_mode<synchronous>, transform_indices = @transform_14, window_bounds = array<i64: 2, 32, 64>}, {pipeline_mode = #tpu.pipeline_mode<synchronous>, transform_indices = @transform_15, window_bounds = array<i64: 2, 1, 64>}, {pipeline_mode = #tpu.pipeline_mode<synchronous>, transform_indices = @transform_16, window_bounds = array<i64: 2, 64, 32>}, {pipeline_mode = #tpu.pipeline_mode<synchronous>, transform_indices = @transform_17, window_bounds = array<i64: 2, 1, 32>}, {pipeline_mode = #tpu.pipeline_mode<synchronous>, transform_indices = @transform_18, window_bounds = array<i64: 2, 1, 32>}, {pipeline_mode = #tpu.pipeline_mode<synchronous>, transform_indices = @transform_19, window_bounds = array<i64: 2, 1, 32>}, {pipeline_mode = #tpu.pipeline_mode<synchronous>, transform_indices = @transform_20, window_bounds = array<i64: 32, 32>}, {pipeline_mode = #tpu.pipeline_mode<synchronous>, transform_indices = @transform_21, window_bounds = array<i64: 1, 32>}, {pipeline_mode = #tpu.pipeline_mode<synchronous>, transform_indices = @transform_22, window_bounds = array<i64: 32, 128>}, {pipeline_mode = #tpu.pipeline_mode<synchronous>, transform_indices = @transform_23, window_bounds = array<i64: 1, 128>}, {pipeline_mode = #tpu.pipeline_mode<synchronous>, transform_indices = @transform_24, window_bounds = array<i64: 8, 128>}]} {
    %c0 = arith.constant 0 : index
    %c0_0 = arith.constant 0 : index
    %0 = vector.load %arg1[%c0, %c0_0] : memref<16x32xf32, #tpu.memory_space<vmem>>, vector<16x32xf32>
    %c0_1 = arith.constant 0 : index
    %c0_2 = arith.constant 0 : index
    %1 = vector.load %arg3[%c0_1, %c0_2] : memref<1x32xf32, #tpu.memory_space<vmem>>, vector<1x32xf32>
    %c0_3 = arith.constant 0 : index
    %c0_4 = arith.constant 0 : index
    %2 = vector.load %arg4[%c0_3, %c0_4] : memref<1x32xf32, #tpu.memory_space<vmem>>, vector<1x32xf32>
    %cst = arith.constant dense<0.000000e+00> : vector<16xf32>
    %3 = vector.multi_reduction <add>, %0, %cst [1] : vector<16x32xf32> to vector<16xf32>
    %4 = vector.shape_cast %3 : vector<16xf32> to vector<16x1xf32>
    %cst_5 = arith.constant 3.200000e+01 : f32
    %5 = vector.broadcast %cst_5 : f32 to vector<16x1xf32>
    %6 = arith.divf %4, %5 : vector<16x1xf32>
    %7 = vector.broadcast %6 : vector<16x1xf32> to vector<16x32xf32>
    %8 = arith.subf %0, %7 : vector<16x32xf32>
    %9 = arith.mulf %8, %8 : vector<16x32xf32>
    %cst_6 = arith.constant dense<0.000000e+00> : vector<16xf32>
    %10 = vector.multi_reduction <add>, %9, %cst_6 [1] : vector<16x32xf32> to vector<16xf32>
    %11 = vector.shape_cast %10 : vector<16xf32> to vector<16x1xf32>
    %cst_7 = arith.constant 3.200000e+01 : f32
    %12 = vector.broadcast %cst_7 : f32 to vector<16x1xf32>
    %13 = arith.divf %11, %12 : vector<16x1xf32>
    %cst_8 = arith.constant 9.99999996E-13 : f32
    %14 = vector.broadcast %cst_8 : f32 to vector<16x1xf32>
    %15 = arith.addf %13, %14 : vector<16x1xf32>
    %16 = math.rsqrt %15 : vector<16x1xf32>
    %17 = vector.broadcast %16 : vector<16x1xf32> to vector<16x32xf32>
    %18 = arith.mulf %8, %17 : vector<16x32xf32>
    %19 = vector.broadcast %1 : vector<1x32xf32> to vector<16x32xf32>
    %20 = arith.mulf %18, %19 : vector<16x32xf32>
    %21 = vector.broadcast %2 : vector<1x32xf32> to vector<16x32xf32>
    %22 = arith.addf %20, %21 : vector<16x32xf32>
    %c0_9 = arith.constant 0 : index
    %c0_10 = arith.constant 0 : index
    %23 = vector.load %arg2[%c0_9, %c0_10] : memref<2x8xf32, #tpu.memory_space<vmem>>, vector<2x8xf32>
    %24 = vector.shape_cast %23 : vector<2x8xf32> to vector<2x1x8xf32>
    %c0_i32 = arith.constant 0 : i32
    %25 = arith.truncf %22 : vector<16x32xf32> to vector<16x32xbf16>
    %26 = arith.index_cast %c0_i32 : i32 to index
    %c0_11 = arith.constant 0 : index
    %c0_12 = arith.constant 0 : index
    %27 = vector.load %arg5[%26, %c0_11, %c0_12] : memref<2x32x32xbf16, #tpu.memory_space<vmem>>, vector<1x32x32xbf16>
    %28 = vector.shape_cast %27 : vector<1x32x32xbf16> to vector<32x32xbf16>
    %cst_13 = arith.constant dense<0.000000e+00> : vector<16x32xf32>
    %29 = tpu.matmul %25, %28, %cst_13 {dimension_numbers = #tpu.dot_dimension_numbers<[1], [0], [0], [1], [0, 0, 1, 1], [], []>} : vector<16x32xbf16>, vector<32x32xbf16>, vector<16x32xf32> -> vector<16x32xf32>
    %30 = arith.index_cast %c0_i32 : i32 to index
    %c0_14 = arith.constant 0 : index
    %c0_15 = arith.constant 0 : index
    %31 = vector.load %arg6[%30, %c0_14, %c0_15] : memref<2x1x32xf32, #tpu.memory_space<vmem>>, vector<1x1x32xf32>
    %32 = vector.shape_cast %31 : vector<1x1x32xf32> to vector<1x32xf32>
    %33 = vector.broadcast %32 : vector<1x32xf32> to vector<16x32xf32>
    %34 = arith.addf %29, %33 : vector<16x32xf32>
    %35 = arith.index_cast %c0_i32 : i32 to index
    %c0_16 = arith.constant 0 : index
    %c0_17 = arith.constant 0 : index
    %36 = vector.load %arg7[%35, %c0_16, %c0_17] : memref<2x32x32xbf16, #tpu.memory_space<vmem>>, vector<1x32x32xbf16>
    %37 = vector.shape_cast %36 : vector<1x32x32xbf16> to vector<32x32xbf16>
    %cst_18 = arith.constant dense<0.000000e+00> : vector<16x32xf32>
    %38 = tpu.matmul %25, %37, %cst_18 {dimension_numbers = #tpu.dot_dimension_numbers<[1], [0], [0], [1], [0, 0, 1, 1], [], []>} : vector<16x32xbf16>, vector<32x32xbf16>, vector<16x32xf32> -> vector<16x32xf32>
    %39 = arith.index_cast %c0_i32 : i32 to index
    %c0_19 = arith.constant 0 : index
    %c0_20 = arith.constant 0 : index
    %40 = vector.load %arg8[%39, %c0_19, %c0_20] : memref<2x1x32xf32, #tpu.memory_space<vmem>>, vector<1x1x32xf32>
    %41 = vector.shape_cast %40 : vector<1x1x32xf32> to vector<1x32xf32>
    %42 = vector.broadcast %41 : vector<1x32xf32> to vector<16x32xf32>
    %43 = arith.addf %38, %42 : vector<16x32xf32>
    %44 = arith.index_cast %c0_i32 : i32 to index
    %c0_21 = arith.constant 0 : index
    %c0_22 = arith.constant 0 : index
    %45 = vector.load %arg9[%44, %c0_21, %c0_22] : memref<2x32x32xbf16, #tpu.memory_space<vmem>>, vector<1x32x32xbf16>
    %46 = vector.shape_cast %45 : vector<1x32x32xbf16> to vector<32x32xbf16>
    %cst_23 = arith.constant dense<0.000000e+00> : vector<16x32xf32>
    %47 = tpu.matmul %25, %46, %cst_23 {dimension_numbers = #tpu.dot_dimension_numbers<[1], [0], [0], [1], [0, 0, 1, 1], [], []>} : vector<16x32xbf16>, vector<32x32xbf16>, vector<16x32xf32> -> vector<16x32xf32>
    %48 = arith.index_cast %c0_i32 : i32 to index
    %c0_24 = arith.constant 0 : index
    %c0_25 = arith.constant 0 : index
    %49 = vector.load %arg10[%48, %c0_24, %c0_25] : memref<2x1x32xf32, #tpu.memory_space<vmem>>, vector<1x1x32xf32>
    %50 = vector.shape_cast %49 : vector<1x1x32xf32> to vector<1x32xf32>
    %51 = vector.broadcast %50 : vector<1x32xf32> to vector<16x32xf32>
    %52 = arith.addf %47, %51 : vector<16x32xf32>
    %53 = vector.extract_strided_slice %34 {offsets = [0, 0], sizes = [16, 16], strides = [1, 1]} : vector<16x32xf32> to vector<16x16xf32>
    %54 = vector.shape_cast %53 : vector<16x16xf32> to vector<2x8x16xf32>
    %55 = arith.truncf %54 : vector<2x8x16xf32> to vector<2x8x16xbf16>
    %56 = vector.extract_strided_slice %43 {offsets = [0, 0], sizes = [16, 16], strides = [1, 1]} : vector<16x32xf32> to vector<16x16xf32>
    %57 = vector.shape_cast %56 : vector<16x16xf32> to vector<2x8x16xf32>
    %58 = arith.truncf %57 : vector<2x8x16xf32> to vector<2x8x16xbf16>
    %59 = vector.extract_strided_slice %52 {offsets = [0, 0], sizes = [16, 16], strides = [1, 1]} : vector<16x32xf32> to vector<16x16xf32>
    %60 = vector.shape_cast %59 : vector<16x16xf32> to vector<2x8x16xf32>
    %61 = arith.truncf %60 : vector<2x8x16xf32> to vector<2x8x16xbf16>
    "tpu.trace_start"() <{level = 10 : i32, message = "bqd,bkd->bqk"}> : () -> ()
    %cst_26 = arith.constant dense<0.000000e+00> : vector<2x8x8xf32>
    %62 = tpu.matmul %55, %58, %cst_26 {dimension_numbers = #tpu.dot_dimension_numbers<[2], [2], [1], [1], [0, 0, 0, 1, 1, 1], [0], [0]>} : vector<2x8x16xbf16>, vector<2x8x16xbf16>, vector<2x8x8xf32> -> vector<2x8x8xf32>
    "tpu.trace_stop"() : () -> ()
    %cst_27 = arith.constant 2.500000e-01 : f32
    %63 = vector.broadcast %cst_27 : f32 to vector<2x8x8xf32>
    %64 = arith.mulf %62, %63 : vector<2x8x8xf32>
    %65 = vector.broadcast %24 : vector<2x1x8xf32> to vector<2x8x8xf32>
    %66 = arith.addf %64, %65 : vector<2x8x8xf32>
    %cst_28 = arith.constant dense<0xFF800000> : vector<2x8xf32>
    %67 = vector.multi_reduction <maximumf>, %66, %cst_28 [2] : vector<2x8x8xf32> to vector<2x8xf32>
    %68 = vector.shape_cast %67 : vector<2x8xf32> to vector<2x8x1xf32>
    %69 = vector.broadcast %68 : vector<2x8x1xf32> to vector<2x8x8xf32>
    %70 = arith.subf %66, %69 : vector<2x8x8xf32>
    %71 = math.exp %70 : vector<2x8x8xf32>
    %cst_29 = arith.constant dense<0.000000e+00> : vector<2x8xf32>
    %72 = vector.multi_reduction <add>, %71, %cst_29 [2] : vector<2x8x8xf32> to vector<2x8xf32>
    %73 = vector.shape_cast %72 : vector<2x8xf32> to vector<2x8x1xf32>
    %74 = vector.broadcast %73 : vector<2x8x1xf32> to vector<2x8x8xf32>
    %75 = arith.divf %71, %74 : vector<2x8x8xf32>
    %76 = arith.truncf %75 : vector<2x8x8xf32> to vector<2x8x8xbf16>
    "tpu.trace_start"() <{level = 10 : i32, message = "bqk,bkd->bqd"}> : () -> ()
    %cst_30 = arith.constant dense<0.000000e+00> : vector<2x8x16xf32>
    %77 = tpu.matmul %76, %61, %cst_30 {dimension_numbers = #tpu.dot_dimension_numbers<[2], [1], [1], [2], [0, 0, 0, 1, 1, 2], [0], [0]>} : vector<2x8x8xbf16>, vector<2x8x16xbf16>, vector<2x8x16xf32> -> vector<2x8x16xf32>
    "tpu.trace_stop"() : () -> ()
    %78 = vector.shape_cast %77 : vector<2x8x16xf32> to vector<16x16xf32>
    %79 = vector.extract_strided_slice %34 {offsets = [0, 16], sizes = [16, 16], strides = [1, 1]} : vector<16x32xf32> to vector<16x16xf32>
    %80 = vector.shape_cast %79 : vector<16x16xf32> to vector<2x8x16xf32>
    %81 = arith.truncf %80 : vector<2x8x16xf32> to vector<2x8x16xbf16>
    %82 = vector.extract_strided_slice %43 {offsets = [0, 16], sizes = [16, 16], strides = [1, 1]} : vector<16x32xf32> to vector<16x16xf32>
    %83 = vector.shape_cast %82 : vector<16x16xf32> to vector<2x8x16xf32>
    %84 = arith.truncf %83 : vector<2x8x16xf32> to vector<2x8x16xbf16>
    %85 = vector.extract_strided_slice %52 {offsets = [0, 16], sizes = [16, 16], strides = [1, 1]} : vector<16x32xf32> to vector<16x16xf32>
    %86 = vector.shape_cast %85 : vector<16x16xf32> to vector<2x8x16xf32>
    %87 = arith.truncf %86 : vector<2x8x16xf32> to vector<2x8x16xbf16>
    "tpu.trace_start"() <{level = 10 : i32, message = "bqd,bkd->bqk"}> : () -> ()
    %cst_31 = arith.constant dense<0.000000e+00> : vector<2x8x8xf32>
    %88 = tpu.matmul %81, %84, %cst_31 {dimension_numbers = #tpu.dot_dimension_numbers<[2], [2], [1], [1], [0, 0, 0, 1, 1, 1], [0], [0]>} : vector<2x8x16xbf16>, vector<2x8x16xbf16>, vector<2x8x8xf32> -> vector<2x8x8xf32>
    "tpu.trace_stop"() : () -> ()
    %cst_32 = arith.constant 2.500000e-01 : f32
    %89 = vector.broadcast %cst_32 : f32 to vector<2x8x8xf32>
    %90 = arith.mulf %88, %89 : vector<2x8x8xf32>
    %91 = vector.broadcast %24 : vector<2x1x8xf32> to vector<2x8x8xf32>
    %92 = arith.addf %90, %91 : vector<2x8x8xf32>
    %cst_33 = arith.constant dense<0xFF800000> : vector<2x8xf32>
    %93 = vector.multi_reduction <maximumf>, %92, %cst_33 [2] : vector<2x8x8xf32> to vector<2x8xf32>
    %94 = vector.shape_cast %93 : vector<2x8xf32> to vector<2x8x1xf32>
    %95 = vector.broadcast %94 : vector<2x8x1xf32> to vector<2x8x8xf32>
    %96 = arith.subf %92, %95 : vector<2x8x8xf32>
    %97 = math.exp %96 : vector<2x8x8xf32>
    %cst_34 = arith.constant dense<0.000000e+00> : vector<2x8xf32>
    %98 = vector.multi_reduction <add>, %97, %cst_34 [2] : vector<2x8x8xf32> to vector<2x8xf32>
    %99 = vector.shape_cast %98 : vector<2x8xf32> to vector<2x8x1xf32>
    %100 = vector.broadcast %99 : vector<2x8x1xf32> to vector<2x8x8xf32>
    %101 = arith.divf %97, %100 : vector<2x8x8xf32>
    %102 = arith.truncf %101 : vector<2x8x8xf32> to vector<2x8x8xbf16>
    "tpu.trace_start"() <{level = 10 : i32, message = "bqk,bkd->bqd"}> : () -> ()
    %cst_35 = arith.constant dense<0.000000e+00> : vector<2x8x16xf32>
    %103 = tpu.matmul %102, %87, %cst_35 {dimension_numbers = #tpu.dot_dimension_numbers<[2], [1], [1], [2], [0, 0, 0, 1, 1, 2], [0], [0]>} : vector<2x8x8xbf16>, vector<2x8x16xbf16>, vector<2x8x16xf32> -> vector<2x8x16xf32>
    "tpu.trace_stop"() : () -> ()
    %104 = vector.shape_cast %103 : vector<2x8x16xf32> to vector<16x16xf32>
    %105 = tpu.concatenate %78, %104 in 1 : vector<16x16xf32>, vector<16x16xf32> -> vector<16x32xf32>
    %106 = arith.truncf %105 : vector<16x32xf32> to vector<16x32xbf16>
    %107 = arith.index_cast %c0_i32 : i32 to index
    %c0_36 = arith.constant 0 : index
    %c0_37 = arith.constant 0 : index
    %108 = vector.load %arg11[%107, %c0_36, %c0_37] : memref<2x32x32xbf16, #tpu.memory_space<vmem>>, vector<1x32x32xbf16>
    %109 = vector.shape_cast %108 : vector<1x32x32xbf16> to vector<32x32xbf16>
    %cst_38 = arith.constant dense<0.000000e+00> : vector<16x32xf32>
    %110 = tpu.matmul %106, %109, %cst_38 {dimension_numbers = #tpu.dot_dimension_numbers<[1], [0], [0], [1], [0, 0, 1, 1], [], []>} : vector<16x32xbf16>, vector<32x32xbf16>, vector<16x32xf32> -> vector<16x32xf32>
    %111 = arith.index_cast %c0_i32 : i32 to index
    %c0_39 = arith.constant 0 : index
    %c0_40 = arith.constant 0 : index
    %112 = vector.load %arg12[%111, %c0_39, %c0_40] : memref<2x1x32xf32, #tpu.memory_space<vmem>>, vector<1x1x32xf32>
    %113 = vector.shape_cast %112 : vector<1x1x32xf32> to vector<1x32xf32>
    %114 = vector.broadcast %113 : vector<1x32xf32> to vector<16x32xf32>
    %115 = arith.addf %110, %114 : vector<16x32xf32>
    %116 = arith.addf %115, %22 : vector<16x32xf32>
    %117 = arith.index_cast %c0_i32 : i32 to index
    %c0_41 = arith.constant 0 : index
    %c0_42 = arith.constant 0 : index
    %118 = vector.load %arg13[%117, %c0_41, %c0_42] : memref<2x1x32xf32, #tpu.memory_space<vmem>>, vector<1x1x32xf32>
    %119 = vector.shape_cast %118 : vector<1x1x32xf32> to vector<1x32xf32>
    %120 = arith.index_cast %c0_i32 : i32 to index
    %c0_43 = arith.constant 0 : index
    %c0_44 = arith.constant 0 : index
    %121 = vector.load %arg14[%120, %c0_43, %c0_44] : memref<2x1x32xf32, #tpu.memory_space<vmem>>, vector<1x1x32xf32>
    %122 = vector.shape_cast %121 : vector<1x1x32xf32> to vector<1x32xf32>
    %cst_45 = arith.constant dense<0.000000e+00> : vector<16xf32>
    %123 = vector.multi_reduction <add>, %116, %cst_45 [1] : vector<16x32xf32> to vector<16xf32>
    %124 = vector.shape_cast %123 : vector<16xf32> to vector<16x1xf32>
    %cst_46 = arith.constant 3.200000e+01 : f32
    %125 = vector.broadcast %cst_46 : f32 to vector<16x1xf32>
    %126 = arith.divf %124, %125 : vector<16x1xf32>
    %127 = vector.broadcast %126 : vector<16x1xf32> to vector<16x32xf32>
    %128 = arith.subf %116, %127 : vector<16x32xf32>
    %129 = arith.mulf %128, %128 : vector<16x32xf32>
    %cst_47 = arith.constant dense<0.000000e+00> : vector<16xf32>
    %130 = vector.multi_reduction <add>, %129, %cst_47 [1] : vector<16x32xf32> to vector<16xf32>
    %131 = vector.shape_cast %130 : vector<16xf32> to vector<16x1xf32>
    %cst_48 = arith.constant 3.200000e+01 : f32
    %132 = vector.broadcast %cst_48 : f32 to vector<16x1xf32>
    %133 = arith.divf %131, %132 : vector<16x1xf32>
    %cst_49 = arith.constant 9.99999996E-13 : f32
    %134 = vector.broadcast %cst_49 : f32 to vector<16x1xf32>
    %135 = arith.addf %133, %134 : vector<16x1xf32>
    %136 = math.rsqrt %135 : vector<16x1xf32>
    %137 = vector.broadcast %136 : vector<16x1xf32> to vector<16x32xf32>
    %138 = arith.mulf %128, %137 : vector<16x32xf32>
    %139 = vector.broadcast %119 : vector<1x32xf32> to vector<16x32xf32>
    %140 = arith.mulf %138, %139 : vector<16x32xf32>
    %141 = vector.broadcast %122 : vector<1x32xf32> to vector<16x32xf32>
    %142 = arith.addf %140, %141 : vector<16x32xf32>
    %143 = arith.truncf %142 : vector<16x32xf32> to vector<16x32xbf16>
    %144 = arith.index_cast %c0_i32 : i32 to index
    %c0_50 = arith.constant 0 : index
    %c0_51 = arith.constant 0 : index
    %145 = vector.load %arg15[%144, %c0_50, %c0_51] : memref<2x32x64xbf16, #tpu.memory_space<vmem>>, vector<1x32x64xbf16>
    %146 = vector.shape_cast %145 : vector<1x32x64xbf16> to vector<32x64xbf16>
    %cst_52 = arith.constant dense<0.000000e+00> : vector<16x64xf32>
    %147 = tpu.matmul %143, %146, %cst_52 {dimension_numbers = #tpu.dot_dimension_numbers<[1], [0], [0], [1], [0, 0, 1, 1], [], []>} : vector<16x32xbf16>, vector<32x64xbf16>, vector<16x64xf32> -> vector<16x64xf32>
    %148 = arith.index_cast %c0_i32 : i32 to index
    %c0_53 = arith.constant 0 : index
    %c0_54 = arith.constant 0 : index
    %149 = vector.load %arg16[%148, %c0_53, %c0_54] : memref<2x1x64xf32, #tpu.memory_space<vmem>>, vector<1x1x64xf32>
    %150 = vector.shape_cast %149 : vector<1x1x64xf32> to vector<1x64xf32>
    %151 = vector.broadcast %150 : vector<1x64xf32> to vector<16x64xf32>
    %152 = arith.addf %147, %151 : vector<16x64xf32>
    %cst_55 = arith.constant 5.000000e-01 : f32
    %153 = vector.broadcast %cst_55 : f32 to vector<16x64xf32>
    %154 = arith.mulf %153, %152 : vector<16x64xf32>
    %cst_56 = arith.constant 4.471500e-02 : f32
    %155 = vector.broadcast %cst_56 : f32 to vector<16x64xf32>
    %156 = arith.mulf %155, %152 : vector<16x64xf32>
    %157 = arith.mulf %156, %152 : vector<16x64xf32>
    %158 = arith.mulf %157, %152 : vector<16x64xf32>
    %159 = arith.addf %152, %158 : vector<16x64xf32>
    %cst_57 = arith.constant 0.797884583 : f32
    %160 = vector.broadcast %cst_57 : f32 to vector<16x64xf32>
    %161 = arith.mulf %160, %159 : vector<16x64xf32>
    %162 = math.tanh %161 : vector<16x64xf32>
    %cst_58 = arith.constant 1.000000e+00 : f32
    %163 = vector.broadcast %cst_58 : f32 to vector<16x64xf32>
    %164 = arith.addf %163, %162 : vector<16x64xf32>
    %165 = arith.mulf %154, %164 : vector<16x64xf32>
    %166 = arith.truncf %165 : vector<16x64xf32> to vector<16x64xbf16>
    %167 = arith.index_cast %c0_i32 : i32 to index
    %c0_59 = arith.constant 0 : index
    %c0_60 = arith.constant 0 : index
    %168 = vector.load %arg17[%167, %c0_59, %c0_60] : memref<2x64x32xbf16, #tpu.memory_space<vmem>>, vector<1x64x32xbf16>
    %169 = vector.shape_cast %168 : vector<1x64x32xbf16> to vector<64x32xbf16>
    %cst_61 = arith.constant dense<0.000000e+00> : vector<16x32xf32>
    %170 = tpu.matmul %166, %169, %cst_61 {dimension_numbers = #tpu.dot_dimension_numbers<[1], [0], [0], [1], [0, 0, 1, 1], [], []>} : vector<16x64xbf16>, vector<64x32xbf16>, vector<16x32xf32> -> vector<16x32xf32>
    %171 = arith.index_cast %c0_i32 : i32 to index
    %c0_62 = arith.constant 0 : index
    %c0_63 = arith.constant 0 : index
    %172 = vector.load %arg18[%171, %c0_62, %c0_63] : memref<2x1x32xf32, #tpu.memory_space<vmem>>, vector<1x1x32xf32>
    %173 = vector.shape_cast %172 : vector<1x1x32xf32> to vector<1x32xf32>
    %174 = vector.broadcast %173 : vector<1x32xf32> to vector<16x32xf32>
    %175 = arith.addf %170, %174 : vector<16x32xf32>
    %176 = arith.addf %175, %142 : vector<16x32xf32>
    %177 = arith.index_cast %c0_i32 : i32 to index
    %c0_64 = arith.constant 0 : index
    %c0_65 = arith.constant 0 : index
    %178 = vector.load %arg19[%177, %c0_64, %c0_65] : memref<2x1x32xf32, #tpu.memory_space<vmem>>, vector<1x1x32xf32>
    %179 = vector.shape_cast %178 : vector<1x1x32xf32> to vector<1x32xf32>
    %180 = arith.index_cast %c0_i32 : i32 to index
    %c0_66 = arith.constant 0 : index
    %c0_67 = arith.constant 0 : index
    %181 = vector.load %arg20[%180, %c0_66, %c0_67] : memref<2x1x32xf32, #tpu.memory_space<vmem>>, vector<1x1x32xf32>
    %182 = vector.shape_cast %181 : vector<1x1x32xf32> to vector<1x32xf32>
    %cst_68 = arith.constant dense<0.000000e+00> : vector<16xf32>
    %183 = vector.multi_reduction <add>, %176, %cst_68 [1] : vector<16x32xf32> to vector<16xf32>
    %184 = vector.shape_cast %183 : vector<16xf32> to vector<16x1xf32>
    %cst_69 = arith.constant 3.200000e+01 : f32
    %185 = vector.broadcast %cst_69 : f32 to vector<16x1xf32>
    %186 = arith.divf %184, %185 : vector<16x1xf32>
    %187 = vector.broadcast %186 : vector<16x1xf32> to vector<16x32xf32>
    %188 = arith.subf %176, %187 : vector<16x32xf32>
    %189 = arith.mulf %188, %188 : vector<16x32xf32>
    %cst_70 = arith.constant dense<0.000000e+00> : vector<16xf32>
    %190 = vector.multi_reduction <add>, %189, %cst_70 [1] : vector<16x32xf32> to vector<16xf32>
    %191 = vector.shape_cast %190 : vector<16xf32> to vector<16x1xf32>
    %cst_71 = arith.constant 3.200000e+01 : f32
    %192 = vector.broadcast %cst_71 : f32 to vector<16x1xf32>
    %193 = arith.divf %191, %192 : vector<16x1xf32>
    %cst_72 = arith.constant 9.99999996E-13 : f32
    %194 = vector.broadcast %cst_72 : f32 to vector<16x1xf32>
    %195 = arith.addf %193, %194 : vector<16x1xf32>
    %196 = math.rsqrt %195 : vector<16x1xf32>
    %197 = vector.broadcast %196 : vector<16x1xf32> to vector<16x32xf32>
    %198 = arith.mulf %188, %197 : vector<16x32xf32>
    %199 = vector.broadcast %179 : vector<1x32xf32> to vector<16x32xf32>
    %200 = arith.mulf %198, %199 : vector<16x32xf32>
    %201 = vector.broadcast %182 : vector<1x32xf32> to vector<16x32xf32>
    %202 = arith.addf %200, %201 : vector<16x32xf32>
    %c1_i32 = arith.constant 1 : i32
    %203 = arith.truncf %202 : vector<16x32xf32> to vector<16x32xbf16>
    %204 = arith.index_cast %c1_i32 : i32 to index
    %c0_73 = arith.constant 0 : index
    %c0_74 = arith.constant 0 : index
    %205 = vector.load %arg5[%204, %c0_73, %c0_74] : memref<2x32x32xbf16, #tpu.memory_space<vmem>>, vector<1x32x32xbf16>
    %206 = vector.shape_cast %205 : vector<1x32x32xbf16> to vector<32x32xbf16>
    %cst_75 = arith.constant dense<0.000000e+00> : vector<16x32xf32>
    %207 = tpu.matmul %203, %206, %cst_75 {dimension_numbers = #tpu.dot_dimension_numbers<[1], [0], [0], [1], [0, 0, 1, 1], [], []>} : vector<16x32xbf16>, vector<32x32xbf16>, vector<16x32xf32> -> vector<16x32xf32>
    %208 = arith.index_cast %c1_i32 : i32 to index
    %c0_76 = arith.constant 0 : index
    %c0_77 = arith.constant 0 : index
    %209 = vector.load %arg6[%208, %c0_76, %c0_77] : memref<2x1x32xf32, #tpu.memory_space<vmem>>, vector<1x1x32xf32>
    %210 = vector.shape_cast %209 : vector<1x1x32xf32> to vector<1x32xf32>
    %211 = vector.broadcast %210 : vector<1x32xf32> to vector<16x32xf32>
    %212 = arith.addf %207, %211 : vector<16x32xf32>
    %213 = arith.index_cast %c1_i32 : i32 to index
    %c0_78 = arith.constant 0 : index
    %c0_79 = arith.constant 0 : index
    %214 = vector.load %arg7[%213, %c0_78, %c0_79] : memref<2x32x32xbf16, #tpu.memory_space<vmem>>, vector<1x32x32xbf16>
    %215 = vector.shape_cast %214 : vector<1x32x32xbf16> to vector<32x32xbf16>
    %cst_80 = arith.constant dense<0.000000e+00> : vector<16x32xf32>
    %216 = tpu.matmul %203, %215, %cst_80 {dimension_numbers = #tpu.dot_dimension_numbers<[1], [0], [0], [1], [0, 0, 1, 1], [], []>} : vector<16x32xbf16>, vector<32x32xbf16>, vector<16x32xf32> -> vector<16x32xf32>
    %217 = arith.index_cast %c1_i32 : i32 to index
    %c0_81 = arith.constant 0 : index
    %c0_82 = arith.constant 0 : index
    %218 = vector.load %arg8[%217, %c0_81, %c0_82] : memref<2x1x32xf32, #tpu.memory_space<vmem>>, vector<1x1x32xf32>
    %219 = vector.shape_cast %218 : vector<1x1x32xf32> to vector<1x32xf32>
    %220 = vector.broadcast %219 : vector<1x32xf32> to vector<16x32xf32>
    %221 = arith.addf %216, %220 : vector<16x32xf32>
    %222 = arith.index_cast %c1_i32 : i32 to index
    %c0_83 = arith.constant 0 : index
    %c0_84 = arith.constant 0 : index
    %223 = vector.load %arg9[%222, %c0_83, %c0_84] : memref<2x32x32xbf16, #tpu.memory_space<vmem>>, vector<1x32x32xbf16>
    %224 = vector.shape_cast %223 : vector<1x32x32xbf16> to vector<32x32xbf16>
    %cst_85 = arith.constant dense<0.000000e+00> : vector<16x32xf32>
    %225 = tpu.matmul %203, %224, %cst_85 {dimension_numbers = #tpu.dot_dimension_numbers<[1], [0], [0], [1], [0, 0, 1, 1], [], []>} : vector<16x32xbf16>, vector<32x32xbf16>, vector<16x32xf32> -> vector<16x32xf32>
    %226 = arith.index_cast %c1_i32 : i32 to index
    %c0_86 = arith.constant 0 : index
    %c0_87 = arith.constant 0 : index
    %227 = vector.load %arg10[%226, %c0_86, %c0_87] : memref<2x1x32xf32, #tpu.memory_space<vmem>>, vector<1x1x32xf32>
    %228 = vector.shape_cast %227 : vector<1x1x32xf32> to vector<1x32xf32>
    %229 = vector.broadcast %228 : vector<1x32xf32> to vector<16x32xf32>
    %230 = arith.addf %225, %229 : vector<16x32xf32>
    %231 = vector.extract_strided_slice %212 {offsets = [0, 0], sizes = [16, 16], strides = [1, 1]} : vector<16x32xf32> to vector<16x16xf32>
    %232 = vector.shape_cast %231 : vector<16x16xf32> to vector<2x8x16xf32>
    %233 = arith.truncf %232 : vector<2x8x16xf32> to vector<2x8x16xbf16>
    %234 = vector.extract_strided_slice %221 {offsets = [0, 0], sizes = [16, 16], strides = [1, 1]} : vector<16x32xf32> to vector<16x16xf32>
    %235 = vector.shape_cast %234 : vector<16x16xf32> to vector<2x8x16xf32>
    %236 = arith.truncf %235 : vector<2x8x16xf32> to vector<2x8x16xbf16>
    %237 = vector.extract_strided_slice %230 {offsets = [0, 0], sizes = [16, 16], strides = [1, 1]} : vector<16x32xf32> to vector<16x16xf32>
    %238 = vector.shape_cast %237 : vector<16x16xf32> to vector<2x8x16xf32>
    %239 = arith.truncf %238 : vector<2x8x16xf32> to vector<2x8x16xbf16>
    "tpu.trace_start"() <{level = 10 : i32, message = "bqd,bkd->bqk"}> : () -> ()
    %cst_88 = arith.constant dense<0.000000e+00> : vector<2x8x8xf32>
    %240 = tpu.matmul %233, %236, %cst_88 {dimension_numbers = #tpu.dot_dimension_numbers<[2], [2], [1], [1], [0, 0, 0, 1, 1, 1], [0], [0]>} : vector<2x8x16xbf16>, vector<2x8x16xbf16>, vector<2x8x8xf32> -> vector<2x8x8xf32>
    "tpu.trace_stop"() : () -> ()
    %cst_89 = arith.constant 2.500000e-01 : f32
    %241 = vector.broadcast %cst_89 : f32 to vector<2x8x8xf32>
    %242 = arith.mulf %240, %241 : vector<2x8x8xf32>
    %243 = vector.broadcast %24 : vector<2x1x8xf32> to vector<2x8x8xf32>
    %244 = arith.addf %242, %243 : vector<2x8x8xf32>
    %cst_90 = arith.constant dense<0xFF800000> : vector<2x8xf32>
    %245 = vector.multi_reduction <maximumf>, %244, %cst_90 [2] : vector<2x8x8xf32> to vector<2x8xf32>
    %246 = vector.shape_cast %245 : vector<2x8xf32> to vector<2x8x1xf32>
    %247 = vector.broadcast %246 : vector<2x8x1xf32> to vector<2x8x8xf32>
    %248 = arith.subf %244, %247 : vector<2x8x8xf32>
    %249 = math.exp %248 : vector<2x8x8xf32>
    %cst_91 = arith.constant dense<0.000000e+00> : vector<2x8xf32>
    %250 = vector.multi_reduction <add>, %249, %cst_91 [2] : vector<2x8x8xf32> to vector<2x8xf32>
    %251 = vector.shape_cast %250 : vector<2x8xf32> to vector<2x8x1xf32>
    %252 = vector.broadcast %251 : vector<2x8x1xf32> to vector<2x8x8xf32>
    %253 = arith.divf %249, %252 : vector<2x8x8xf32>
    %254 = arith.truncf %253 : vector<2x8x8xf32> to vector<2x8x8xbf16>
    "tpu.trace_start"() <{level = 10 : i32, message = "bqk,bkd->bqd"}> : () -> ()
    %cst_92 = arith.constant dense<0.000000e+00> : vector<2x8x16xf32>
    %255 = tpu.matmul %254, %239, %cst_92 {dimension_numbers = #tpu.dot_dimension_numbers<[2], [1], [1], [2], [0, 0, 0, 1, 1, 2], [0], [0]>} : vector<2x8x8xbf16>, vector<2x8x16xbf16>, vector<2x8x16xf32> -> vector<2x8x16xf32>
    "tpu.trace_stop"() : () -> ()
    %256 = vector.shape_cast %255 : vector<2x8x16xf32> to vector<16x16xf32>
    %257 = vector.extract_strided_slice %212 {offsets = [0, 16], sizes = [16, 16], strides = [1, 1]} : vector<16x32xf32> to vector<16x16xf32>
    %258 = vector.shape_cast %257 : vector<16x16xf32> to vector<2x8x16xf32>
    %259 = arith.truncf %258 : vector<2x8x16xf32> to vector<2x8x16xbf16>
    %260 = vector.extract_strided_slice %221 {offsets = [0, 16], sizes = [16, 16], strides = [1, 1]} : vector<16x32xf32> to vector<16x16xf32>
    %261 = vector.shape_cast %260 : vector<16x16xf32> to vector<2x8x16xf32>
    %262 = arith.truncf %261 : vector<2x8x16xf32> to vector<2x8x16xbf16>
    %263 = vector.extract_strided_slice %230 {offsets = [0, 16], sizes = [16, 16], strides = [1, 1]} : vector<16x32xf32> to vector<16x16xf32>
    %264 = vector.shape_cast %263 : vector<16x16xf32> to vector<2x8x16xf32>
    %265 = arith.truncf %264 : vector<2x8x16xf32> to vector<2x8x16xbf16>
    "tpu.trace_start"() <{level = 10 : i32, message = "bqd,bkd->bqk"}> : () -> ()
    %cst_93 = arith.constant dense<0.000000e+00> : vector<2x8x8xf32>
    %266 = tpu.matmul %259, %262, %cst_93 {dimension_numbers = #tpu.dot_dimension_numbers<[2], [2], [1], [1], [0, 0, 0, 1, 1, 1], [0], [0]>} : vector<2x8x16xbf16>, vector<2x8x16xbf16>, vector<2x8x8xf32> -> vector<2x8x8xf32>
    "tpu.trace_stop"() : () -> ()
    %cst_94 = arith.constant 2.500000e-01 : f32
    %267 = vector.broadcast %cst_94 : f32 to vector<2x8x8xf32>
    %268 = arith.mulf %266, %267 : vector<2x8x8xf32>
    %269 = vector.broadcast %24 : vector<2x1x8xf32> to vector<2x8x8xf32>
    %270 = arith.addf %268, %269 : vector<2x8x8xf32>
    %cst_95 = arith.constant dense<0xFF800000> : vector<2x8xf32>
    %271 = vector.multi_reduction <maximumf>, %270, %cst_95 [2] : vector<2x8x8xf32> to vector<2x8xf32>
    %272 = vector.shape_cast %271 : vector<2x8xf32> to vector<2x8x1xf32>
    %273 = vector.broadcast %272 : vector<2x8x1xf32> to vector<2x8x8xf32>
    %274 = arith.subf %270, %273 : vector<2x8x8xf32>
    %275 = math.exp %274 : vector<2x8x8xf32>
    %cst_96 = arith.constant dense<0.000000e+00> : vector<2x8xf32>
    %276 = vector.multi_reduction <add>, %275, %cst_96 [2] : vector<2x8x8xf32> to vector<2x8xf32>
    %277 = vector.shape_cast %276 : vector<2x8xf32> to vector<2x8x1xf32>
    %278 = vector.broadcast %277 : vector<2x8x1xf32> to vector<2x8x8xf32>
    %279 = arith.divf %275, %278 : vector<2x8x8xf32>
    %280 = arith.truncf %279 : vector<2x8x8xf32> to vector<2x8x8xbf16>
    "tpu.trace_start"() <{level = 10 : i32, message = "bqk,bkd->bqd"}> : () -> ()
    %cst_97 = arith.constant dense<0.000000e+00> : vector<2x8x16xf32>
    %281 = tpu.matmul %280, %265, %cst_97 {dimension_numbers = #tpu.dot_dimension_numbers<[2], [1], [1], [2], [0, 0, 0, 1, 1, 2], [0], [0]>} : vector<2x8x8xbf16>, vector<2x8x16xbf16>, vector<2x8x16xf32> -> vector<2x8x16xf32>
    "tpu.trace_stop"() : () -> ()
    %282 = vector.shape_cast %281 : vector<2x8x16xf32> to vector<16x16xf32>
    %283 = tpu.concatenate %256, %282 in 1 : vector<16x16xf32>, vector<16x16xf32> -> vector<16x32xf32>
    %284 = arith.truncf %283 : vector<16x32xf32> to vector<16x32xbf16>
    %285 = arith.index_cast %c1_i32 : i32 to index
    %c0_98 = arith.constant 0 : index
    %c0_99 = arith.constant 0 : index
    %286 = vector.load %arg11[%285, %c0_98, %c0_99] : memref<2x32x32xbf16, #tpu.memory_space<vmem>>, vector<1x32x32xbf16>
    %287 = vector.shape_cast %286 : vector<1x32x32xbf16> to vector<32x32xbf16>
    %cst_100 = arith.constant dense<0.000000e+00> : vector<16x32xf32>
    %288 = tpu.matmul %284, %287, %cst_100 {dimension_numbers = #tpu.dot_dimension_numbers<[1], [0], [0], [1], [0, 0, 1, 1], [], []>} : vector<16x32xbf16>, vector<32x32xbf16>, vector<16x32xf32> -> vector<16x32xf32>
    %289 = arith.index_cast %c1_i32 : i32 to index
    %c0_101 = arith.constant 0 : index
    %c0_102 = arith.constant 0 : index
    %290 = vector.load %arg12[%289, %c0_101, %c0_102] : memref<2x1x32xf32, #tpu.memory_space<vmem>>, vector<1x1x32xf32>
    %291 = vector.shape_cast %290 : vector<1x1x32xf32> to vector<1x32xf32>
    %292 = vector.broadcast %291 : vector<1x32xf32> to vector<16x32xf32>
    %293 = arith.addf %288, %292 : vector<16x32xf32>
    %294 = arith.addf %293, %202 : vector<16x32xf32>
    %295 = arith.index_cast %c1_i32 : i32 to index
    %c0_103 = arith.constant 0 : index
    %c0_104 = arith.constant 0 : index
    %296 = vector.load %arg13[%295, %c0_103, %c0_104] : memref<2x1x32xf32, #tpu.memory_space<vmem>>, vector<1x1x32xf32>
    %297 = vector.shape_cast %296 : vector<1x1x32xf32> to vector<1x32xf32>
    %298 = arith.index_cast %c1_i32 : i32 to index
    %c0_105 = arith.constant 0 : index
    %c0_106 = arith.constant 0 : index
    %299 = vector.load %arg14[%298, %c0_105, %c0_106] : memref<2x1x32xf32, #tpu.memory_space<vmem>>, vector<1x1x32xf32>
    %300 = vector.shape_cast %299 : vector<1x1x32xf32> to vector<1x32xf32>
    %cst_107 = arith.constant dense<0.000000e+00> : vector<16xf32>
    %301 = vector.multi_reduction <add>, %294, %cst_107 [1] : vector<16x32xf32> to vector<16xf32>
    %302 = vector.shape_cast %301 : vector<16xf32> to vector<16x1xf32>
    %cst_108 = arith.constant 3.200000e+01 : f32
    %303 = vector.broadcast %cst_108 : f32 to vector<16x1xf32>
    %304 = arith.divf %302, %303 : vector<16x1xf32>
    %305 = vector.broadcast %304 : vector<16x1xf32> to vector<16x32xf32>
    %306 = arith.subf %294, %305 : vector<16x32xf32>
    %307 = arith.mulf %306, %306 : vector<16x32xf32>
    %cst_109 = arith.constant dense<0.000000e+00> : vector<16xf32>
    %308 = vector.multi_reduction <add>, %307, %cst_109 [1] : vector<16x32xf32> to vector<16xf32>
    %309 = vector.shape_cast %308 : vector<16xf32> to vector<16x1xf32>
    %cst_110 = arith.constant 3.200000e+01 : f32
    %310 = vector.broadcast %cst_110 : f32 to vector<16x1xf32>
    %311 = arith.divf %309, %310 : vector<16x1xf32>
    %cst_111 = arith.constant 9.99999996E-13 : f32
    %312 = vector.broadcast %cst_111 : f32 to vector<16x1xf32>
    %313 = arith.addf %311, %312 : vector<16x1xf32>
    %314 = math.rsqrt %313 : vector<16x1xf32>
    %315 = vector.broadcast %314 : vector<16x1xf32> to vector<16x32xf32>
    %316 = arith.mulf %306, %315 : vector<16x32xf32>
    %317 = vector.broadcast %297 : vector<1x32xf32> to vector<16x32xf32>
    %318 = arith.mulf %316, %317 : vector<16x32xf32>
    %319 = vector.broadcast %300 : vector<1x32xf32> to vector<16x32xf32>
    %320 = arith.addf %318, %319 : vector<16x32xf32>
    %321 = arith.truncf %320 : vector<16x32xf32> to vector<16x32xbf16>
    %322 = arith.index_cast %c1_i32 : i32 to index
    %c0_112 = arith.constant 0 : index
    %c0_113 = arith.constant 0 : index
    %323 = vector.load %arg15[%322, %c0_112, %c0_113] : memref<2x32x64xbf16, #tpu.memory_space<vmem>>, vector<1x32x64xbf16>
    %324 = vector.shape_cast %323 : vector<1x32x64xbf16> to vector<32x64xbf16>
    %cst_114 = arith.constant dense<0.000000e+00> : vector<16x64xf32>
    %325 = tpu.matmul %321, %324, %cst_114 {dimension_numbers = #tpu.dot_dimension_numbers<[1], [0], [0], [1], [0, 0, 1, 1], [], []>} : vector<16x32xbf16>, vector<32x64xbf16>, vector<16x64xf32> -> vector<16x64xf32>
    %326 = arith.index_cast %c1_i32 : i32 to index
    %c0_115 = arith.constant 0 : index
    %c0_116 = arith.constant 0 : index
    %327 = vector.load %arg16[%326, %c0_115, %c0_116] : memref<2x1x64xf32, #tpu.memory_space<vmem>>, vector<1x1x64xf32>
    %328 = vector.shape_cast %327 : vector<1x1x64xf32> to vector<1x64xf32>
    %329 = vector.broadcast %328 : vector<1x64xf32> to vector<16x64xf32>
    %330 = arith.addf %325, %329 : vector<16x64xf32>
    %cst_117 = arith.constant 5.000000e-01 : f32
    %331 = vector.broadcast %cst_117 : f32 to vector<16x64xf32>
    %332 = arith.mulf %331, %330 : vector<16x64xf32>
    %cst_118 = arith.constant 4.471500e-02 : f32
    %333 = vector.broadcast %cst_118 : f32 to vector<16x64xf32>
    %334 = arith.mulf %333, %330 : vector<16x64xf32>
    %335 = arith.mulf %334, %330 : vector<16x64xf32>
    %336 = arith.mulf %335, %330 : vector<16x64xf32>
    %337 = arith.addf %330, %336 : vector<16x64xf32>
    %cst_119 = arith.constant 0.797884583 : f32
    %338 = vector.broadcast %cst_119 : f32 to vector<16x64xf32>
    %339 = arith.mulf %338, %337 : vector<16x64xf32>
    %340 = math.tanh %339 : vector<16x64xf32>
    %cst_120 = arith.constant 1.000000e+00 : f32
    %341 = vector.broadcast %cst_120 : f32 to vector<16x64xf32>
    %342 = arith.addf %341, %340 : vector<16x64xf32>
    %343 = arith.mulf %332, %342 : vector<16x64xf32>
    %344 = arith.truncf %343 : vector<16x64xf32> to vector<16x64xbf16>
    %345 = arith.index_cast %c1_i32 : i32 to index
    %c0_121 = arith.constant 0 : index
    %c0_122 = arith.constant 0 : index
    %346 = vector.load %arg17[%345, %c0_121, %c0_122] : memref<2x64x32xbf16, #tpu.memory_space<vmem>>, vector<1x64x32xbf16>
    %347 = vector.shape_cast %346 : vector<1x64x32xbf16> to vector<64x32xbf16>
    %cst_123 = arith.constant dense<0.000000e+00> : vector<16x32xf32>
    %348 = tpu.matmul %344, %347, %cst_123 {dimension_numbers = #tpu.dot_dimension_numbers<[1], [0], [0], [1], [0, 0, 1, 1], [], []>} : vector<16x64xbf16>, vector<64x32xbf16>, vector<16x32xf32> -> vector<16x32xf32>
    %349 = arith.index_cast %c1_i32 : i32 to index
    %c0_124 = arith.constant 0 : index
    %c0_125 = arith.constant 0 : index
    %350 = vector.load %arg18[%349, %c0_124, %c0_125] : memref<2x1x32xf32, #tpu.memory_space<vmem>>, vector<1x1x32xf32>
    %351 = vector.shape_cast %350 : vector<1x1x32xf32> to vector<1x32xf32>
    %352 = vector.broadcast %351 : vector<1x32xf32> to vector<16x32xf32>
    %353 = arith.addf %348, %352 : vector<16x32xf32>
    %354 = arith.addf %353, %320 : vector<16x32xf32>
    %355 = arith.index_cast %c1_i32 : i32 to index
    %c0_126 = arith.constant 0 : index
    %c0_127 = arith.constant 0 : index
    %356 = vector.load %arg19[%355, %c0_126, %c0_127] : memref<2x1x32xf32, #tpu.memory_space<vmem>>, vector<1x1x32xf32>
    %357 = vector.shape_cast %356 : vector<1x1x32xf32> to vector<1x32xf32>
    %358 = arith.index_cast %c1_i32 : i32 to index
    %c0_128 = arith.constant 0 : index
    %c0_129 = arith.constant 0 : index
    %359 = vector.load %arg20[%358, %c0_128, %c0_129] : memref<2x1x32xf32, #tpu.memory_space<vmem>>, vector<1x1x32xf32>
    %360 = vector.shape_cast %359 : vector<1x1x32xf32> to vector<1x32xf32>
    %cst_130 = arith.constant dense<0.000000e+00> : vector<16xf32>
    %361 = vector.multi_reduction <add>, %354, %cst_130 [1] : vector<16x32xf32> to vector<16xf32>
    %362 = vector.shape_cast %361 : vector<16xf32> to vector<16x1xf32>
    %cst_131 = arith.constant 3.200000e+01 : f32
    %363 = vector.broadcast %cst_131 : f32 to vector<16x1xf32>
    %364 = arith.divf %362, %363 : vector<16x1xf32>
    %365 = vector.broadcast %364 : vector<16x1xf32> to vector<16x32xf32>
    %366 = arith.subf %354, %365 : vector<16x32xf32>
    %367 = arith.mulf %366, %366 : vector<16x32xf32>
    %cst_132 = arith.constant dense<0.000000e+00> : vector<16xf32>
    %368 = vector.multi_reduction <add>, %367, %cst_132 [1] : vector<16x32xf32> to vector<16xf32>
    %369 = vector.shape_cast %368 : vector<16xf32> to vector<16x1xf32>
    %cst_133 = arith.constant 3.200000e+01 : f32
    %370 = vector.broadcast %cst_133 : f32 to vector<16x1xf32>
    %371 = arith.divf %369, %370 : vector<16x1xf32>
    %cst_134 = arith.constant 9.99999996E-13 : f32
    %372 = vector.broadcast %cst_134 : f32 to vector<16x1xf32>
    %373 = arith.addf %371, %372 : vector<16x1xf32>
    %374 = math.rsqrt %373 : vector<16x1xf32>
    %375 = vector.broadcast %374 : vector<16x1xf32> to vector<16x32xf32>
    %376 = arith.mulf %366, %375 : vector<16x32xf32>
    %377 = vector.broadcast %357 : vector<1x32xf32> to vector<16x32xf32>
    %378 = arith.mulf %376, %377 : vector<16x32xf32>
    %379 = vector.broadcast %360 : vector<1x32xf32> to vector<16x32xf32>
    %380 = arith.addf %378, %379 : vector<16x32xf32>
    %c2_i32 = arith.constant 2 : i32
    %381 = tpu.iota {dimensions = array<i32: 0>} : vector<8x16xi32>
    %382 = tpu.iota {dimensions = array<i32: 1>} : vector<8x16xi32>
    %c8_i32 = arith.constant 8 : i32
    %383 = vector.broadcast %c8_i32 : i32 to vector<8x16xi32>
    %384 = arith.muli %381, %383 : vector<8x16xi32>
    %385 = arith.cmpi eq, %382, %384 : vector<8x16xi32>
    %c2_i32_135 = arith.constant 2 : i32
    %386 = vector.broadcast %c2_i32_135 : i32 to vector<8x16xi32>
    %387 = arith.cmpi slt, %381, %386 : vector<8x16xi32>
    %388 = arith.andi %385, %387 : vector<8x16xi1>
    %cst_136 = arith.constant 1.000000e+00 : f32
    %cst_137 = arith.constant 0.000000e+00 : f32
    %389 = vector.broadcast %cst_136 : f32 to vector<8x16xf32>
    %390 = vector.broadcast %cst_137 : f32 to vector<8x16xf32>
    %391 = arith.select %388, %389, %390 : vector<8x16xi1>, vector<8x16xf32>
    %392 = arith.truncf %391 : vector<8x16xf32> to vector<8x16xbf16>
    %393 = arith.truncf %380 : vector<16x32xf32> to vector<16x32xbf16>
    %cst_138 = arith.constant dense<0.000000e+00> : vector<8x32xf32>
    %394 = tpu.matmul %392, %393, %cst_138 {dimension_numbers = #tpu.dot_dimension_numbers<[1], [0], [0], [1], [0, 0, 1, 1], [], []>} : vector<8x16xbf16>, vector<16x32xbf16>, vector<8x32xf32> -> vector<8x32xf32>
    %395 = arith.truncf %394 : vector<8x32xf32> to vector<8x32xbf16>
    %c0_139 = arith.constant 0 : index
    %c0_140 = arith.constant 0 : index
    %396 = vector.load %arg21[%c0_139, %c0_140] : memref<32x32xbf16, #tpu.memory_space<vmem>>, vector<32x32xbf16>
    %cst_141 = arith.constant dense<0.000000e+00> : vector<8x32xf32>
    %397 = tpu.matmul %395, %396, %cst_141 {dimension_numbers = #tpu.dot_dimension_numbers<[1], [0], [0], [1], [0, 0, 1, 1], [], []>} : vector<8x32xbf16>, vector<32x32xbf16>, vector<8x32xf32> -> vector<8x32xf32>
    %c0_142 = arith.constant 0 : index
    %c0_143 = arith.constant 0 : index
    %398 = vector.load %arg22[%c0_142, %c0_143] : memref<1x32xf32, #tpu.memory_space<vmem>>, vector<1x32xf32>
    %399 = vector.broadcast %398 : vector<1x32xf32> to vector<8x32xf32>
    %400 = arith.addf %397, %399 : vector<8x32xf32>
    %401 = math.tanh %400 : vector<8x32xf32>
    %402 = arith.truncf %401 : vector<8x32xf32> to vector<8x32xbf16>
    %c0_144 = arith.constant 0 : index
    %c0_145 = arith.constant 0 : index
    %403 = vector.load %arg23[%c0_144, %c0_145] : memref<32x128xbf16, #tpu.memory_space<vmem>>, vector<32x128xbf16>
    %cst_146 = arith.constant dense<0.000000e+00> : vector<8x128xf32>
    %404 = tpu.matmul %402, %403, %cst_146 {dimension_numbers = #tpu.dot_dimension_numbers<[1], [0], [0], [1], [0, 0, 1, 1], [], []>} : vector<8x32xbf16>, vector<32x128xbf16>, vector<8x128xf32> -> vector<8x128xf32>
    %c0_147 = arith.constant 0 : index
    %c0_148 = arith.constant 0 : index
    %405 = vector.load %arg24[%c0_147, %c0_148] : memref<1x128xf32, #tpu.memory_space<vmem>>, vector<1x128xf32>
    %406 = vector.broadcast %405 : vector<1x128xf32> to vector<8x128xf32>
    %407 = arith.addf %404, %406 : vector<8x128xf32>
    %cst_149 = arith.constant 0.000000e+00 : f32
    %408 = vector.broadcast %cst_149 : f32 to vector<8x128xf32>
    %409 = arith.maximumf %407, %408 : vector<8x128xf32>
    %c0_150 = arith.constant 0 : index
    %c0_151 = arith.constant 0 : index
    %410 = vector.load %arg25[%c0_150, %c0_151] : memref<8x128xf32, #tpu.memory_space<vmem>>, vector<8x128xf32>
    tpu.vector_store %arg25[%c0_150, %c0_151], %409 {strides = array<i32>} : memref<8x128xf32, #tpu.memory_space<vmem>>, vector<8x128xf32>,
    return
  }
  func.func @transform_0(%arg0: i32) -> (i32, i32) {
    %c0_i32 = arith.constant 0 : i32
    %c0_i32_0 = arith.constant 0 : i32
    %c0_i32_1 = arith.constant 0 : i32
    return %c0_i32, %c0_i32_0 : i32, i32
  }
  func.func @transform_1(%arg0: i32) -> (i32, i32) {
    %c0_i32 = arith.constant 0 : i32
    %c0_i32_0 = arith.constant 0 : i32
    %c0_i32_1 = arith.constant 0 : i32
    return %c0_i32, %c0_i32_0 : i32, i32
  }
  func.func @transform_2(%arg0: i32) -> (i32, i32) {
    %c0_i32 = arith.constant 0 : i32
    %c0_i32_0 = arith.constant 0 : i32
    %c0_i32_1 = arith.constant 0 : i32
    return %c0_i32, %c0_i32_0 : i32, i32
  }
  func.func @transform_3(%arg0: i32) -> (i32, i32) {
    %c0_i32 = arith.constant 0 : i32
    %c0_i32_0 = arith.constant 0 : i32
    %c0_i32_1 = arith.constant 0 : i32
    return %c0_i32, %c0_i32_0 : i32, i32
  }
  func.func @transform_4(%arg0: i32) -> (i32, i32, i32) {
    %c0_i32 = arith.constant 0 : i32
    %c0_i32_0 = arith.constant 0 : i32
    %c0_i32_1 = arith.constant 0 : i32
    %c0_i32_2 = arith.constant 0 : i32
    return %c0_i32, %c0_i32_0, %c0_i32_1 : i32, i32, i32
  }
  func.func @transform_5(%arg0: i32) -> (i32, i32, i32) {
    %c0_i32 = arith.constant 0 : i32
    %c0_i32_0 = arith.constant 0 : i32
    %c0_i32_1 = arith.constant 0 : i32
    %c0_i32_2 = arith.constant 0 : i32
    return %c0_i32, %c0_i32_0, %c0_i32_1 : i32, i32, i32
  }
  func.func @transform_6(%arg0: i32) -> (i32, i32, i32) {
    %c0_i32 = arith.constant 0 : i32
    %c0_i32_0 = arith.constant 0 : i32
    %c0_i32_1 = arith.constant 0 : i32
    %c0_i32_2 = arith.constant 0 : i32
    return %c0_i32, %c0_i32_0, %c0_i32_1 : i32, i32, i32
  }
  func.func @transform_7(%arg0: i32) -> (i32, i32, i32) {
    %c0_i32 = arith.constant 0 : i32
    %c0_i32_0 = arith.constant 0 : i32
    %c0_i32_1 = arith.constant 0 : i32
    %c0_i32_2 = arith.constant 0 : i32
    return %c0_i32, %c0_i32_0, %c0_i32_1 : i32, i32, i32
  }
  func.func @transform_8(%arg0: i32) -> (i32, i32, i32) {
    %c0_i32 = arith.constant 0 : i32
    %c0_i32_0 = arith.constant 0 : i32
    %c0_i32_1 = arith.constant 0 : i32
    %c0_i32_2 = arith.constant 0 : i32
    return %c0_i32, %c0_i32_0, %c0_i32_1 : i32, i32, i32
  }
  func.func @transform_9(%arg0: i32) -> (i32, i32, i32) {
    %c0_i32 = arith.constant 0 : i32
    %c0_i32_0 = arith.constant 0 : i32
    %c0_i32_1 = arith.constant 0 : i32
    %c0_i32_2 = arith.constant 0 : i32
    return %c0_i32, %c0_i32_0, %c0_i32_1 : i32, i32, i32
  }
  func.func @transform_10(%arg0: i32) -> (i32, i32, i32) {
    %c0_i32 = arith.constant 0 : i32
    %c0_i32_0 = arith.constant 0 : i32
    %c0_i32_1 = arith.constant 0 : i32
    %c0_i32_2 = arith.constant 0 : i32
    return %c0_i32, %c0_i32_0, %c0_i32_1 : i32, i32, i32
  }
  func.func @transform_11(%arg0: i32) -> (i32, i32, i32) {
    %c0_i32 = arith.constant 0 : i32
    %c0_i32_0 = arith.constant 0 : i32
    %c0_i32_1 = arith.constant 0 : i32
    %c0_i32_2 = arith.constant 0 : i32
    return %c0_i32, %c0_i32_0, %c0_i32_1 : i32, i32, i32
  }
  func.func @transform_12(%arg0: i32) -> (i32, i32, i32) {
    %c0_i32 = arith.constant 0 : i32
    %c0_i32_0 = arith.constant 0 : i32
    %c0_i32_1 = arith.constant 0 : i32
    %c0_i32_2 = arith.constant 0 : i32
    return %c0_i32, %c0_i32_0, %c0_i32_1 : i32, i32, i32
  }
  func.func @transform_13(%arg0: i32) -> (i32, i32, i32) {
    %c0_i32 = arith.constant 0 : i32
    %c0_i32_0 = arith.constant 0 : i32
    %c0_i32_1 = arith.constant 0 : i32
    %c0_i32_2 = arith.constant 0 : i32
    return %c0_i32, %c0_i32_0, %c0_i32_1 : i32, i32, i32
  }
  func.func @transform_14(%arg0: i32) -> (i32, i32, i32) {
    %c0_i32 = arith.constant 0 : i32
    %c0_i32_0 = arith.constant 0 : i32
    %c0_i32_1 = arith.constant 0 : i32
    %c0_i32_2 = arith.constant 0 : i32
    return %c0_i32, %c0_i32_0, %c0_i32_1 : i32, i32, i32
  }
  func.func @transform_15(%arg0: i32) -> (i32, i32, i32) {
    %c0_i32 = arith.constant 0 : i32
    %c0_i32_0 = arith.constant 0 : i32
    %c0_i32_1 = arith.constant 0 : i32
    %c0_i32_2 = arith.constant 0 : i32
    return %c0_i32, %c0_i32_0, %c0_i32_1 : i32, i32, i32
  }
  func.func @transform_16(%arg0: i32) -> (i32, i32, i32) {
    %c0_i32 = arith.constant 0 : i32
    %c0_i32_0 = arith.constant 0 : i32
    %c0_i32_1 = arith.constant 0 : i32
    %c0_i32_2 = arith.constant 0 : i32
    return %c0_i32, %c0_i32_0, %c0_i32_1 : i32, i32, i32
  }
  func.func @transform_17(%arg0: i32) -> (i32, i32, i32) {
    %c0_i32 = arith.constant 0 : i32
    %c0_i32_0 = arith.constant 0 : i32
    %c0_i32_1 = arith.constant 0 : i32
    %c0_i32_2 = arith.constant 0 : i32
    return %c0_i32, %c0_i32_0, %c0_i32_1 : i32, i32, i32
  }
  func.func @transform_18(%arg0: i32) -> (i32, i32, i32) {
    %c0_i32 = arith.constant 0 : i32
    %c0_i32_0 = arith.constant 0 : i32
    %c0_i32_1 = arith.constant 0 : i32
    %c0_i32_2 = arith.constant 0 : i32
    return %c0_i32, %c0_i32_0, %c0_i32_1 : i32, i32, i32
  }
  func.func @transform_19(%arg0: i32) -> (i32, i32, i32) {
    %c0_i32 = arith.constant 0 : i32
    %c0_i32_0 = arith.constant 0 : i32
    %c0_i32_1 = arith.constant 0 : i32
    %c0_i32_2 = arith.constant 0 : i32
    return %c0_i32, %c0_i32_0, %c0_i32_1 : i32, i32, i32
  }
  func.func @transform_20(%arg0: i32) -> (i32, i32) {
    %c0_i32 = arith.constant 0 : i32
    %c0_i32_0 = arith.constant 0 : i32
    %c0_i32_1 = arith.constant 0 : i32
    return %c0_i32, %c0_i32_0 : i32, i32
  }
  func.func @transform_21(%arg0: i32) -> (i32, i32) {
    %c0_i32 = arith.constant 0 : i32
    %c0_i32_0 = arith.constant 0 : i32
    %c0_i32_1 = arith.constant 0 : i32
    return %c0_i32, %c0_i32_0 : i32, i32
  }
  func.func @transform_22(%arg0: i32) -> (i32, i32) {
    %c0_i32 = arith.constant 0 : i32
    %c0_i32_0 = arith.constant 0 : i32
    %c0_i32_1 = arith.constant 0 : i32
    return %c0_i32, %c0_i32_0 : i32, i32
  }
  func.func @transform_23(%arg0: i32) -> (i32, i32) {
    %c0_i32 = arith.constant 0 : i32
    %c0_i32_0 = arith.constant 0 : i32
    %c0_i32_1 = arith.constant 0 : i32
    return %c0_i32, %c0_i32_0 : i32, i32
  }
  func.func @transform_24(%arg0: i32) -> (i32, i32) {
    %c0_i32 = arith.constant 0 : i32
    %c0_i32_0 = arith.constant 0 : i32
    %c0_i32_1 = arith.constant 0 : i32
    return %c0_i32, %c0_i32_0 : i32, i32
  }
}

</mosaic_0001>

<llo_original>
// kernel: bert_classifier_forward.1
$region0: #{bert_classifier_forward.1}
  #allocation0 [shape = 'u32[]', space=smem, size = 0x4, offset = 0x4, fixed_abs, tag = 'smem constant byte address 0x4 - core index']
  #allocation1 [shape = 'u32[144,128]{1,0:T(1,128)}', space=vmem, size = 0x12000, scoped, tag = 'internal scratch']
  %s0 = inlined_call_operand.vmem [shape: f32[16,32], index: 0, kind: input, shape index: {}]
  %s1 = inlined_call_operand.vmem [shape: f32[2,8], index: 1, kind: input, shape index: {}]
  %s2 = inlined_call_operand.vmem [shape: f32[1,32], index: 2, kind: input, shape index: {}]
  %s3 = inlined_call_operand.vmem [shape: f32[1,32], index: 3, kind: input, shape index: {}]
  %s4 = inlined_call_operand.vmem [shape: bf16[2,32,32], index: 4, kind: input, shape index: {}]
  %s5 = inlined_call_operand.vmem [shape: f32[2,1,32], index: 5, kind: input, shape index: {}]
  %s6 = inlined_call_operand.vmem [shape: bf16[2,32,32], index: 6, kind: input, shape index: {}]
  %s7 = inlined_call_operand.vmem [shape: f32[2,1,32], index: 7, kind: input, shape index: {}]
  %s8 = inlined_call_operand.vmem [shape: bf16[2,32,32], index: 8, kind: input, shape index: {}]
  %s9 = inlined_call_operand.vmem [shape: f32[2,1,32], index: 9, kind: input, shape index: {}]
  %s10 = inlined_call_operand.vmem [shape: bf16[2,32,32], index: 10, kind: input, shape index: {}]
  %s11 = inlined_call_operand.vmem [shape: f32[2,1,32], index: 11, kind: input, shape index: {}]
  %s12 = inlined_call_operand.vmem [shape: f32[2,1,32], index: 12, kind: input, shape index: {}]
  %s13 = inlined_call_operand.vmem [shape: f32[2,1,32], index: 13, kind: input, shape index: {}]
  %s14 = inlined_call_operand.vmem [shape: bf16[2,32,64], index: 14, kind: input, shape index: {}]
  %s15 = inlined_call_operand.vmem [shape: f32[2,1,64], index: 15, kind: input, shape index: {}]
  %s16 = inlined_call_operand.vmem [shape: bf16[2,64,32], index: 16, kind: input, shape index: {}]
  %s17 = inlined_call_operand.vmem [shape: f32[2,1,32], index: 17, kind: input, shape index: {}]
  %s18 = inlined_call_operand.vmem [shape: f32[2,1,32], index: 18, kind: input, shape index: {}]
  %s19 = inlined_call_operand.vmem [shape: f32[2,1,32], index: 19, kind: input, shape index: {}]
  %s20 = inlined_call_operand.vmem [shape: bf16[32,32], index: 20, kind: input, shape index: {}]
  %s21 = inlined_call_operand.vmem [shape: f32[1,32], index: 21, kind: input, shape index: {}]
  %s22 = inlined_call_operand.vmem [shape: bf16[32,128], index: 22, kind: input, shape index: {}]
  %s23 = inlined_call_operand.vmem [shape: f32[1,128], index: 23, kind: input, shape index: {}]
  %s24 = inlined_call_operand.vmem [shape: f32[8,128], index: 24, kind: output, shape index: {}]
  %s25 = sld [smem:[#allocation0]]
  $region106: #{bert_classifier_forward.1} parent=0
    _
  %s27 = ssub.s32 1, %s25
  %s28 = scalar_select 0, %s27, %s25
  // Predicated region
  $region2: #{bert_classifier_forward.1} parent=0 // pred_check
    _
  $region3: #{bert_classifier_forward.1} parent=0 // pred_check_branch
    %30 = sbr.rel (0) target = $region5
  $region4: #{bert_classifier_forward.1} parent=0 // pred_region
    _
  $region5: #{bert_classifier_forward.1} parent=0 // pred_fallthru
    _
  // Predicated region
  $region6: #{bert_classifier_forward.1} parent=0 // pred_check
    _
  $region7: #{bert_classifier_forward.1} parent=0 // pred_check_branch
    %32 = sbr.rel (0) target = $region9
  $region8: #{bert_classifier_forward.1} parent=0 // pred_region
    _
  $region9: #{bert_classifier_forward.1} parent=0 // pred_fallthru
    _
  // Predicated region
  $region10: #{bert_classifier_forward.1} parent=0 // pred_check
    _
  $region11: #{bert_classifier_forward.1} parent=0 // pred_check_branch
    %34 = sbr.rel (0) target = $region13
  $region12: #{bert_classifier_forward.1} parent=0 // pred_region
    _
  $region13: #{bert_classifier_forward.1} parent=0 // pred_fallthru
    _
  // Predicated region
  $region14: #{bert_classifier_forward.1} parent=0 // pred_check
    _
  $region15: #{bert_classifier_forward.1} parent=0 // pred_check_branch
    %36 = sbr.rel (0) target = $region17
  $region16: #{bert_classifier_forward.1} parent=0 // pred_region
    _
  $region17: #{bert_classifier_forward.1} parent=0 // pred_fallthru
    _
  // Predicated region
  $region18: #{bert_classifier_forward.1} parent=0 // pred_check
    _
  $region19: #{bert_classifier_forward.1} parent=0 // pred_check_branch
    %38 = sbr.rel (0) target = $region21
  $region20: #{bert_classifier_forward.1} parent=0 // pred_region
    _
  $region21: #{bert_classifier_forward.1} parent=0 // pred_fallthru
    _
  // Predicated region
  $region22: #{bert_classifier_forward.1} parent=0 // pred_check
    _
  $region23: #{bert_classifier_forward.1} parent=0 // pred_check_branch
    %40 = sbr.rel (0) target = $region25
  $region24: #{bert_classifier_forward.1} parent=0 // pred_region
    _
  $region25: #{bert_classifier_forward.1} parent=0 // pred_fallthru
    _
  // Predicated region
  $region26: #{bert_classifier_forward.1} parent=0 // pred_check
    _
  $region27: #{bert_classifier_forward.1} parent=0 // pred_check_branch
    %42 = sbr.rel (0) target = $region29
  $region28: #{bert_classifier_forward.1} parent=0 // pred_region
    _
  $region29: #{bert_classifier_forward.1} parent=0 // pred_fallthru
    _
  // Predicated region
  $region30: #{bert_classifier_forward.1} parent=0 // pred_check
    _
  $region31: #{bert_classifier_forward.1} parent=0 // pred_check_branch
    %44 = sbr.rel (0) target = $region33
  $region32: #{bert_classifier_forward.1} parent=0 // pred_region
    _
  $region33: #{bert_classifier_forward.1} parent=0 // pred_fallthru
    _
  // Predicated region
  $region34: #{bert_classifier_forward.1} parent=0 // pred_check
    _
  $region35: #{bert_classifier_forward.1} parent=0 // pred_check_branch
    %46 = sbr.rel (0) target = $region37
  $region36: #{bert_classifier_forward.1} parent=0 // pred_region
    _
  $region37: #{bert_classifier_forward.1} parent=0 // pred_fallthru
    _
  // Predicated region
  $region38: #{bert_classifier_forward.1} parent=0 // pred_check
    _
  $region39: #{bert_classifier_forward.1} parent=0 // pred_check_branch
    %48 = sbr.rel (0) target = $region41
  $region40: #{bert_classifier_forward.1} parent=0 // pred_region
    _
  $region41: #{bert_classifier_forward.1} parent=0 // pred_fallthru
    _
  // Predicated region
  $region42: #{bert_classifier_forward.1} parent=0 // pred_check
    _
  $region43: #{bert_classifier_forward.1} parent=0 // pred_check_branch
    %50 = sbr.rel (0) target = $region45
  $region44: #{bert_classifier_forward.1} parent=0 // pred_region
    _
  $region45: #{bert_classifier_forward.1} parent=0 // pred_fallthru
    _
  // Predicated region
  $region46: #{bert_classifier_forward.1} parent=0 // pred_check
    _
  $region47: #{bert_classifier_forward.1} parent=0 // pred_check_branch
    %52 = sbr.rel (0) target = $region49
  $region48: #{bert_classifier_forward.1} parent=0 // pred_region
    _
  $region49: #{bert_classifier_forward.1} parent=0 // pred_fallthru
    _
  // Predicated region
  $region50: #{bert_classifier_forward.1} parent=0 // pred_check
    _
  $region51: #{bert_classifier_forward.1} parent=0 // pred_check_branch
    %54 = sbr.rel (0) target = $region53
  $region52: #{bert_classifier_forward.1} parent=0 // pred_region
    _
  $region53: #{bert_classifier_forward.1} parent=0 // pred_fallthru
    _
  // Predicated region
  $region54: #{bert_classifier_forward.1} parent=0 // pred_check
    _
  $region55: #{bert_classifier_forward.1} parent=0 // pred_check_branch
    %56 = sbr.rel (0) target = $region57
  $region56: #{bert_classifier_forward.1} parent=0 // pred_region
    _
  $region57: #{bert_classifier_forward.1} parent=0 // pred_fallthru
    _
  // Predicated region
  $region58: #{bert_classifier_forward.1} parent=0 // pred_check
    _
  $region59: #{bert_classifier_forward.1} parent=0 // pred_check_branch
    %58 = sbr.rel (0) target = $region61
  $region60: #{bert_classifier_forward.1} parent=0 // pred_region
    _
  $region61: #{bert_classifier_forward.1} parent=0 // pred_fallthru
    _
  // Predicated region
  $region62: #{bert_classifier_forward.1} parent=0 // pred_check
    _
  $region63: #{bert_classifier_forward.1} parent=0 // pred_check_branch
    %60 = sbr.rel (0) target = $region65
  $region64: #{bert_classifier_forward.1} parent=0 // pred_region
    _
  $region65: #{bert_classifier_forward.1} parent=0 // pred_fallthru
    _
  // Predicated region
  $region66: #{bert_classifier_forward.1} parent=0 // pred_check
    _
  $region67: #{bert_classifier_forward.1} parent=0 // pred_check_branch
    %62 = sbr.rel (0) target = $region69
  $region68: #{bert_classifier_forward.1} parent=0 // pred_region
    _
  $region69: #{bert_classifier_forward.1} parent=0 // pred_fallthru
    _
  // Predicated region
  $region70: #{bert_classifier_forward.1} parent=0 // pred_check
    _
  $region71: #{bert_classifier_forward.1} parent=0 // pred_check_branch
    %64 = sbr.rel (0) target = $region73
  $region72: #{bert_classifier_forward.1} parent=0 // pred_region
    _
  $region73: #{bert_classifier_forward.1} parent=0 // pred_fallthru
    _
  // Predicated region
  $region74: #{bert_classifier_forward.1} parent=0 // pred_check
    _
  $region75: #{bert_classifier_forward.1} parent=0 // pred_check_branch
    %66 = sbr.rel (0) target = $region77
  $region76: #{bert_classifier_forward.1} parent=0 // pred_region
    _
  $region77: #{bert_classifier_forward.1} parent=0 // pred_fallthru
    _
  // Predicated region
  $region78: #{bert_classifier_forward.1} parent=0 // pred_check
    _
  $region79: #{bert_classifier_forward.1} parent=0 // pred_check_branch
    %68 = sbr.rel (0) target = $region81
  $region80: #{bert_classifier_forward.1} parent=0 // pred_region
    _
  $region81: #{bert_classifier_forward.1} parent=0 // pred_fallthru
    _
  // Predicated region
  $region82: #{bert_classifier_forward.1} parent=0 // pred_check
    _
  $region83: #{bert_classifier_forward.1} parent=0 // pred_check_branch
    %70 = sbr.rel (0) target = $region85
  $region84: #{bert_classifier_forward.1} parent=0 // pred_region
    _
  $region85: #{bert_classifier_forward.1} parent=0 // pred_fallthru
    _
  // Predicated region
  $region86: #{bert_classifier_forward.1} parent=0 // pred_check
    _
  $region87: #{bert_classifier_forward.1} parent=0 // pred_check_branch
    %72 = sbr.rel (0) target = $region89
  $region88: #{bert_classifier_forward.1} parent=0 // pred_region
    _
  $region89: #{bert_classifier_forward.1} parent=0 // pred_fallthru
    _
  // Predicated region
  $region90: #{bert_classifier_forward.1} parent=0 // pred_check
    _
  $region91: #{bert_classifier_forward.1} parent=0 // pred_check_branch
    %74 = sbr.rel (0) target = $region93
  $region92: #{bert_classifier_forward.1} parent=0 // pred_region
    _
  $region93: #{bert_classifier_forward.1} parent=0 // pred_fallthru
    _
  // Predicated region
  $region94: #{bert_classifier_forward.1} parent=0 // pred_check
    _
  $region95: #{bert_classifier_forward.1} parent=0 // pred_check_branch
    %76 = sbr.rel (0) target = $region97
  $region96: #{bert_classifier_forward.1} parent=0 // pred_region
    _
  $region97: #{bert_classifier_forward.1} parent=0 // pred_fallthru
    _
  %v78 = vld [vmem:[%s0] sm:$0xff]
  %v79 = vld [vmem:[%s0 + $0x8] sm:$0xff]
  %v80 = vld [vmem:[%s2] sm:$0x1]
  %v81 = vld [vmem:[%s3] sm:$0x1]
  %vm82 = vcmask 261120
  %v83 = vsel %vm82, %v78, 0.0
  %84 = vadd.xlane.f32.xlu0 %v83
  %v85 = vpop.xlane.xlu0 %84
  %v86 = vsel %vm82, %v79, 0.0
  %87 = vadd.xlane.f32.xlu0 %v86
  %v88 = vpop.xlane.xlu0 %87
  %v89 = vrcp.pop 32.0
  %v90 = vmul.f32 %v85, %v89
  %v91 = vmul.f32 %v88, %v89
  %v92 = vsub.f32 %v78, %v90
  %v93 = vsub.f32 %v79, %v91
  %v94 = vmul.f32 %v92, %v92
  %v95 = vmul.f32 %v93, %v93
  %v96 = vsel %vm82, %v94, 0.0
  %97 = vadd.xlane.f32.xlu0 %v96
  %v98 = vpop.xlane.xlu0 %97
  %v99 = vsel %vm82, %v95, 0.0
  %100 = vadd.xlane.f32.xlu0 %v99
  %v101 = vpop.xlane.xlu0 %100
  %v102 = vmul.f32 %v98, %v89
  %v103 = vmul.f32 %v101, %v89
  %v104 = vadd.f32 %v102, 1e-12
  %v105 = vadd.f32 %v103, 1e-12
  %v106 = vrsqrt.pop %v104
  %v107 = vrsqrt.pop %v105
  %v108 = vmul.f32 %v92, %v106
  %v109 = vmul.f32 %v93, %v107
  %v111 = vlaneseq
  %v112 = vshrl.u32 %v111, 7
  %v113 = vsub.s32 0, %v112
  %v114 = vrot.slane %v80, %v113
  %v116 = vmul.f32 %v108, %v114
  %v117 = vmul.f32 %v109, %v114
  %v119 = vlaneseq
  %v120 = vshrl.u32 %v119, 7
  %v121 = vsub.s32 0, %v120
  %v122 = vrot.slane %v81, %v121
  %v124 = vadd.f32 %v116, %v122
  %v125 = vadd.f32 %v117, %v122
  %v126 = vld [vmem:[%s1] sm:$0x3]
  %v129 = vunpack.c.l.s4 1966171168
  %v130 = vunpack.c.0.s8 %v129
  %v131 = vlaneseq
  %v132 = vshrl.u32 %v131, 7
  %v133 = vsub.s32 %v130, %v132
  %v134 = vrot.slane %v126, %v133
  %v135 = vcombine.high %v134, %v134
  %v137 = vunpack.c.l.s4 1966171168
  %v138 = vunpack.c.0.s8 %v137
  %v139 = vlaneseq
  %v140 = vshrl.u32 %v139, 7
  %v141 = vsub.s32 %v138, %v140
  %v142 = vrot.slane %v134, %v141
  %v144 = vunpack.c.l.s4 1966171168
  %v145 = vunpack.c.0.s8 %v144
  %v146 = vlaneseq
  %v147 = vshrl.u32 %v146, 7
  %v148 = vsub.s32 %v145, %v147
  %v149 = vrot.slane %v135, %v148
  %v150 = vpack.c.bf16 %v125, %v124
  %v151 = vld [vmem:[%s4] sm:$0xf]
  %v152 = vld [vmem:[%s4 + $0x4] sm:$0xf]
  %v153 = vld [vmem:[%s4 + $0x8] sm:$0xf]
  %v154 = vld [vmem:[%s4 + $0xc] sm:$0xf]
  %v155 = vld [vmem:[%s5] sm:$0x1]
  %v157 = vlaneseq
  %v158 = vshrl.u32 %v157, 7
  %v159 = vsub.s32 0, %v158
  %v160 = vrot.slane %v155, %v159
  %v166 = vunpack.c.l.b16 %v151
  %v167 = vunpack.c.l.b16 %v152
  %v168 = vunpack.c.l.b16 %v153
  %v169 = vunpack.c.l.b16 %v154
  %v170 = vpack.c.b16 %v167, %v166
  %v171 = vpack.c.b16 %v169, %v168
  %v175 = vsel %vm82, %v150, 0
  %177 = vmatprep.subr.bf16.mxu0 0
  %178 = vmatpush1.bf16.msra.mxu0 %v170
  %179 = vmatprep.subr.bf16.mxu0 0
  %180 = vmatpush1.bf16.msra.mxu0 %v171
  %181 = vmatprep.subr.bf16.mxu0 0
  %182 = vmatpush1.bf16.msra.mxu0 0
  %183 = vmatprep.subr.bf16.mxu0 0
  %184 = vmatpush1.bf16.msra.mxu0 0
  %185 = vmatprep.subr.bf16.mxu0 0
  %186 = vmatpush1.bf16.msra.mxu0 0
  %187 = vmatprep.subr.bf16.mxu0 0
  %188 = vmatpush1.bf16.msra.mxu0 0
  %189 = vmatprep.subr.bf16.mxu0 0
  %190 = vmatpush1.bf16.msra.mxu0 0
  %191 = vmatprep.subr.bf16.mxu0 0
  %192 = vmatpush1.bf16.msra.mxu0 0
  %193 = vmatprep.subr.bf16.mxu0 0
  %194 = vmatpush1.bf16.msra.mxu0 0
  %195 = vmatprep.subr.bf16.mxu0 0
  %196 = vmatpush1.bf16.msra.mxu0 0
  %197 = vmatprep.subr.bf16.mxu0 0
  %198 = vmatpush1.bf16.msra.mxu0 0
  %199 = vmatprep.subr.bf16.mxu0 0
  %200 = vmatpush1.bf16.msra.mxu0 0
  %201 = vmatprep.subr.bf16.mxu0 0
  %202 = vmatpush1.bf16.msra.mxu0 0
  %203 = vmatprep.subr.bf16.mxu0 0
  %204 = vmatpush1.bf16.msra.mxu0 0
  %205 = vmatprep.subr.bf16.mxu0 0
  %206 = vmatpush1.bf16.msra.mxu0 0
  %207 = vmatprep.subr.bf16.mxu0 0
  %208 = vmatpush1.bf16.msra.mxu0 0
  %209 = vmatprep.mubr.bf16.mxu0 0
  %210 = vmatmul.mubr.bf16.gmra.mrb[0].mxu0 %v175
  %v211 = vpop.f32.mrb[0].mxu0
  %v212 = vadd.f32 %v160, %v211
  %v213 = vpop.f32.mrb[0].mxu0
  %v214 = vpop.f32.mrb[0].mxu0
  %v215 = vadd.f32 %v160, %v214
  %v216 = vpop.f32.mrb[0].mxu0
  %217 = vdwg.mxu0
  %v218 = vld [vmem:[%s6] sm:$0xf]
  %v219 = vld [vmem:[%s6 + $0x4] sm:$0xf]
  %v220 = vld [vmem:[%s6 + $0x8] sm:$0xf]
  %v221 = vld [vmem:[%s6 + $0xc] sm:$0xf]
  %v222 = vld [vmem:[%s7] sm:$0x1]
  %v224 = vlaneseq
  %v225 = vshrl.u32 %v224, 7
  %v226 = vsub.s32 0, %v225
  %v227 = vrot.slane %v222, %v226
  %v233 = vunpack.c.l.b16 %v218
  %v234 = vunpack.c.l.b16 %v219
  %v235 = vunpack.c.l.b16 %v220
  %v236 = vunpack.c.l.b16 %v221
  %v237 = vpack.c.b16 %v234, %v233
  %v238 = vpack.c.b16 %v236, %v235
  %241 = vmatprep.subr.bf16.mxu0 0
  %242 = vmatpush1.bf16.msra.mxu0 %v237
  %243 = vmatprep.subr.bf16.mxu0 0
  %244 = vmatpush1.bf16.msra.mxu0 %v238
  %245 = vmatprep.subr.bf16.mxu0 0
  %246 = vmatpush1.bf16.msra.mxu0 0
  %247 = vmatprep.subr.bf16.mxu0 0
  %248 = vmatpush1.bf16.msra.mxu0 0
  %249 = vmatprep.subr.bf16.mxu0 0
  %250 = vmatpush1.bf16.msra.mxu0 0
  %251 = vmatprep.subr.bf16.mxu0 0
  %252 = vmatpush1.bf16.msra.mxu0 0
  %253 = vmatprep.subr.bf16.mxu0 0
  %254 = vmatpush1.bf16.msra.mxu0 0
  %255 = vmatprep.subr.bf16.mxu0 0
  %256 = vmatpush1.bf16.msra.mxu0 0
  %257 = vmatprep.subr.bf16.mxu0 0
  %258 = vmatpush1.bf16.msra.mxu0 0
  %259 = vmatprep.subr.bf16.mxu0 0
  %260 = vmatpush1.bf16.msra.mxu0 0
  %261 = vmatprep.subr.bf16.mxu0 0
  %262 = vmatpush1.bf16.msra.mxu0 0
  %263 = vmatprep.subr.bf16.mxu0 0
  %264 = vmatpush1.bf16.msra.mxu0 0
  %265 = vmatprep.subr.bf16.mxu0 0
  %266 = vmatpush1.bf16.msra.mxu0 0
  %267 = vmatprep.subr.bf16.mxu0 0
  %268 = vmatpush1.bf16.msra.mxu0 0
  %269 = vmatprep.subr.bf16.mxu0 0
  %270 = vmatpush1.bf16.msra.mxu0 0
  %271 = vmatprep.subr.bf16.mxu0 0
  %272 = vmatpush1.bf16.msra.mxu0 0
  %273 = vmatprep.mubr.bf16.mxu0 0
  %274 = vmatmul.mubr.bf16.gmra.mrb[0].mxu0 %v175
  %v275 = vpop.f32.mrb[0].mxu0
  %v276 = vadd.f32 %v227, %v275
  %v277 = vpop.f32.mrb[0].mxu0
  %v278 = vpop.f32.mrb[0].mxu0
  %v279 = vadd.f32 %v227, %v278
  %v280 = vpop.f32.mrb[0].mxu0
  %281 = vdwg.mxu0
  %v282 = vld [vmem:[%s8] sm:$0xf]
  %v283 = vld [vmem:[%s8 + $0x4] sm:$0xf]
  %v284 = vld [vmem:[%s8 + $0x8] sm:$0xf]
  %v285 = vld [vmem:[%s8 + $0xc] sm:$0xf]
  %v286 = vld [vmem:[%s9] sm:$0x1]
  %v288 = vlaneseq
  %v289 = vshrl.u32 %v288, 7
  %v290 = vsub.s32 0, %v289
  %v291 = vrot.slane %v286, %v290
  %v297 = vunpack.c.l.b16 %v282
  %v298 = vunpack.c.l.b16 %v283
  %v299 = vunpack.c.l.b16 %v284
  %v300 = vunpack.c.l.b16 %v285
  %v301 = vpack.c.b16 %v298, %v297
  %v302 = vpack.c.b16 %v300, %v299
  %305 = vmatprep.subr.bf16.mxu0 0
  %306 = vmatpush1.bf16.msra.mxu0 %v301
  %307 = vmatprep.subr.bf16.mxu0 0
  %308 = vmatpush1.bf16.msra.mxu0 %v302
  %309 = vmatprep.subr.bf16.mxu0 0
  %310 = vmatpush1.bf16.msra.mxu0 0
  %311 = vmatprep.subr.bf16.mxu0 0
  %312 = vmatpush1.bf16.msra.mxu0 0
  %313 = vmatprep.subr.bf16.mxu0 0
  %314 = vmatpush1.bf16.msra.mxu0 0
  %315 = vmatprep.subr.bf16.mxu0 0
  %316 = vmatpush1.bf16.msra.mxu0 0
  %317 = vmatprep.subr.bf16.mxu0 0
  %318 = vmatpush1.bf16.msra.mxu0 0
  %319 = vmatprep.subr.bf16.mxu0 0
  %320 = vmatpush1.bf16.msra.mxu0 0
  %321 = vmatprep.subr.bf16.mxu0 0
  %322 = vmatpush1.bf16.msra.mxu0 0
  %323 = vmatprep.subr.bf16.mxu0 0
  %324 = vmatpush1.bf16.msra.mxu0 0
  %325 = vmatprep.subr.bf16.mxu0 0
  %326 = vmatpush1.bf16.msra.mxu0 0
  %327 = vmatprep.subr.bf16.mxu0 0
  %328 = vmatpush1.bf16.msra.mxu0 0
  %329 = vmatprep.subr.bf16.mxu0 0
  %330 = vmatpush1.bf16.msra.mxu0 0
  %331 = vmatprep.subr.bf16.mxu0 0
  %332 = vmatpush1.bf16.msra.mxu0 0
  %333 = vmatprep.subr.bf16.mxu0 0
  %334 = vmatpush1.bf16.msra.mxu0 0
  %335 = vmatprep.subr.bf16.mxu0 0
  %336 = vmatpush1.bf16.msra.mxu0 0
  %337 = vmatprep.mubr.bf16.mxu0 0
  %338 = vmatmul.mubr.bf16.gmra.mrb[0].mxu0 %v175
  %v339 = vpop.f32.mrb[0].mxu0
  %v340 = vadd.f32 %v291, %v339
  %v341 = vpop.f32.mrb[0].mxu0
  %v342 = vpop.f32.mrb[0].mxu0
  %v343 = vadd.f32 %v291, %v342
  %v344 = vpop.f32.mrb[0].mxu0
  %345 = vdwg.mxu0
  %v346 = vpack.c.bf16 %v212, %v212
  %v347 = vpack.c.bf16 %v215, %v215
  %v348 = vpack.c.bf16 %v276, %v276
  %v349 = vpack.c.bf16 %v279, %v279
  %v350 = vpack.c.bf16 %v340, %v340
  %v351 = vpack.c.bf16 %v343, %v343
  %vm352 = vcmask 130048
  %v354 = vsel %vm352, %v346, 0
  %v357 = vsel %vm352, %v348, 0
  %359 = vmatprep.subr.bf16.mxu0 0
  %360 = vmatpush1.bf16.xpose.msra.mxu0 %v357
  %361 = vmatprep.subr.bf16.mxu0 0
  %362 = vmatpush1.bf16.xpose.msra.mxu0 0
  %363 = vmatprep.subr.bf16.mxu0 0
  %364 = vmatpush1.bf16.xpose.msra.mxu0 0
  %365 = vmatprep.subr.bf16.mxu0 0
  %366 = vmatpush1.bf16.xpose.msra.mxu0 0
  %367 = vmatprep.subr.bf16.mxu0 0
  %368 = vmatpush1.bf16.xpose.msra.mxu0 0
  %369 = vmatprep.subr.bf16.mxu0 0
  %370 = vmatpush1.bf16.xpose.msra.mxu0 0
  %371 = vmatprep.subr.bf16.mxu0 0
  %372 = vmatpush1.bf16.xpose.msra.mxu0 0
  %373 = vmatprep.subr.bf16.mxu0 0
  %374 = vmatpush1.bf16.xpose.msra.mxu0 0
  %375 = vmatprep.subr.bf16.mxu0 0
  %376 = vmatpush1.bf16.xpose.msra.mxu0 0
  %377 = vmatprep.subr.bf16.mxu0 0
  %378 = vmatpush1.bf16.xpose.msra.mxu0 0
  %379 = vmatprep.subr.bf16.mxu0 0
  %380 = vmatpush1.bf16.xpose.msra.mxu0 0
  %381 = vmatprep.subr.bf16.mxu0 0
  %382 = vmatpush1.bf16.xpose.msra.mxu0 0
  %383 = vmatprep.subr.bf16.mxu0 0
  %384 = vmatpush1.bf16.xpose.msra.mxu0 0
  %385 = vmatprep.subr.bf16.mxu0 0
  %386 = vmatpush1.bf16.xpose.msra.mxu0 0
  %387 = vmatprep.subr.bf16.mxu0 0
  %388 = vmatpush1.bf16.xpose.msra.mxu0 0
  %389 = vmatprep.subr.bf16.mxu0 0
  %390 = vmatpush1.bf16.xpose.msra.mxu0 0
  %391 = vmatprep.mubr.bf16.mxu0 0
  %392 = vmatmul.mubr.bf16.gmra.mrb[0].mxu0 %v354
  %v393 = vpop.f32.mrb[0].mxu0
  %v394 = vadd.f32 0.0, %v393
  %v395 = vpop.f32.mrb[0].mxu0
  %v396 = vpop.f32.mrb[0].mxu0
  %v397 = vpop.f32.mrb[0].mxu0
  %398 = vdwg.mxu0
  %v400 = vsel %vm352, %v347, 0
  %v403 = vsel %vm352, %v349, 0
  %405 = vmatprep.subr.bf16.mxu0 0
  %406 = vmatpush1.bf16.xpose.msra.mxu0 %v403
  %407 = vmatprep.subr.bf16.mxu0 0
  %408 = vmatpush1.bf16.xpose.msra.mxu0 0
  %409 = vmatprep.subr.bf16.mxu0 0
  %410 = vmatpush1.bf16.xpose.msra.mxu0 0
  %411 = vmatprep.subr.bf16.mxu0 0
  %412 = vmatpush1.bf16.xpose.msra.mxu0 0
  %413 = vmatprep.subr.bf16.mxu0 0
  %414 = vmatpush1.bf16.xpose.msra.mxu0 0
  %415 = vmatprep.subr.bf16.mxu0 0
  %416 = vmatpush1.bf16.xpose.msra.mxu0 0
  %417 = vmatprep.subr.bf16.mxu0 0
  %418 = vmatpush1.bf16.xpose.msra.mxu0 0
  %419 = vmatprep.subr.bf16.mxu0 0
  %420 = vmatpush1.bf16.xpose.msra.mxu0 0
  %421 = vmatprep.subr.bf16.mxu0 0
  %422 = vmatpush1.bf16.xpose.msra.mxu0 0
  %423 = vmatprep.subr.bf16.mxu0 0
  %424 = vmatpush1.bf16.xpose.msra.mxu0 0
  %425 = vmatprep.subr.bf16.mxu0 0
  %426 = vmatpush1.bf16.xpose.msra.mxu0 0
  %427 = vmatprep.subr.bf16.mxu0 0
  %428 = vmatpush1.bf16.xpose.msra.mxu0 0
  %429 = vmatprep.subr.bf16.mxu0 0
  %430 = vmatpush1.bf16.xpose.msra.mxu0 0
  %431 = vmatprep.subr.bf16.mxu0 0
  %432 = vmatpush1.bf16.xpose.msra.mxu0 0
  %433 = vmatprep.subr.bf16.mxu0 0
  %434 = vmatpush1.bf16.xpose.msra.mxu0 0
  %435 = vmatprep.subr.bf16.mxu0 0
  %436 = vmatpush1.bf16.xpose.msra.mxu0 0
  %437 = vmatprep.mubr.bf16.mxu0 0
  %438 = vmatmul.mubr.bf16.gmra.mrb[0].mxu0 %v400
  %v439 = vpop.f32.mrb[0].mxu0
  %v440 = vadd.f32 0.0, %v439
  %v441 = vpop.f32.mrb[0].mxu0
  %v442 = vpop.f32.mrb[0].mxu0
  %v443 = vpop.f32.mrb[0].mxu0
  %444 = vdwg.mxu0
  %v445 = vmul.f32 %v394, 0.25
  %v446 = vmul.f32 %v440, 0.25
  %v447 = vlaneseq
  %v448 = vshrl.u32 %v447, 7
  %v449 = vsub.s32 0, %v448
  %v450 = vrot.slane %v142, %v449
  %v451 = vlaneseq
  %v452 = vshrl.u32 %v451, 7
  %v453 = vsub.s32 0, %v452
  %v454 = vrot.slane %v149, %v453
  %v457 = vadd.f32 %v445, %v450
  %v458 = vadd.f32 %v446, %v454
  %vm459 = vcmask 64512
  %v460 = vsel %vm459, %v457, -inf
  %461 = vmax.xlane.f32.xlu0 %v460
  %v462 = vpop.xlane.xlu0 %461
  %v463 = vsel %vm459, %v458, -inf
  %464 = vmax.xlane.f32.xlu0 %v463
  %v465 = vpop.xlane.xlu0 %464
  %v466 = vsub.f32 %v457, %v462
  %v467 = vsub.f32 %v458, %v465
  %v468 = vmul.f32 %v466, 1.442695
  %v469 = vpow.pop %v468
  %v470 = vmul.f32 %v467, 1.442695
  %v471 = vpow.pop %v470
  %v472 = vsel %vm459, %v469, 0.0
  %473 = vadd.xlane.f32.xlu0 %v472
  %v474 = vpop.xlane.xlu0 %473
  %v475 = vsel %vm459, %v471, 0.0
  %476 = vadd.xlane.f32.xlu0 %v475
  %v477 = vpop.xlane.xlu0 %476
  %v478 = vrcp.pop %v474
  %v479 = vmul.f32 %v469, %v478
  %v480 = vrcp.pop %v477
  %v481 = vmul.f32 %v471, %v480
  %v482 = vpack.c.bf16 %v479, %v479
  %v483 = vpack.c.bf16 %v481, %v481
  %v485 = vsel %vm459, %v482, 0
  %vm487 = vcmask 1043456
  %v489 = vsel %vm487, %v350, 0
  %491 = vmatprep.subr.bf16.mxu0 0
  %492 = vmatpush1.bf16.msra.mxu0 %v489
  %493 = vmatprep.subr.bf16.mxu0 0
  %494 = vmatpush1.bf16.msra.mxu0 0
  %495 = vmatprep.subr.bf16.mxu0 0
  %496 = vmatpush1.bf16.msra.mxu0 0
  %497 = vmatprep.subr.bf16.mxu0 0
  %498 = vmatpush1.bf16.msra.mxu0 0
  %499 = vmatprep.subr.bf16.mxu0 0
  %500 = vmatpush1.bf16.msra.mxu0 0
  %501 = vmatprep.subr.bf16.mxu0 0
  %502 = vmatpush1.bf16.msra.mxu0 0
  %503 = vmatprep.subr.bf16.mxu0 0
  %504 = vmatpush1.bf16.msra.mxu0 0
  %505 = vmatprep.subr.bf16.mxu0 0
  %506 = vmatpush1.bf16.msra.mxu0 0
  %507 = vmatprep.subr.bf16.mxu0 0
  %508 = vmatpush1.bf16.msra.mxu0 0
  %509 = vmatprep.subr.bf16.mxu0 0
  %510 = vmatpush1.bf16.msra.mxu0 0
  %511 = vmatprep.subr.bf16.mxu0 0
  %512 = vmatpush1.bf16.msra.mxu0 0
  %513 = vmatprep.subr.bf16.mxu0 0
  %514 = vmatpush1.bf16.msra.mxu0 0
  %515 = vmatprep.subr.bf16.mxu0 0
  %516 = vmatpush1.bf16.msra.mxu0 0
  %517 = vmatprep.subr.bf16.mxu0 0
  %518 = vmatpush1.bf16.msra.mxu0 0
  %519 = vmatprep.subr.bf16.mxu0 0
  %520 = vmatpush1.bf16.msra.mxu0 0
  %521 = vmatprep.subr.bf16.mxu0 0
  %522 = vmatpush1.bf16.msra.mxu0 0
  %523 = vmatprep.mubr.bf16.mxu0 0
  %524 = vmatmul.mubr.bf16.gmra.mrb[0].mxu0 %v485
  %v525 = vpop.f32.mrb[0].mxu0
  %v526 = vadd.f32 0.0, %v525
  %v527 = vpop.f32.mrb[0].mxu0
  %v528 = vpop.f32.mrb[0].mxu0
  %v529 = vpop.f32.mrb[0].mxu0
  %530 = vdwg.mxu0
  %v532 = vsel %vm459, %v483, 0
  %v535 = vsel %vm487, %v351, 0
  %537 = vmatprep.subr.bf16.mxu0 0
  %538 = vmatpush1.bf16.msra.mxu0 %v535
  %539 = vmatprep.subr.bf16.mxu0 0
  %540 = vmatpush1.bf16.msra.mxu0 0
  %541 = vmatprep.subr.bf16.mxu0 0
  %542 = vmatpush1.bf16.msra.mxu0 0
  %543 = vmatprep.subr.bf16.mxu0 0
  %544 = vmatpush1.bf16.msra.mxu0 0
  %545 = vmatprep.subr.bf16.mxu0 0
  %546 = vmatpush1.bf16.msra.mxu0 0
  %547 = vmatprep.subr.bf16.mxu0 0
  %548 = vmatpush1.bf16.msra.mxu0 0
  %549 = vmatprep.subr.bf16.mxu0 0
  %550 = vmatpush1.bf16.msra.mxu0 0
  %551 = vmatprep.subr.bf16.mxu0 0
  %552 = vmatpush1.bf16.msra.mxu0 0
  %553 = vmatprep.subr.bf16.mxu0 0
  %554 = vmatpush1.bf16.msra.mxu0 0
  %555 = vmatprep.subr.bf16.mxu0 0
  %556 = vmatpush1.bf16.msra.mxu0 0
  %557 = vmatprep.subr.bf16.mxu0 0
  %558 = vmatpush1.bf16.msra.mxu0 0
  %559 = vmatprep.subr.bf16.mxu0 0
  %560 = vmatpush1.bf16.msra.mxu0 0
  %561 = vmatprep.subr.bf16.mxu0 0
  %562 = vmatpush1.bf16.msra.mxu0 0
  %563 = vmatprep.subr.bf16.mxu0 0
  %564 = vmatpush1.bf16.msra.mxu0 0
  %565 = vmatprep.subr.bf16.mxu0 0
  %566 = vmatpush1.bf16.msra.mxu0 0
  %567 = vmatprep.subr.bf16.mxu0 0
  %568 = vmatpush1.bf16.msra.mxu0 0
  %569 = vmatprep.mubr.bf16.mxu0 0
  %570 = vmatmul.mubr.bf16.gmra.mrb[0].mxu0 %v532
  %v571 = vpop.f32.mrb[0].mxu0
  %v572 = vadd.f32 0.0, %v571
  %v573 = vpop.f32.mrb[0].mxu0
  %v574 = vpop.f32.mrb[0].mxu0
  %v575 = vpop.f32.mrb[0].mxu0
  %576 = vdwg.mxu0
  %578 = vrot.lane.b32.xlu0 %v346, 112
  %v579 = vpop.permute.xlu0 %578
  %581 = vrot.lane.b32.xlu0 %v348, 112
  %v582 = vpop.permute.xlu0 %581
  %v584 = vsel %vm352, %v579, 0
  %v587 = vsel %vm352, %v582, 0
  %589 = vmatprep.subr.bf16.mxu0 0
  %590 = vmatpush1.bf16.xpose.msra.mxu0 %v587
  %591 = vmatprep.subr.bf16.mxu0 0
  %592 = vmatpush1.bf16.xpose.msra.mxu0 0
  %593 = vmatprep.subr.bf16.mxu0 0
  %594 = vmatpush1.bf16.xpose.msra.mxu0 0
  %595 = vmatprep.subr.bf16.mxu0 0
  %596 = vmatpush1.bf16.xpose.msra.mxu0 0
  %597 = vmatprep.subr.bf16.mxu0 0
  %598 = vmatpush1.bf16.xpose.msra.mxu0 0
  %599 = vmatprep.subr.bf16.mxu0 0
  %600 = vmatpush1.bf16.xpose.msra.mxu0 0
  %601 = vmatprep.subr.bf16.mxu0 0
  %602 = vmatpush1.bf16.xpose.msra.mxu0 0
  %603 = vmatprep.subr.bf16.mxu0 0
  %604 = vmatpush1.bf16.xpose.msra.mxu0 0
  %605 = vmatprep.subr.bf16.mxu0 0
  %606 = vmatpush1.bf16.xpose.msra.mxu0 0
  %607 = vmatprep.subr.bf16.mxu0 0
  %608 = vmatpush1.bf16.xpose.msra.mxu0 0
  %609 = vmatprep.subr.bf16.mxu0 0
  %610 = vmatpush1.bf16.xpose.msra.mxu0 0
  %611 = vmatprep.subr.bf16.mxu0 0
  %612 = vmatpush1.bf16.xpose.msra.mxu0 0
  %613 = vmatprep.subr.bf16.mxu0 0
  %614 = vmatpush1.bf16.xpose.msra.mxu0 0
  %615 = vmatprep.subr.bf16.mxu0 0
  %616 = vmatpush1.bf16.xpose.msra.mxu0 0
  %617 = vmatprep.subr.bf16.mxu0 0
  %618 = vmatpush1.bf16.xpose.msra.mxu0 0
  %619 = vmatprep.subr.bf16.mxu0 0
  %620 = vmatpush1.bf16.xpose.msra.mxu0 0
  %621 = vmatprep.mubr.bf16.mxu0 0
  %622 = vmatmul.mubr.bf16.gmra.mrb[0].mxu0 %v584
  %v623 = vpop.f32.mrb[0].mxu0
  %v624 = vadd.f32 0.0, %v623
  %v625 = vpop.f32.mrb[0].mxu0
  %v626 = vpop.f32.mrb[0].mxu0
  %v627 = vpop.f32.mrb[0].mxu0
  %628 = vdwg.mxu0
  %630 = vrot.lane.b32.xlu0 %v347, 112
  %v631 = vpop.permute.xlu0 %630
  %633 = vrot.lane.b32.xlu0 %v349, 112
  %v634 = vpop.permute.xlu0 %633
  %v636 = vsel %vm352, %v631, 0
  %v639 = vsel %vm352, %v634, 0
  %641 = vmatprep.subr.bf16.mxu0 0
  %642 = vmatpush1.bf16.xpose.msra.mxu0 %v639
  %643 = vmatprep.subr.bf16.mxu0 0
  %644 = vmatpush1.bf16.xpose.msra.mxu0 0
  %645 = vmatprep.subr.bf16.mxu0 0
  %646 = vmatpush1.bf16.xpose.msra.mxu0 0
  %647 = vmatprep.subr.bf16.mxu0 0
  %648 = vmatpush1.bf16.xpose.msra.mxu0 0
  %649 = vmatprep.subr.bf16.mxu0 0
  %650 = vmatpush1.bf16.xpose.msra.mxu0 0
  %651 = vmatprep.subr.bf16.mxu0 0
  %652 = vmatpush1.bf16.xpose.msra.mxu0 0
  %653 = vmatprep.subr.bf16.mxu0 0
  %654 = vmatpush1.bf16.xpose.msra.mxu0 0
  %655 = vmatprep.subr.bf16.mxu0 0
  %656 = vmatpush1.bf16.xpose.msra.mxu0 0
  %657 = vmatprep.subr.bf16.mxu0 0
  %658 = vmatpush1.bf16.xpose.msra.mxu0 0
  %659 = vmatprep.subr.bf16.mxu0 0
  %660 = vmatpush1.bf16.xpose.msra.mxu0 0
  %661 = vmatprep.subr.bf16.mxu0 0
  %662 = vmatpush1.bf16.xpose.msra.mxu0 0
  %663 = vmatprep.subr.bf16.mxu0 0
  %664 = vmatpush1.bf16.xpose.msra.mxu0 0
  %665 = vmatprep.subr.bf16.mxu0 0
  %666 = vmatpush1.bf16.xpose.msra.mxu0 0
  %667 = vmatprep.subr.bf16.mxu0 0
  %668 = vmatpush1.bf16.xpose.msra.mxu0 0
  %669 = vmatprep.subr.bf16.mxu0 0
  %670 = vmatpush1.bf16.xpose.msra.mxu0 0
  %671 = vmatprep.subr.bf16.mxu0 0
  %672 = vmatpush1.bf16.xpose.msra.mxu0 0
  %673 = vmatprep.mubr.bf16.mxu0 0
  %674 = vmatmul.mubr.bf16.gmra.mrb[0].mxu0 %v636
  %v675 = vpop.f32.mrb[0].mxu0
  %v676 = vadd.f32 0.0, %v675
  %v677 = vpop.f32.mrb[0].mxu0
  %v678 = vpop.f32.mrb[0].mxu0
  %v679 = vpop.f32.mrb[0].mxu0
  %680 = vdwg.mxu0
  %v681 = vmul.f32 %v624, 0.25
  %v682 = vmul.f32 %v676, 0.25
  %v683 = vadd.f32 %v681, %v450
  %v684 = vadd.f32 %v682, %v454
  %v685 = vsel %vm459, %v683, -inf
  %686 = vmax.xlane.f32.xlu0 %v685
  %v687 = vpop.xlane.xlu0 %686
  %v688 = vsel %vm459, %v684, -inf
  %689 = vmax.xlane.f32.xlu0 %v688
  %v690 = vpop.xlane.xlu0 %689
  %v691 = vsub.f32 %v683, %v687
  %v692 = vsub.f32 %v684, %v690
  %v693 = vmul.f32 %v691, 1.442695
  %v694 = vpow.pop %v693
  %v695 = vmul.f32 %v692, 1.442695
  %v696 = vpow.pop %v695
  %v697 = vsel %vm459, %v694, 0.0
  %698 = vadd.xlane.f32.xlu0 %v697
  %v699 = vpop.xlane.xlu0 %698
  %v700 = vsel %vm459, %v696, 0.0
  %701 = vadd.xlane.f32.xlu0 %v700
  %v702 = vpop.xlane.xlu0 %701
  %v703 = vrcp.pop %v699
  %v704 = vmul.f32 %v694, %v703
  %v705 = vrcp.pop %v702
  %v706 = vmul.f32 %v696, %v705
  %v707 = vpack.c.bf16 %v704, %v704
  %v708 = vpack.c.bf16 %v706, %v706
  %710 = vrot.lane.b32.xlu0 %v350, 112
  %v711 = vpop.permute.xlu0 %710
  %v713 = vsel %vm459, %v707, 0
  %v716 = vsel %vm487, %v711, 0
  %718 = vmatprep.subr.bf16.mxu0 0
  %719 = vmatpush1.bf16.msra.mxu0 %v716
  %720 = vmatprep.subr.bf16.mxu0 0
  %721 = vmatpush1.bf16.msra.mxu0 0
  %722 = vmatprep.subr.bf16.mxu0 0
  %723 = vmatpush1.bf16.msra.mxu0 0
  %724 = vmatprep.subr.bf16.mxu0 0
  %725 = vmatpush1.bf16.msra.mxu0 0
  %726 = vmatprep.subr.bf16.mxu0 0
  %727 = vmatpush1.bf16.msra.mxu0 0
  %728 = vmatprep.subr.bf16.mxu0 0
  %729 = vmatpush1.bf16.msra.mxu0 0
  %730 = vmatprep.subr.bf16.mxu0 0
  %731 = vmatpush1.bf16.msra.mxu0 0
  %732 = vmatprep.subr.bf16.mxu0 0
  %733 = vmatpush1.bf16.msra.mxu0 0
  %734 = vmatprep.subr.bf16.mxu0 0
  %735 = vmatpush1.bf16.msra.mxu0 0
  %736 = vmatprep.subr.bf16.mxu0 0
  %737 = vmatpush1.bf16.msra.mxu0 0
  %738 = vmatprep.subr.bf16.mxu0 0
  %739 = vmatpush1.bf16.msra.mxu0 0
  %740 = vmatprep.subr.bf16.mxu0 0
  %741 = vmatpush1.bf16.msra.mxu0 0
  %742 = vmatprep.subr.bf16.mxu0 0
  %743 = vmatpush1.bf16.msra.mxu0 0
  %744 = vmatprep.subr.bf16.mxu0 0
  %745 = vmatpush1.bf16.msra.mxu0 0
  %746 = vmatprep.subr.bf16.mxu0 0
  %747 = vmatpush1.bf16.msra.mxu0 0
  %748 = vmatprep.subr.bf16.mxu0 0
  %749 = vmatpush1.bf16.msra.mxu0 0
  %750 = vmatprep.mubr.bf16.mxu0 0
  %751 = vmatmul.mubr.bf16.gmra.mrb[0].mxu0 %v713
  %v752 = vpop.f32.mrb[0].mxu0
  %v753 = vadd.f32 0.0, %v752
  %v754 = vpop.f32.mrb[0].mxu0
  %v755 = vpop.f32.mrb[0].mxu0
  %v756 = vpop.f32.mrb[0].mxu0
  %757 = vdwg.mxu0
  %759 = vrot.lane.b32.xlu0 %v351, 112
  %v760 = vpop.permute.xlu0 %759
  %v762 = vsel %vm459, %v708, 0
  %v765 = vsel %vm487, %v760, 0
  %767 = vmatprep.subr.bf16.mxu0 0
  %768 = vmatpush1.bf16.msra.mxu0 %v765
  %769 = vmatprep.subr.bf16.mxu0 0
  %770 = vmatpush1.bf16.msra.mxu0 0
  %771 = vmatprep.subr.bf16.mxu0 0
  %772 = vmatpush1.bf16.msra.mxu0 0
  %773 = vmatprep.subr.bf16.mxu0 0
  %774 = vmatpush1.bf16.msra.mxu0 0
  %775 = vmatprep.subr.bf16.mxu0 0
  %776 = vmatpush1.bf16.msra.mxu0 0
  %777 = vmatprep.subr.bf16.mxu0 0
  %778 = vmatpush1.bf16.msra.mxu0 0
  %779 = vmatprep.subr.bf16.mxu0 0
  %780 = vmatpush1.bf16.msra.mxu0 0
  %781 = vmatprep.subr.bf16.mxu0 0
  %782 = vmatpush1.bf16.msra.mxu0 0
  %783 = vmatprep.subr.bf16.mxu0 0
  %784 = vmatpush1.bf16.msra.mxu0 0
  %785 = vmatprep.subr.bf16.mxu0 0
  %786 = vmatpush1.bf16.msra.mxu0 0
  %787 = vmatprep.subr.bf16.mxu0 0
  %788 = vmatpush1.bf16.msra.mxu0 0
  %789 = vmatprep.subr.bf16.mxu0 0
  %790 = vmatpush1.bf16.msra.mxu0 0
  %791 = vmatprep.subr.bf16.mxu0 0
  %792 = vmatpush1.bf16.msra.mxu0 0
  %793 = vmatprep.subr.bf16.mxu0 0
  %794 = vmatpush1.bf16.msra.mxu0 0
  %795 = vmatprep.subr.bf16.mxu0 0
  %796 = vmatpush1.bf16.msra.mxu0 0
  %797 = vmatprep.subr.bf16.mxu0 0
  %798 = vmatpush1.bf16.msra.mxu0 0
  %799 = vmatprep.mubr.bf16.mxu0 0
  %800 = vmatmul.mubr.bf16.gmra.mrb[0].mxu0 %v762
  %v801 = vpop.f32.mrb[0].mxu0
  %v802 = vadd.f32 0.0, %v801
  %v803 = vpop.f32.mrb[0].mxu0
  %v804 = vpop.f32.mrb[0].mxu0
  %v805 = vpop.f32.mrb[0].mxu0
  %806 = vdwg.mxu0
  %809 = vrot.lane.b32.xlu0 %v753, 16
  %v810 = vpop.permute.xlu0 %809
  %811 = vrot.lane.b32.xlu0 %v802, 16
  %v812 = vpop.permute.xlu0 %811
  %v815 = vsel %vm352, %v526, %v810
  %v816 = vsel %vm352, %v572, %v812
  %v817 = vpack.c.bf16 %v816, %v815
  %v818 = vld [vmem:[%s10] sm:$0xf]
  %v819 = vld [vmem:[%s10 + $0x4] sm:$0xf]
  %v820 = vld [vmem:[%s10 + $0x8] sm:$0xf]
  %v821 = vld [vmem:[%s10 + $0xc] sm:$0xf]
  %v822 = vld [vmem:[%s11] sm:$0x1]
  %v824 = vlaneseq
  %v825 = vshrl.u32 %v824, 7
  %v826 = vsub.s32 0, %v825
  %v827 = vrot.slane %v822, %v826
  %v833 = vunpack.c.l.b16 %v818
  %v834 = vunpack.c.l.b16 %v819
  %v835 = vunpack.c.l.b16 %v820
  %v836 = vunpack.c.l.b16 %v821
  %v837 = vpack.c.b16 %v834, %v833
  %v838 = vpack.c.b16 %v836, %v835
  %v842 = vsel %vm82, %v817, 0
  %844 = vmatprep.subr.bf16.mxu0 0
  %845 = vmatpush1.bf16.msra.mxu0 %v837
  %846 = vmatprep.subr.bf16.mxu0 0
  %847 = vmatpush1.bf16.msra.mxu0 %v838
  %848 = vmatprep.subr.bf16.mxu0 0
  %849 = vmatpush1.bf16.msra.mxu0 0
  %850 = vmatprep.subr.bf16.mxu0 0
  %851 = vmatpush1.bf16.msra.mxu0 0
  %852 = vmatprep.subr.bf16.mxu0 0
  %853 = vmatpush1.bf16.msra.mxu0 0
  %854 = vmatprep.subr.bf16.mxu0 0
  %855 = vmatpush1.bf16.msra.mxu0 0
  %856 = vmatprep.subr.bf16.mxu0 0
  %857 = vmatpush1.bf16.msra.mxu0 0
  %858 = vmatprep.subr.bf16.mxu0 0
  %859 = vmatpush1.bf16.msra.mxu0 0
  %860 = vmatprep.subr.bf16.mxu0 0
  %861 = vmatpush1.bf16.msra.mxu0 0
  %862 = vmatprep.subr.bf16.mxu0 0
  %863 = vmatpush1.bf16.msra.mxu0 0
  %864 = vmatprep.subr.bf16.mxu0 0
  %865 = vmatpush1.bf16.msra.mxu0 0
  %866 = vmatprep.subr.bf16.mxu0 0
  %867 = vmatpush1.bf16.msra.mxu0 0
  %868 = vmatprep.subr.bf16.mxu0 0
  %869 = vmatpush1.bf16.msra.mxu0 0
  %870 = vmatprep.subr.bf16.mxu0 0
  %871 = vmatpush1.bf16.msra.mxu0 0
  %872 = vmatprep.subr.bf16.mxu0 0
  %873 = vmatpush1.bf16.msra.mxu0 0
  %874 = vmatprep.subr.bf16.mxu0 0
  %875 = vmatpush1.bf16.msra.mxu0 0
  %876 = vmatprep.mubr.bf16.mxu0 0
  %877 = vmatmul.mubr.bf16.gmra.mrb[0].mxu0 %v842
  %v878 = vpop.f32.mrb[0].mxu0
  %v879 = vadd.f32 %v827, %v878
  %v880 = vpop.f32.mrb[0].mxu0
  %v881 = vpop.f32.mrb[0].mxu0
  %v882 = vadd.f32 %v827, %v881
  %v883 = vpop.f32.mrb[0].mxu0
  %884 = vdwg.mxu0
  %v885 = vadd.f32 %v879, %v124
  %v886 = vadd.f32 %v882, %v125
  %v887 = vld [vmem:[%s12] sm:$0x1]
  %v888 = vld [vmem:[%s13] sm:$0x1]
  %v889 = vsel %vm82, %v885, 0.0
  %890 = vadd.xlane.f32.xlu0 %v889
  %v891 = vpop.xlane.xlu0 %890
  %v892 = vsel %vm82, %v886, 0.0
  %893 = vadd.xlane.f32.xlu0 %v892
  %v894 = vpop.xlane.xlu0 %893
  %v895 = vmul.f32 %v891, %v89
  %v896 = vmul.f32 %v894, %v89
  %v897 = vsub.f32 %v885, %v895
  %v898 = vsub.f32 %v886, %v896
  %v899 = vmul.f32 %v897, %v897
  %v900 = vmul.f32 %v898, %v898
  %v901 = vsel %vm82, %v899, 0.0
  %902 = vadd.xlane.f32.xlu0 %v901
  %v903 = vpop.xlane.xlu0 %902
  %v904 = vsel %vm82, %v900, 0.0
  %905 = vadd.xlane.f32.xlu0 %v904
  %v906 = vpop.xlane.xlu0 %905
  %v907 = vmul.f32 %v903, %v89
  %v908 = vmul.f32 %v906, %v89
  %v909 = vadd.f32 %v907, 1e-12
  %v910 = vadd.f32 %v908, 1e-12
  %v911 = vrsqrt.pop %v909
  %v912 = vrsqrt.pop %v910
  %v913 = vmul.f32 %v897, %v911
  %v914 = vmul.f32 %v898, %v912
  %v916 = vlaneseq
  %v917 = vshrl.u32 %v916, 7
  %v918 = vsub.s32 0, %v917
  %v919 = vrot.slane %v887, %v918
  %v921 = vmul.f32 %v913, %v919
  %v922 = vmul.f32 %v914, %v919
  %v924 = vlaneseq
  %v925 = vshrl.u32 %v924, 7
  %v926 = vsub.s32 0, %v925
  %v927 = vrot.slane %v888, %v926
  %v929 = vadd.f32 %v921, %v927
  %v930 = vadd.f32 %v922, %v927
  %v931 = vpack.c.bf16 %v930, %v929
  %v932 = vld [vmem:[%s14] sm:$0xf]
  %v933 = vld [vmem:[%s14 + $0x4] sm:$0xf]
  %v934 = vld [vmem:[%s14 + $0x8] sm:$0xf]
  %v935 = vld [vmem:[%s14 + $0xc] sm:$0xf]
  %v936 = vld [vmem:[%s15] sm:$0x1]
  %v938 = vlaneseq
  %v939 = vshrl.u32 %v938, 7
  %v940 = vsub.s32 0, %v939
  %v941 = vrot.slane %v936, %v940
  %v947 = vunpack.c.l.b16 %v932
  %v948 = vunpack.c.l.b16 %v933
  %v949 = vunpack.c.l.b16 %v934
  %v950 = vunpack.c.l.b16 %v935
  %v951 = vpack.c.b16 %v948, %v947
  %v952 = vpack.c.b16 %v950, %v949
  %v956 = vsel %vm82, %v931, 0
  %958 = vmatprep.subr.bf16.mxu0 0
  %959 = vmatpush1.bf16.msra.mxu0 %v951
  %960 = vmatprep.subr.bf16.mxu0 0
  %961 = vmatpush1.bf16.msra.mxu0 %v952
  %962 = vmatprep.subr.bf16.mxu0 0
  %963 = vmatpush1.bf16.msra.mxu0 0
  %964 = vmatprep.subr.bf16.mxu0 0
  %965 = vmatpush1.bf16.msra.mxu0 0
  %966 = vmatprep.subr.bf16.mxu0 0
  %967 = vmatpush1.bf16.msra.mxu0 0
  %968 = vmatprep.subr.bf16.mxu0 0
  %969 = vmatpush1.bf16.msra.mxu0 0
  %970 = vmatprep.subr.bf16.mxu0 0
  %971 = vmatpush1.bf16.msra.mxu0 0
  %972 = vmatprep.subr.bf16.mxu0 0
  %973 = vmatpush1.bf16.msra.mxu0 0
  %974 = vmatprep.subr.bf16.mxu0 0
  %975 = vmatpush1.bf16.msra.mxu0 0
  %976 = vmatprep.subr.bf16.mxu0 0
  %977 = vmatpush1.bf16.msra.mxu0 0
  %978 = vmatprep.subr.bf16.mxu0 0
  %979 = vmatpush1.bf16.msra.mxu0 0
  %980 = vmatprep.subr.bf16.mxu0 0
  %981 = vmatpush1.bf16.msra.mxu0 0
  %982 = vmatprep.subr.bf16.mxu0 0
  %983 = vmatpush1.bf16.msra.mxu0 0
  %984 = vmatprep.subr.bf16.mxu0 0
  %985 = vmatpush1.bf16.msra.mxu0 0
  %986 = vmatprep.subr.bf16.mxu0 0
  %987 = vmatpush1.bf16.msra.mxu0 0
  %988 = vmatprep.subr.bf16.mxu0 0
  %989 = vmatpush1.bf16.msra.mxu0 0
  %990 = vmatprep.mubr.bf16.mxu0 0
  %991 = vmatmul.mubr.bf16.gmra.mrb[0].mxu0 %v956
  %v992 = vpop.f32.mrb[0].mxu0
  %v993 = vadd.f32 %v941, %v992
  %v994 = vpop.f32.mrb[0].mxu0
  %v995 = vpop.f32.mrb[0].mxu0
  %v996 = vadd.f32 %v941, %v995
  %v997 = vpop.f32.mrb[0].mxu0
  %998 = vdwg.mxu0
  %v999 = vmul.f32 %v993, 0.5
  %v1000 = vmul.f32 %v996, 0.5
  %v1001 = vmul.f32 %v993, 0.044715
  %v1002 = vmul.f32 %v996, 0.044715
  %v1003 = vmul.f32 %v1001, %v993
  %v1004 = vmul.f32 %v1002, %v996
  %v1005 = vmul.f32 %v1003, %v993
  %v1006 = vmul.f32 %v1004, %v996
  %v1007 = vadd.f32 %v993, %v1005
  %v1008 = vadd.f32 %v996, %v1006
  %v1009 = vmul.f32 %v1007, 0.7978846
  %v1010 = vmul.f32 %v1008, 0.7978846
  %v1011 = vtanh.pop %v1009
  %v1012 = vtanh.pop %v1010
  %v1013 = vadd.f32 %v1011, 1.0
  %v1014 = vadd.f32 %v1012, 1.0
  %v1015 = vmul.f32 %v999, %v1013
  %v1016 = vmul.f32 %v1000, %v1014
  %v1017 = vpack.c.bf16 %v1016, %v1015
  %v1018 = vld [vmem:[%s16] sm:$0xf]
  %v1019 = vld [vmem:[%s16 + $0x4] sm:$0xf]
  %v1020 = vld [vmem:[%s16 + $0x8] sm:$0xf]
  %v1021 = vld [vmem:[%s16 + $0xc] sm:$0xf]
  %v1022 = vld [vmem:[%s16 + $0x10] sm:$0xf]
  %v1023 = vld [vmem:[%s16 + $0x14] sm:$0xf]
  %v1024 = vld [vmem:[%s16 + $0x18] sm:$0xf]
  %v1025 = vld [vmem:[%s16 + $0x1c] sm:$0xf]
  %v1026 = vld [vmem:[%s17] sm:$0x1]
  %v1028 = vlaneseq
  %v1029 = vshrl.u32 %v1028, 7
  %v1030 = vsub.s32 0, %v1029
  %v1031 = vrot.slane %v1026, %v1030
  %v1041 = vunpack.c.l.b16 %v1018
  %v1042 = vunpack.c.l.b16 %v1019
  %v1043 = vunpack.c.l.b16 %v1020
  %v1044 = vunpack.c.l.b16 %v1021
  %v1045 = vunpack.c.l.b16 %v1022
  %v1046 = vunpack.c.l.b16 %v1023
  %v1047 = vunpack.c.l.b16 %v1024
  %v1048 = vunpack.c.l.b16 %v1025
  %v1049 = vpack.c.b16 %v1042, %v1041
  %v1050 = vpack.c.b16 %v1044, %v1043
  %v1051 = vpack.c.b16 %v1046, %v1045
  %v1052 = vpack.c.b16 %v1048, %v1047
  %vm1057 = vcmask 523264
  %v1059 = vsel %vm1057, %v1017, 0
  %1061 = vmatprep.subr.bf16.mxu0 0
  %1062 = vmatpush1.bf16.msra.mxu0 %v1049
  %1063 = vmatprep.subr.bf16.mxu0 0
  %1064 = vmatpush1.bf16.msra.mxu0 %v1050
  %1065 = vmatprep.subr.bf16.mxu0 0
  %1066 = vmatpush1.bf16.msra.mxu0 %v1051
  %1067 = vmatprep.subr.bf16.mxu0 0
  %1068 = vmatpush1.bf16.msra.mxu0 %v1052
  %1069 = vmatprep.subr.bf16.mxu0 0
  %1070 = vmatpush1.bf16.msra.mxu0 0
  %1071 = vmatprep.subr.bf16.mxu0 0
  %1072 = vmatpush1.bf16.msra.mxu0 0
  %1073 = vmatprep.subr.bf16.mxu0 0
  %1074 = vmatpush1.bf16.msra.mxu0 0
  %1075 = vmatprep.subr.bf16.mxu0 0
  %1076 = vmatpush1.bf16.msra.mxu0 0
  %1077 = vmatprep.subr.bf16.mxu0 0
  %1078 = vmatpush1.bf16.msra.mxu0 0
  %1079 = vmatprep.subr.bf16.mxu0 0
  %1080 = vmatpush1.bf16.msra.mxu0 0
  %1081 = vmatprep.subr.bf16.mxu0 0
  %1082 = vmatpush1.bf16.msra.mxu0 0
  %1083 = vmatprep.subr.bf16.mxu0 0
  %1084 = vmatpush1.bf16.msra.mxu0 0
  %1085 = vmatprep.subr.bf16.mxu0 0
  %1086 = vmatpush1.bf16.msra.mxu0 0
  %1087 = vmatprep.subr.bf16.mxu0 0
  %1088 = vmatpush1.bf16.msra.mxu0 0
  %1089 = vmatprep.subr.bf16.mxu0 0
  %1090 = vmatpush1.bf16.msra.mxu0 0
  %1091 = vmatprep.subr.bf16.mxu0 0
  %1092 = vmatpush1.bf16.msra.mxu0 0
  %1093 = vmatprep.mubr.bf16.mxu0 0
  %1094 = vmatmul.mubr.bf16.gmra.mrb[0].mxu0 %v1059
  %v1095 = vpop.f32.mrb[0].mxu0
  %v1096 = vadd.f32 %v1031, %v1095
  %v1097 = vpop.f32.mrb[0].mxu0
  %v1098 = vpop.f32.mrb[0].mxu0
  %v1099 = vadd.f32 %v1031, %v1098
  %v1100 = vpop.f32.mrb[0].mxu0
  %1101 = vdwg.mxu0
  %v1102 = vadd.f32 %v1096, %v929
  %v1103 = vadd.f32 %v1099, %v930
  %v1104 = vld [vmem:[%s18] sm:$0x1]
  %v1105 = vld [vmem:[%s19] sm:$0x1]
  %v1106 = vsel %vm82, %v1102, 0.0
  %1107 = vadd.xlane.f32.xlu0 %v1106
  %v1108 = vpop.xlane.xlu0 %1107
  %v1109 = vsel %vm82, %v1103, 0.0
  %1110 = vadd.xlane.f32.xlu0 %v1109
  %v1111 = vpop.xlane.xlu0 %1110
  %v1112 = vmul.f32 %v1108, %v89
  %v1113 = vmul.f32 %v1111, %v89
  %v1114 = vsub.f32 %v1102, %v1112
  %v1115 = vsub.f32 %v1103, %v1113
  %v1116 = vmul.f32 %v1114, %v1114
  %v1117 = vmul.f32 %v1115, %v1115
  %v1118 = vsel %vm82, %v1116, 0.0
  %1119 = vadd.xlane.f32.xlu0 %v1118
  %v1120 = vpop.xlane.xlu0 %1119
  %v1121 = vsel %vm82, %v1117, 0.0
  %1122 = vadd.xlane.f32.xlu0 %v1121
  %v1123 = vpop.xlane.xlu0 %1122
  %v1124 = vmul.f32 %v1120, %v89
  %v1125 = vmul.f32 %v1123, %v89
  %v1126 = vadd.f32 %v1124, 1e-12
  %v1127 = vadd.f32 %v1125, 1e-12
  %v1128 = vrsqrt.pop %v1126
  %v1129 = vrsqrt.pop %v1127
  %v1130 = vmul.f32 %v1114, %v1128
  %v1131 = vmul.f32 %v1115, %v1129
  %v1133 = vlaneseq
  %v1134 = vshrl.u32 %v1133, 7
  %v1135 = vsub.s32 0, %v1134
  %v1136 = vrot.slane %v1104, %v1135
  %v1138 = vmul.f32 %v1130, %v1136
  %v1139 = vmul.f32 %v1131, %v1136
  %v1141 = vlaneseq
  %v1142 = vshrl.u32 %v1141, 7
  %v1143 = vsub.s32 0, %v1142
  %v1144 = vrot.slane %v1105, %v1143
  %v1146 = vadd.f32 %v1138, %v1144
  %v1147 = vadd.f32 %v1139, %v1144
  %v1148 = vpack.c.bf16 %v1147, %v1146
  %s1149 = scalar_lea.vmem %s4, 16
  %v1150 = vld [vmem:[%s1149] sm:$0xf]
  %v1151 = vld [vmem:[%s1149 + $0x4] sm:$0xf]
  %v1152 = vld [vmem:[%s1149 + $0x8] sm:$0xf]
  %v1153 = vld [vmem:[%s1149 + $0xc] sm:$0xf]
  %s1154 = scalar_lea.vmem %s5, 1
  %v1155 = vld [vmem:[%s1154] sm:$0x1]
  %v1157 = vlaneseq
  %v1158 = vshrl.u32 %v1157, 7
  %v1159 = vsub.s32 0, %v1158
  %v1160 = vrot.slane %v1155, %v1159
  %v1166 = vunpack.c.l.b16 %v1150
  %v1167 = vunpack.c.l.b16 %v1151
  %v1168 = vunpack.c.l.b16 %v1152
  %v1169 = vunpack.c.l.b16 %v1153
  %v1170 = vpack.c.b16 %v1167, %v1166
  %v1171 = vpack.c.b16 %v1169, %v1168
  %v1175 = vsel %vm82, %v1148, 0
  %1177 = vmatprep.subr.bf16.mxu0 0
  %1178 = vmatpush1.bf16.msra.mxu0 %v1170
  %1179 = vmatprep.subr.bf16.mxu0 0
  %1180 = vmatpush1.bf16.msra.mxu0 %v1171
  %1181 = vmatprep.subr.bf16.mxu0 0
  %1182 = vmatpush1.bf16.msra.mxu0 0
  %1183 = vmatprep.subr.bf16.mxu0 0
  %1184 = vmatpush1.bf16.msra.mxu0 0
  %1185 = vmatprep.subr.bf16.mxu0 0
  %1186 = vmatpush1.bf16.msra.mxu0 0
  %1187 = vmatprep.subr.bf16.mxu0 0
  %1188 = vmatpush1.bf16.msra.mxu0 0
  %1189 = vmatprep.subr.bf16.mxu0 0
  %1190 = vmatpush1.bf16.msra.mxu0 0
  %1191 = vmatprep.subr.bf16.mxu0 0
  %1192 = vmatpush1.bf16.msra.mxu0 0
  %1193 = vmatprep.subr.bf16.mxu0 0
  %1194 = vmatpush1.bf16.msra.mxu0 0
  %1195 = vmatprep.subr.bf16.mxu0 0
  %1196 = vmatpush1.bf16.msra.mxu0 0
  %1197 = vmatprep.subr.bf16.mxu0 0
  %1198 = vmatpush1.bf16.msra.mxu0 0
  %1199 = vmatprep.subr.bf16.mxu0 0
  %1200 = vmatpush1.bf16.msra.mxu0 0
  %1201 = vmatprep.subr.bf16.mxu0 0
  %1202 = vmatpush1.bf16.msra.mxu0 0
  %1203 = vmatprep.subr.bf16.mxu0 0
  %1204 = vmatpush1.bf16.msra.mxu0 0
  %1205 = vmatprep.subr.bf16.mxu0 0
  %1206 = vmatpush1.bf16.msra.mxu0 0
  %1207 = vmatprep.subr.bf16.mxu0 0
  %1208 = vmatpush1.bf16.msra.mxu0 0
  %1209 = vmatprep.mubr.bf16.mxu0 0
  %1210 = vmatmul.mubr.bf16.gmra.mrb[0].mxu0 %v1175
  %v1211 = vpop.f32.mrb[0].mxu0
  %v1212 = vadd.f32 %v1160, %v1211
  %v1213 = vpop.f32.mrb[0].mxu0
  %v1214 = vpop.f32.mrb[0].mxu0
  %v1215 = vadd.f32 %v1160, %v1214
  %v1216 = vpop.f32.mrb[0].mxu0
  %1217 = vdwg.mxu0
  %s1218 = scalar_lea.vmem %s6, 16
  %v1219 = vld [vmem:[%s1218] sm:$0xf]
  %v1220 = vld [vmem:[%s1218 + $0x4] sm:$0xf]
  %v1221 = vld [vmem:[%s1218 + $0x8] sm:$0xf]
  %v1222 = vld [vmem:[%s1218 + $0xc] sm:$0xf]
  %s1223 = scalar_lea.vmem %s7, 1
  %v1224 = vld [vmem:[%s1223] sm:$0x1]
  %v1226 = vlaneseq
  %v1227 = vshrl.u32 %v1226, 7
  %v1228 = vsub.s32 0, %v1227
  %v1229 = vrot.slane %v1224, %v1228
  %v1235 = vunpack.c.l.b16 %v1219
  %v1236 = vunpack.c.l.b16 %v1220
  %v1237 = vunpack.c.l.b16 %v1221
  %v1238 = vunpack.c.l.b16 %v1222
  %v1239 = vpack.c.b16 %v1236, %v1235
  %v1240 = vpack.c.b16 %v1238, %v1237
  %1243 = vmatprep.subr.bf16.mxu0 0
  %1244 = vmatpush1.bf16.msra.mxu0 %v1239
  %1245 = vmatprep.subr.bf16.mxu0 0
  %1246 = vmatpush1.bf16.msra.mxu0 %v1240
  %1247 = vmatprep.subr.bf16.mxu0 0
  %1248 = vmatpush1.bf16.msra.mxu0 0
  %1249 = vmatprep.subr.bf16.mxu0 0
  %1250 = vmatpush1.bf16.msra.mxu0 0
  %1251 = vmatprep.subr.bf16.mxu0 0
  %1252 = vmatpush1.bf16.msra.mxu0 0
  %1253 = vmatprep.subr.bf16.mxu0 0
  %1254 = vmatpush1.bf16.msra.mxu0 0
  %1255 = vmatprep.subr.bf16.mxu0 0
  %1256 = vmatpush1.bf16.msra.mxu0 0
  %1257 = vmatprep.subr.bf16.mxu0 0
  %1258 = vmatpush1.bf16.msra.mxu0 0
  %1259 = vmatprep.subr.bf16.mxu0 0
  %1260 = vmatpush1.bf16.msra.mxu0 0
  %1261 = vmatprep.subr.bf16.mxu0 0
  %1262 = vmatpush1.bf16.msra.mxu0 0
  %1263 = vmatprep.subr.bf16.mxu0 0
  %1264 = vmatpush1.bf16.msra.mxu0 0
  %1265 = vmatprep.subr.bf16.mxu0 0
  %1266 = vmatpush1.bf16.msra.mxu0 0
  %1267 = vmatprep.subr.bf16.mxu0 0
  %1268 = vmatpush1.bf16.msra.mxu0 0
  %1269 = vmatprep.subr.bf16.mxu0 0
  %1270 = vmatpush1.bf16.msra.mxu0 0
  %1271 = vmatprep.subr.bf16.mxu0 0
  %1272 = vmatpush1.bf16.msra.mxu0 0
  %1273 = vmatprep.subr.bf16.mxu0 0
  %1274 = vmatpush1.bf16.msra.mxu0 0
  %1275 = vmatprep.mubr.bf16.mxu0 0
  %1276 = vmatmul.mubr.bf16.gmra.mrb[0].mxu0 %v1175
  %v1277 = vpop.f32.mrb[0].mxu0
  %v1278 = vadd.f32 %v1229, %v1277
  %v1279 = vpop.f32.mrb[0].mxu0
  %v1280 = vpop.f32.mrb[0].mxu0
  %v1281 = vadd.f32 %v1229, %v1280
  %v1282 = vpop.f32.mrb[0].mxu0
  %1283 = vdwg.mxu0
  %s1284 = scalar_lea.vmem %s8, 16
  %v1285 = vld [vmem:[%s1284] sm:$0xf]
  %v1286 = vld [vmem:[%s1284 + $0x4] sm:$0xf]
  %v1287 = vld [vmem:[%s1284 + $0x8] sm:$0xf]
  %v1288 = vld [vmem:[%s1284 + $0xc] sm:$0xf]
  %s1289 = scalar_lea.vmem %s9, 1
  %v1290 = vld [vmem:[%s1289] sm:$0x1]
  %v1292 = vlaneseq
  %v1293 = vshrl.u32 %v1292, 7
  %v1294 = vsub.s32 0, %v1293
  %v1295 = vrot.slane %v1290, %v1294
  %v1301 = vunpack.c.l.b16 %v1285
  %v1302 = vunpack.c.l.b16 %v1286
  %v1303 = vunpack.c.l.b16 %v1287
  %v1304 = vunpack.c.l.b16 %v1288
  %v1305 = vpack.c.b16 %v1302, %v1301
  %v1306 = vpack.c.b16 %v1304, %v1303
  %1309 = vmatprep.subr.bf16.mxu0 0
  %1310 = vmatpush1.bf16.msra.mxu0 %v1305
  %1311 = vmatprep.subr.bf16.mxu0 0
  %1312 = vmatpush1.bf16.msra.mxu0 %v1306
  %1313 = vmatprep.subr.bf16.mxu0 0
  %1314 = vmatpush1.bf16.msra.mxu0 0
  %1315 = vmatprep.subr.bf16.mxu0 0
  %1316 = vmatpush1.bf16.msra.mxu0 0
  %1317 = vmatprep.subr.bf16.mxu0 0
  %1318 = vmatpush1.bf16.msra.mxu0 0
  %1319 = vmatprep.subr.bf16.mxu0 0
  %1320 = vmatpush1.bf16.msra.mxu0 0
  %1321 = vmatprep.subr.bf16.mxu0 0
  %1322 = vmatpush1.bf16.msra.mxu0 0
  %1323 = vmatprep.subr.bf16.mxu0 0
  %1324 = vmatpush1.bf16.msra.mxu0 0
  %1325 = vmatprep.subr.bf16.mxu0 0
  %1326 = vmatpush1.bf16.msra.mxu0 0
  %1327 = vmatprep.subr.bf16.mxu0 0
  %1328 = vmatpush1.bf16.msra.mxu0 0
  %1329 = vmatprep.subr.bf16.mxu0 0
  %1330 = vmatpush1.bf16.msra.mxu0 0
  %1331 = vmatprep.subr.bf16.mxu0 0
  %1332 = vmatpush1.bf16.msra.mxu0 0
  %1333 = vmatprep.subr.bf16.mxu0 0
  %1334 = vmatpush1.bf16.msra.mxu0 0
  %1335 = vmatprep.subr.bf16.mxu0 0
  %1336 = vmatpush1.bf16.msra.mxu0 0
  %1337 = vmatprep.subr.bf16.mxu0 0
  %1338 = vmatpush1.bf16.msra.mxu0 0
  %1339 = vmatprep.subr.bf16.mxu0 0
  %1340 = vmatpush1.bf16.msra.mxu0 0
  %1341 = vmatprep.mubr.bf16.mxu0 0
  %1342 = vmatmul.mubr.bf16.gmra.mrb[0].mxu0 %v1175
  %v1343 = vpop.f32.mrb[0].mxu0
  %v1344 = vadd.f32 %v1295, %v1343
  %v1345 = vpop.f32.mrb[0].mxu0
  %v1346 = vpop.f32.mrb[0].mxu0
  %v1347 = vadd.f32 %v1295, %v1346
  %v1348 = vpop.f32.mrb[0].mxu0
  %1349 = vdwg.mxu0
  %v1350 = vpack.c.bf16 %v1212, %v1212
  %v1351 = vpack.c.bf16 %v1215, %v1215
  %v1352 = vpack.c.bf16 %v1278, %v1278
  %v1353 = vpack.c.bf16 %v1281, %v1281
  %v1354 = vpack.c.bf16 %v1344, %v1344
  %v1355 = vpack.c.bf16 %v1347, %v1347
  %v1357 = vsel %vm352, %v1350, 0
  %v1360 = vsel %vm352, %v1352, 0
  %1362 = vmatprep.subr.bf16.mxu0 0
  %1363 = vmatpush1.bf16.xpose.msra.mxu0 %v1360
  %1364 = vmatprep.subr.bf16.mxu0 0
  %1365 = vmatpush1.bf16.xpose.msra.mxu0 0
  %1366 = vmatprep.subr.bf16.mxu0 0
  %1367 = vmatpush1.bf16.xpose.msra.mxu0 0
  %1368 = vmatprep.subr.bf16.mxu0 0
  %1369 = vmatpush1.bf16.xpose.msra.mxu0 0
  %1370 = vmatprep.subr.bf16.mxu0 0
  %1371 = vmatpush1.bf16.xpose.msra.mxu0 0
  %1372 = vmatprep.subr.bf16.mxu0 0
  %1373 = vmatpush1.bf16.xpose.msra.mxu0 0
  %1374 = vmatprep.subr.bf16.mxu0 0
  %1375 = vmatpush1.bf16.xpose.msra.mxu0 0
  %1376 = vmatprep.subr.bf16.mxu0 0
  %1377 = vmatpush1.bf16.xpose.msra.mxu0 0
  %1378 = vmatprep.subr.bf16.mxu0 0
  %1379 = vmatpush1.bf16.xpose.msra.mxu0 0
  %1380 = vmatprep.subr.bf16.mxu0 0
  %1381 = vmatpush1.bf16.xpose.msra.mxu0 0
  %1382 = vmatprep.subr.bf16.mxu0 0
  %1383 = vmatpush1.bf16.xpose.msra.mxu0 0
  %1384 = vmatprep.subr.bf16.mxu0 0
  %1385 = vmatpush1.bf16.xpose.msra.mxu0 0
  %1386 = vmatprep.subr.bf16.mxu0 0
  %1387 = vmatpush1.bf16.xpose.msra.mxu0 0
  %1388 = vmatprep.subr.bf16.mxu0 0
  %1389 = vmatpush1.bf16.xpose.msra.mxu0 0
  %1390 = vmatprep.subr.bf16.mxu0 0
  %1391 = vmatpush1.bf16.xpose.msra.mxu0 0
  %1392 = vmatprep.subr.bf16.mxu0 0
  %1393 = vmatpush1.bf16.xpose.msra.mxu0 0
  %1394 = vmatprep.mubr.bf16.mxu0 0
  %1395 = vmatmul.mubr.bf16.gmra.mrb[0].mxu0 %v1357
  %v1396 = vpop.f32.mrb[0].mxu0
  %v1397 = vadd.f32 0.0, %v1396
  %v1398 = vpop.f32.mrb[0].mxu0
  %v1399 = vpop.f32.mrb[0].mxu0
  %v1400 = vpop.f32.mrb[0].mxu0
  %1401 = vdwg.mxu0
  %v1403 = vsel %vm352, %v1351, 0
  %v1406 = vsel %vm352, %v1353, 0
  %1408 = vmatprep.subr.bf16.mxu0 0
  %1409 = vmatpush1.bf16.xpose.msra.mxu0 %v1406
  %1410 = vmatprep.subr.bf16.mxu0 0
  %1411 = vmatpush1.bf16.xpose.msra.mxu0 0
  %1412 = vmatprep.subr.bf16.mxu0 0
  %1413 = vmatpush1.bf16.xpose.msra.mxu0 0
  %1414 = vmatprep.subr.bf16.mxu0 0
  %1415 = vmatpush1.bf16.xpose.msra.mxu0 0
  %1416 = vmatprep.subr.bf16.mxu0 0
  %1417 = vmatpush1.bf16.xpose.msra.mxu0 0
  %1418 = vmatprep.subr.bf16.mxu0 0
  %1419 = vmatpush1.bf16.xpose.msra.mxu0 0
  %1420 = vmatprep.subr.bf16.mxu0 0
  %1421 = vmatpush1.bf16.xpose.msra.mxu0 0
  %1422 = vmatprep.subr.bf16.mxu0 0
  %1423 = vmatpush1.bf16.xpose.msra.mxu0 0
  %1424 = vmatprep.subr.bf16.mxu0 0
  %1425 = vmatpush1.bf16.xpose.msra.mxu0 0
  %1426 = vmatprep.subr.bf16.mxu0 0
  %1427 = vmatpush1.bf16.xpose.msra.mxu0 0
  %1428 = vmatprep.subr.bf16.mxu0 0
  %1429 = vmatpush1.bf16.xpose.msra.mxu0 0
  %1430 = vmatprep.subr.bf16.mxu0 0
  %1431 = vmatpush1.bf16.xpose.msra.mxu0 0
  %1432 = vmatprep.subr.bf16.mxu0 0
  %1433 = vmatpush1.bf16.xpose.msra.mxu0 0
  %1434 = vmatprep.subr.bf16.mxu0 0
  %1435 = vmatpush1.bf16.xpose.msra.mxu0 0
  %1436 = vmatprep.subr.bf16.mxu0 0
  %1437 = vmatpush1.bf16.xpose.msra.mxu0 0
  %1438 = vmatprep.subr.bf16.mxu0 0
  %1439 = vmatpush1.bf16.xpose.msra.mxu0 0
  %1440 = vmatprep.mubr.bf16.mxu0 0
  %1441 = vmatmul.mubr.bf16.gmra.mrb[0].mxu0 %v1403
  %v1442 = vpop.f32.mrb[0].mxu0
  %v1443 = vadd.f32 0.0, %v1442
  %v1444 = vpop.f32.mrb[0].mxu0
  %v1445 = vpop.f32.mrb[0].mxu0
  %v1446 = vpop.f32.mrb[0].mxu0
  %1447 = vdwg.mxu0
  %v1448 = vmul.f32 %v1397, 0.25
  %v1449 = vmul.f32 %v1443, 0.25
  %v1450 = vadd.f32 %v1448, %v450
  %v1451 = vadd.f32 %v1449, %v454
  %v1452 = vsel %vm459, %v1450, -inf
  %1453 = vmax.xlane.f32.xlu0 %v1452
  %v1454 = vpop.xlane.xlu0 %1453
  %v1455 = vsel %vm459, %v1451, -inf
  %1456 = vmax.xlane.f32.xlu0 %v1455
  %v1457 = vpop.xlane.xlu0 %1456
  %v1458 = vsub.f32 %v1450, %v1454
  %v1459 = vsub.f32 %v1451, %v1457
  %v1460 = vmul.f32 %v1458, 1.442695
  %v1461 = vpow.pop %v1460
  %v1462 = vmul.f32 %v1459, 1.442695
  %v1463 = vpow.pop %v1462
  %v1464 = vsel %vm459, %v1461, 0.0
  %1465 = vadd.xlane.f32.xlu0 %v1464
  %v1466 = vpop.xlane.xlu0 %1465
  %v1467 = vsel %vm459, %v1463, 0.0
  %1468 = vadd.xlane.f32.xlu0 %v1467
  %v1469 = vpop.xlane.xlu0 %1468
  %v1470 = vrcp.pop %v1466
  %v1471 = vmul.f32 %v1461, %v1470
  %v1472 = vrcp.pop %v1469
  %v1473 = vmul.f32 %v1463, %v1472
  %v1474 = vpack.c.bf16 %v1471, %v1471
  %v1475 = vpack.c.bf16 %v1473, %v1473
  %v1477 = vsel %vm459, %v1474, 0
  %v1480 = vsel %vm487, %v1354, 0
  %1482 = vmatprep.subr.bf16.mxu0 0
  %1483 = vmatpush1.bf16.msra.mxu0 %v1480
  %1484 = vmatprep.subr.bf16.mxu0 0
  %1485 = vmatpush1.bf16.msra.mxu0 0
  %1486 = vmatprep.subr.bf16.mxu0 0
  %1487 = vmatpush1.bf16.msra.mxu0 0
  %1488 = vmatprep.subr.bf16.mxu0 0
  %1489 = vmatpush1.bf16.msra.mxu0 0
  %1490 = vmatprep.subr.bf16.mxu0 0
  %1491 = vmatpush1.bf16.msra.mxu0 0
  %1492 = vmatprep.subr.bf16.mxu0 0
  %1493 = vmatpush1.bf16.msra.mxu0 0
  %1494 = vmatprep.subr.bf16.mxu0 0
  %1495 = vmatpush1.bf16.msra.mxu0 0
  %1496 = vmatprep.subr.bf16.mxu0 0
  %1497 = vmatpush1.bf16.msra.mxu0 0
  %1498 = vmatprep.subr.bf16.mxu0 0
  %1499 = vmatpush1.bf16.msra.mxu0 0
  %1500 = vmatprep.subr.bf16.mxu0 0
  %1501 = vmatpush1.bf16.msra.mxu0 0
  %1502 = vmatprep.subr.bf16.mxu0 0
  %1503 = vmatpush1.bf16.msra.mxu0 0
  %1504 = vmatprep.subr.bf16.mxu0 0
  %1505 = vmatpush1.bf16.msra.mxu0 0
  %1506 = vmatprep.subr.bf16.mxu0 0
  %1507 = vmatpush1.bf16.msra.mxu0 0
  %1508 = vmatprep.subr.bf16.mxu0 0
  %1509 = vmatpush1.bf16.msra.mxu0 0
  %1510 = vmatprep.subr.bf16.mxu0 0
  %1511 = vmatpush1.bf16.msra.mxu0 0
  %1512 = vmatprep.subr.bf16.mxu0 0
  %1513 = vmatpush1.bf16.msra.mxu0 0
  %1514 = vmatprep.mubr.bf16.mxu0 0
  %1515 = vmatmul.mubr.bf16.gmra.mrb[0].mxu0 %v1477
  %v1516 = vpop.f32.mrb[0].mxu0
  %v1517 = vadd.f32 0.0, %v1516
  %v1518 = vpop.f32.mrb[0].mxu0
  %v1519 = vpop.f32.mrb[0].mxu0
  %v1520 = vpop.f32.mrb[0].mxu0
  %1521 = vdwg.mxu0
  %v1523 = vsel %vm459, %v1475, 0
  %v1526 = vsel %vm487, %v1355, 0
  %1528 = vmatprep.subr.bf16.mxu0 0
  %1529 = vmatpush1.bf16.msra.mxu0 %v1526
  %1530 = vmatprep.subr.bf16.mxu0 0
  %1531 = vmatpush1.bf16.msra.mxu0 0
  %1532 = vmatprep.subr.bf16.mxu0 0
  %1533 = vmatpush1.bf16.msra.mxu0 0
  %1534 = vmatprep.subr.bf16.mxu0 0
  %1535 = vmatpush1.bf16.msra.mxu0 0
  %1536 = vmatprep.subr.bf16.mxu0 0
  %1537 = vmatpush1.bf16.msra.mxu0 0
  %1538 = vmatprep.subr.bf16.mxu0 0
  %1539 = vmatpush1.bf16.msra.mxu0 0
  %1540 = vmatprep.subr.bf16.mxu0 0
  %1541 = vmatpush1.bf16.msra.mxu0 0
  %1542 = vmatprep.subr.bf16.mxu0 0
  %1543 = vmatpush1.bf16.msra.mxu0 0
  %1544 = vmatprep.subr.bf16.mxu0 0
  %1545 = vmatpush1.bf16.msra.mxu0 0
  %1546 = vmatprep.subr.bf16.mxu0 0
  %1547 = vmatpush1.bf16.msra.mxu0 0
  %1548 = vmatprep.subr.bf16.mxu0 0
  %1549 = vmatpush1.bf16.msra.mxu0 0
  %1550 = vmatprep.subr.bf16.mxu0 0
  %1551 = vmatpush1.bf16.msra.mxu0 0
  %1552 = vmatprep.subr.bf16.mxu0 0
  %1553 = vmatpush1.bf16.msra.mxu0 0
  %1554 = vmatprep.subr.bf16.mxu0 0
  %1555 = vmatpush1.bf16.msra.mxu0 0
  %1556 = vmatprep.subr.bf16.mxu0 0
  %1557 = vmatpush1.bf16.msra.mxu0 0
  %1558 = vmatprep.subr.bf16.mxu0 0
  %1559 = vmatpush1.bf16.msra.mxu0 0
  %1560 = vmatprep.mubr.bf16.mxu0 0
  %1561 = vmatmul.mubr.bf16.gmra.mrb[0].mxu0 %v1523
  %v1562 = vpop.f32.mrb[0].mxu0
  %v1563 = vadd.f32 0.0, %v1562
  %v1564 = vpop.f32.mrb[0].mxu0
  %v1565 = vpop.f32.mrb[0].mxu0
  %v1566 = vpop.f32.mrb[0].mxu0
  %1567 = vdwg.mxu0
  %1569 = vrot.lane.b32.xlu0 %v1350, 112
  %v1570 = vpop.permute.xlu0 %1569
  %1572 = vrot.lane.b32.xlu0 %v1352, 112
  %v1573 = vpop.permute.xlu0 %1572
  %v1575 = vsel %vm352, %v1570, 0
  %v1578 = vsel %vm352, %v1573, 0
  %1580 = vmatprep.subr.bf16.mxu0 0
  %1581 = vmatpush1.bf16.xpose.msra.mxu0 %v1578
  %1582 = vmatprep.subr.bf16.mxu0 0
  %1583 = vmatpush1.bf16.xpose.msra.mxu0 0
  %1584 = vmatprep.subr.bf16.mxu0 0
  %1585 = vmatpush1.bf16.xpose.msra.mxu0 0
  %1586 = vmatprep.subr.bf16.mxu0 0
  %1587 = vmatpush1.bf16.xpose.msra.mxu0 0
  %1588 = vmatprep.subr.bf16.mxu0 0
  %1589 = vmatpush1.bf16.xpose.msra.mxu0 0
  %1590 = vmatprep.subr.bf16.mxu0 0
  %1591 = vmatpush1.bf16.xpose.msra.mxu0 0
  %1592 = vmatprep.subr.bf16.mxu0 0
  %1593 = vmatpush1.bf16.xpose.msra.mxu0 0
  %1594 = vmatprep.subr.bf16.mxu0 0
  %1595 = vmatpush1.bf16.xpose.msra.mxu0 0
  %1596 = vmatprep.subr.bf16.mxu0 0
  %1597 = vmatpush1.bf16.xpose.msra.mxu0 0
  %1598 = vmatprep.subr.bf16.mxu0 0
  %1599 = vmatpush1.bf16.xpose.msra.mxu0 0
  %1600 = vmatprep.subr.bf16.mxu0 0
  %1601 = vmatpush1.bf16.xpose.msra.mxu0 0
  %1602 = vmatprep.subr.bf16.mxu0 0
  %1603 = vmatpush1.bf16.xpose.msra.mxu0 0
  %1604 = vmatprep.subr.bf16.mxu0 0
  %1605 = vmatpush1.bf16.xpose.msra.mxu0 0
  %1606 = vmatprep.subr.bf16.mxu0 0
  %1607 = vmatpush1.bf16.xpose.msra.mxu0 0
  %1608 = vmatprep.subr.bf16.mxu0 0
  %1609 = vmatpush1.bf16.xpose.msra.mxu0 0
  %1610 = vmatprep.subr.bf16.mxu0 0
  %1611 = vmatpush1.bf16.xpose.msra.mxu0 0
  %1612 = vmatprep.mubr.bf16.mxu0 0
  %1613 = vmatmul.mubr.bf16.gmra.mrb[0].mxu0 %v1575
  %v1614 = vpop.f32.mrb[0].mxu0
  %v1615 = vadd.f32 0.0, %v1614
  %v1616 = vpop.f32.mrb[0].mxu0
  %v1617 = vpop.f32.mrb[0].mxu0
  %v1618 = vpop.f32.mrb[0].mxu0
  %1619 = vdwg.mxu0
  %1621 = vrot.lane.b32.xlu0 %v1351, 112
  %v1622 = vpop.permute.xlu0 %1621
  %1624 = vrot.lane.b32.xlu0 %v1353, 112
  %v1625 = vpop.permute.xlu0 %1624
  %v1627 = vsel %vm352, %v1622, 0
  %v1630 = vsel %vm352, %v1625, 0
  %1632 = vmatprep.subr.bf16.mxu0 0
  %1633 = vmatpush1.bf16.xpose.msra.mxu0 %v1630
  %1634 = vmatprep.subr.bf16.mxu0 0
  %1635 = vmatpush1.bf16.xpose.msra.mxu0 0
  %1636 = vmatprep.subr.bf16.mxu0 0
  %1637 = vmatpush1.bf16.xpose.msra.mxu0 0
  %1638 = vmatprep.subr.bf16.mxu0 0
  %1639 = vmatpush1.bf16.xpose.msra.mxu0 0
  %1640 = vmatprep.subr.bf16.mxu0 0
  %1641 = vmatpush1.bf16.xpose.msra.mxu0 0
  %1642 = vmatprep.subr.bf16.mxu0 0
  %1643 = vmatpush1.bf16.xpose.msra.mxu0 0
  %1644 = vmatprep.subr.bf16.mxu0 0
  %1645 = vmatpush1.bf16.xpose.msra.mxu0 0
  %1646 = vmatprep.subr.bf16.mxu0 0
  %1647 = vmatpush1.bf16.xpose.msra.mxu0 0
  %1648 = vmatprep.subr.bf16.mxu0 0
  %1649 = vmatpush1.bf16.xpose.msra.mxu0 0
  %1650 = vmatprep.subr.bf16.mxu0 0
  %1651 = vmatpush1.bf16.xpose.msra.mxu0 0
  %1652 = vmatprep.subr.bf16.mxu0 0
  %1653 = vmatpush1.bf16.xpose.msra.mxu0 0
  %1654 = vmatprep.subr.bf16.mxu0 0
  %1655 = vmatpush1.bf16.xpose.msra.mxu0 0
  %1656 = vmatprep.subr.bf16.mxu0 0
  %1657 = vmatpush1.bf16.xpose.msra.mxu0 0
  %1658 = vmatprep.subr.bf16.mxu0 0
  %1659 = vmatpush1.bf16.xpose.msra.mxu0 0
  %1660 = vmatprep.subr.bf16.mxu0 0
  %1661 = vmatpush1.bf16.xpose.msra.mxu0 0
  %1662 = vmatprep.subr.bf16.mxu0 0
  %1663 = vmatpush1.bf16.xpose.msra.mxu0 0
  %1664 = vmatprep.mubr.bf16.mxu0 0
  %1665 = vmatmul.mubr.bf16.gmra.mrb[0].mxu0 %v1627
  %v1666 = vpop.f32.mrb[0].mxu0
  %v1667 = vadd.f32 0.0, %v1666
  %v1668 = vpop.f32.mrb[0].mxu0
  %v1669 = vpop.f32.mrb[0].mxu0
  %v1670 = vpop.f32.mrb[0].mxu0
  %1671 = vdwg.mxu0
  %v1672 = vmul.f32 %v1615, 0.25
  %v1673 = vmul.f32 %v1667, 0.25
  %v1674 = vadd.f32 %v1672, %v450
  %v1675 = vadd.f32 %v1673, %v454
  %v1676 = vsel %vm459, %v1674, -inf
  %1677 = vmax.xlane.f32.xlu0 %v1676
  %v1678 = vpop.xlane.xlu0 %1677
  %v1679 = vsel %vm459, %v1675, -inf
  %1680 = vmax.xlane.f32.xlu0 %v1679
  %v1681 = vpop.xlane.xlu0 %1680
  %v1682 = vsub.f32 %v1674, %v1678
  %v1683 = vsub.f32 %v1675, %v1681
  %v1684 = vmul.f32 %v1682, 1.442695
  %v1685 = vpow.pop %v1684
  %v1686 = vmul.f32 %v1683, 1.442695
  %v1687 = vpow.pop %v1686
  %v1688 = vsel %vm459, %v1685, 0.0
  %1689 = vadd.xlane.f32.xlu0 %v1688
  %v1690 = vpop.xlane.xlu0 %1689
  %v1691 = vsel %vm459, %v1687, 0.0
  %1692 = vadd.xlane.f32.xlu0 %v1691
  %v1693 = vpop.xlane.xlu0 %1692
  %v1694 = vrcp.pop %v1690
  %v1695 = vmul.f32 %v1685, %v1694
  %v1696 = vrcp.pop %v1693
  %v1697 = vmul.f32 %v1687, %v1696
  %v1698 = vpack.c.bf16 %v1695, %v1695
  %v1699 = vpack.c.bf16 %v1697, %v1697
  %1701 = vrot.lane.b32.xlu0 %v1354, 112
  %v1702 = vpop.permute.xlu0 %1701
  %v1704 = vsel %vm459, %v1698, 0
  %v1707 = vsel %vm487, %v1702, 0
  %1709 = vmatprep.subr.bf16.mxu0 0
  %1710 = vmatpush1.bf16.msra.mxu0 %v1707
  %1711 = vmatprep.subr.bf16.mxu0 0
  %1712 = vmatpush1.bf16.msra.mxu0 0
  %1713 = vmatprep.subr.bf16.mxu0 0
  %1714 = vmatpush1.bf16.msra.mxu0 0
  %1715 = vmatprep.subr.bf16.mxu0 0
  %1716 = vmatpush1.bf16.msra.mxu0 0
  %1717 = vmatprep.subr.bf16.mxu0 0
  %1718 = vmatpush1.bf16.msra.mxu0 0
  %1719 = vmatprep.subr.bf16.mxu0 0
  %1720 = vmatpush1.bf16.msra.mxu0 0
  %1721 = vmatprep.subr.bf16.mxu0 0
  %1722 = vmatpush1.bf16.msra.mxu0 0
  %1723 = vmatprep.subr.bf16.mxu0 0
  %1724 = vmatpush1.bf16.msra.mxu0 0
  %1725 = vmatprep.subr.bf16.mxu0 0
  %1726 = vmatpush1.bf16.msra.mxu0 0
  %1727 = vmatprep.subr.bf16.mxu0 0
  %1728 = vmatpush1.bf16.msra.mxu0 0
  %1729 = vmatprep.subr.bf16.mxu0 0
  %1730 = vmatpush1.bf16.msra.mxu0 0
  %1731 = vmatprep.subr.bf16.mxu0 0
  %1732 = vmatpush1.bf16.msra.mxu0 0
  %1733 = vmatprep.subr.bf16.mxu0 0
  %1734 = vmatpush1.bf16.msra.mxu0 0
  %1735 = vmatprep.subr.bf16.mxu0 0
  %1736 = vmatpush1.bf16.msra.mxu0 0
  %1737 = vmatprep.subr.bf16.mxu0 0
  %1738 = vmatpush1.bf16.msra.mxu0 0
  %1739 = vmatprep.subr.bf16.mxu0 0
  %1740 = vmatpush1.bf16.msra.mxu0 0
  %1741 = vmatprep.mubr.bf16.mxu0 0
  %1742 = vmatmul.mubr.bf16.gmra.mrb[0].mxu0 %v1704
  %v1743 = vpop.f32.mrb[0].mxu0
  %v1744 = vadd.f32 0.0, %v1743
  %v1745 = vpop.f32.mrb[0].mxu0
  %v1746 = vpop.f32.mrb[0].mxu0
  %v1747 = vpop.f32.mrb[0].mxu0
  %1748 = vdwg.mxu0
  %1750 = vrot.lane.b32.xlu0 %v1355, 112
  %v1751 = vpop.permute.xlu0 %1750
  %v1753 = vsel %vm459, %v1699, 0
  %v1756 = vsel %vm487, %v1751, 0
  %1758 = vmatprep.subr.bf16.mxu0 0
  %1759 = vmatpush1.bf16.msra.mxu0 %v1756
  %1760 = vmatprep.subr.bf16.mxu0 0
  %1761 = vmatpush1.bf16.msra.mxu0 0
  %1762 = vmatprep.subr.bf16.mxu0 0
  %1763 = vmatpush1.bf16.msra.mxu0 0
  %1764 = vmatprep.subr.bf16.mxu0 0
  %1765 = vmatpush1.bf16.msra.mxu0 0
  %1766 = vmatprep.subr.bf16.mxu0 0
  %1767 = vmatpush1.bf16.msra.mxu0 0
  %1768 = vmatprep.subr.bf16.mxu0 0
  %1769 = vmatpush1.bf16.msra.mxu0 0
  %1770 = vmatprep.subr.bf16.mxu0 0
  %1771 = vmatpush1.bf16.msra.mxu0 0
  %1772 = vmatprep.subr.bf16.mxu0 0
  %1773 = vmatpush1.bf16.msra.mxu0 0
  %1774 = vmatprep.subr.bf16.mxu0 0
  %1775 = vmatpush1.bf16.msra.mxu0 0
  %1776 = vmatprep.subr.bf16.mxu0 0
  %1777 = vmatpush1.bf16.msra.mxu0 0
  %1778 = vmatprep.subr.bf16.mxu0 0
  %1779 = vmatpush1.bf16.msra.mxu0 0
  %1780 = vmatprep.subr.bf16.mxu0 0
  %1781 = vmatpush1.bf16.msra.mxu0 0
  %1782 = vmatprep.subr.bf16.mxu0 0
  %1783 = vmatpush1.bf16.msra.mxu0 0
  %1784 = vmatprep.subr.bf16.mxu0 0
  %1785 = vmatpush1.bf16.msra.mxu0 0
  %1786 = vmatprep.subr.bf16.mxu0 0
  %1787 = vmatpush1.bf16.msra.mxu0 0
  %1788 = vmatprep.subr.bf16.mxu0 0
  %1789 = vmatpush1.bf16.msra.mxu0 0
  %1790 = vmatprep.mubr.bf16.mxu0 0
  %1791 = vmatmul.mubr.bf16.gmra.mrb[0].mxu0 %v1753
  %v1792 = vpop.f32.mrb[0].mxu0
  %v1793 = vadd.f32 0.0, %v1792
  %v1794 = vpop.f32.mrb[0].mxu0
  %v1795 = vpop.f32.mrb[0].mxu0
  %v1796 = vpop.f32.mrb[0].mxu0
  %1797 = vdwg.mxu0
  %1800 = vrot.lane.b32.xlu0 %v1744, 16
  %v1801 = vpop.permute.xlu0 %1800
  %1802 = vrot.lane.b32.xlu0 %v1793, 16
  %v1803 = vpop.permute.xlu0 %1802
  %v1806 = vsel %vm352, %v1517, %v1801
  %v1807 = vsel %vm352, %v1563, %v1803
  %v1808 = vpack.c.bf16 %v1807, %v1806
  %s1809 = scalar_lea.vmem %s10, 16
  %v1810 = vld [vmem:[%s1809] sm:$0xf]
  %v1811 = vld [vmem:[%s1809 + $0x4] sm:$0xf]
  %v1812 = vld [vmem:[%s1809 + $0x8] sm:$0xf]
  %v1813 = vld [vmem:[%s1809 + $0xc] sm:$0xf]
  %s1814 = scalar_lea.vmem %s11, 1
  %v1815 = vld [vmem:[%s1814] sm:$0x1]
  %v1817 = vlaneseq
  %v1818 = vshrl.u32 %v1817, 7
  %v1819 = vsub.s32 0, %v1818
  %v1820 = vrot.slane %v1815, %v1819
  %v1826 = vunpack.c.l.b16 %v1810
  %v1827 = vunpack.c.l.b16 %v1811
  %v1828 = vunpack.c.l.b16 %v1812
  %v1829 = vunpack.c.l.b16 %v1813
  %v1830 = vpack.c.b16 %v1827, %v1826
  %v1831 = vpack.c.b16 %v1829, %v1828
  %v1835 = vsel %vm82, %v1808, 0
  %1837 = vmatprep.subr.bf16.mxu0 0
  %1838 = vmatpush1.bf16.msra.mxu0 %v1830
  %1839 = vmatprep.subr.bf16.mxu0 0
  %1840 = vmatpush1.bf16.msra.mxu0 %v1831
  %1841 = vmatprep.subr.bf16.mxu0 0
  %1842 = vmatpush1.bf16.msra.mxu0 0
  %1843 = vmatprep.subr.bf16.mxu0 0
  %1844 = vmatpush1.bf16.msra.mxu0 0
  %1845 = vmatprep.subr.bf16.mxu0 0
  %1846 = vmatpush1.bf16.msra.mxu0 0
  %1847 = vmatprep.subr.bf16.mxu0 0
  %1848 = vmatpush1.bf16.msra.mxu0 0
  %1849 = vmatprep.subr.bf16.mxu0 0
  %1850 = vmatpush1.bf16.msra.mxu0 0
  %1851 = vmatprep.subr.bf16.mxu0 0
  %1852 = vmatpush1.bf16.msra.mxu0 0
  %1853 = vmatprep.subr.bf16.mxu0 0
  %1854 = vmatpush1.bf16.msra.mxu0 0
  %1855 = vmatprep.subr.bf16.mxu0 0
  %1856 = vmatpush1.bf16.msra.mxu0 0
  %1857 = vmatprep.subr.bf16.mxu0 0
  %1858 = vmatpush1.bf16.msra.mxu0 0
  %1859 = vmatprep.subr.bf16.mxu0 0
  %1860 = vmatpush1.bf16.msra.mxu0 0
  %1861 = vmatprep.subr.bf16.mxu0 0
  %1862 = vmatpush1.bf16.msra.mxu0 0
  %1863 = vmatprep.subr.bf16.mxu0 0
  %1864 = vmatpush1.bf16.msra.mxu0 0
  %1865 = vmatprep.subr.bf16.mxu0 0
  %1866 = vmatpush1.bf16.msra.mxu0 0
  %1867 = vmatprep.subr.bf16.mxu0 0
  %1868 = vmatpush1.bf16.msra.mxu0 0
  %1869 = vmatprep.mubr.bf16.mxu0 0
  %1870 = vmatmul.mubr.bf16.gmra.mrb[0].mxu0 %v1835
  %v1871 = vpop.f32.mrb[0].mxu0
  %v1872 = vadd.f32 %v1820, %v1871
  %v1873 = vpop.f32.mrb[0].mxu0
  %v1874 = vpop.f32.mrb[0].mxu0
  %v1875 = vadd.f32 %v1820, %v1874
  %v1876 = vpop.f32.mrb[0].mxu0
  %1877 = vdwg.mxu0
  %v1878 = vadd.f32 %v1872, %v1146
  %v1879 = vadd.f32 %v1875, %v1147
  %s1880 = scalar_lea.vmem %s12, 1
  %v1881 = vld [vmem:[%s1880] sm:$0x1]
  %s1882 = scalar_lea.vmem %s13, 1
  %v1883 = vld [vmem:[%s1882] sm:$0x1]
  %v1884 = vsel %vm82, %v1878, 0.0
  %1885 = vadd.xlane.f32.xlu0 %v1884
  %v1886 = vpop.xlane.xlu0 %1885
  %v1887 = vsel %vm82, %v1879, 0.0
  %1888 = vadd.xlane.f32.xlu0 %v1887
  %v1889 = vpop.xlane.xlu0 %1888
  %v1890 = vmul.f32 %v1886, %v89
  %v1891 = vmul.f32 %v1889, %v89
  %v1892 = vsub.f32 %v1878, %v1890
  %v1893 = vsub.f32 %v1879, %v1891
  %v1894 = vmul.f32 %v1892, %v1892
  %v1895 = vmul.f32 %v1893, %v1893
  %v1896 = vsel %vm82, %v1894, 0.0
  %1897 = vadd.xlane.f32.xlu0 %v1896
  %v1898 = vpop.xlane.xlu0 %1897
  %v1899 = vsel %vm82, %v1895, 0.0
  %1900 = vadd.xlane.f32.xlu0 %v1899
  %v1901 = vpop.xlane.xlu0 %1900
  %v1902 = vmul.f32 %v1898, %v89
  %v1903 = vmul.f32 %v1901, %v89
  %v1904 = vadd.f32 %v1902, 1e-12
  %v1905 = vadd.f32 %v1903, 1e-12
  %v1906 = vrsqrt.pop %v1904
  %v1907 = vrsqrt.pop %v1905
  %v1908 = vmul.f32 %v1892, %v1906
  %v1909 = vmul.f32 %v1893, %v1907
  %v1911 = vlaneseq
  %v1912 = vshrl.u32 %v1911, 7
  %v1913 = vsub.s32 0, %v1912
  %v1914 = vrot.slane %v1881, %v1913
  %v1916 = vmul.f32 %v1908, %v1914
  %v1917 = vmul.f32 %v1909, %v1914
  %v1919 = vlaneseq
  %v1920 = vshrl.u32 %v1919, 7
  %v1921 = vsub.s32 0, %v1920
  %v1922 = vrot.slane %v1883, %v1921
  %v1924 = vadd.f32 %v1916, %v1922
  %v1925 = vadd.f32 %v1917, %v1922
  %v1926 = vpack.c.bf16 %v1925, %v1924
  %s1927 = scalar_lea.vmem %s14, 16
  %v1928 = vld [vmem:[%s1927] sm:$0xf]
  %v1929 = vld [vmem:[%s1927 + $0x4] sm:$0xf]
  %v1930 = vld [vmem:[%s1927 + $0x8] sm:$0xf]
  %v1931 = vld [vmem:[%s1927 + $0xc] sm:$0xf]
  %s1932 = scalar_lea.vmem %s15, 1
  %v1933 = vld [vmem:[%s1932] sm:$0x1]
  %v1935 = vlaneseq
  %v1936 = vshrl.u32 %v1935, 7
  %v1937 = vsub.s32 0, %v1936
  %v1938 = vrot.slane %v1933, %v1937
  %v1944 = vunpack.c.l.b16 %v1928
  %v1945 = vunpack.c.l.b16 %v1929
  %v1946 = vunpack.c.l.b16 %v1930
  %v1947 = vunpack.c.l.b16 %v1931
  %v1948 = vpack.c.b16 %v1945, %v1944
  %v1949 = vpack.c.b16 %v1947, %v1946
  %v1953 = vsel %vm82, %v1926, 0
  %1955 = vmatprep.subr.bf16.mxu0 0
  %1956 = vmatpush1.bf16.msra.mxu0 %v1948
  %1957 = vmatprep.subr.bf16.mxu0 0
  %1958 = vmatpush1.bf16.msra.mxu0 %v1949
  %1959 = vmatprep.subr.bf16.mxu0 0
  %1960 = vmatpush1.bf16.msra.mxu0 0
  %1961 = vmatprep.subr.bf16.mxu0 0
  %1962 = vmatpush1.bf16.msra.mxu0 0
  %1963 = vmatprep.subr.bf16.mxu0 0
  %1964 = vmatpush1.bf16.msra.mxu0 0
  %1965 = vmatprep.subr.bf16.mxu0 0
  %1966 = vmatpush1.bf16.msra.mxu0 0
  %1967 = vmatprep.subr.bf16.mxu0 0
  %1968 = vmatpush1.bf16.msra.mxu0 0
  %1969 = vmatprep.subr.bf16.mxu0 0
  %1970 = vmatpush1.bf16.msra.mxu0 0
  %1971 = vmatprep.subr.bf16.mxu0 0
  %1972 = vmatpush1.bf16.msra.mxu0 0
  %1973 = vmatprep.subr.bf16.mxu0 0
  %1974 = vmatpush1.bf16.msra.mxu0 0
  %1975 = vmatprep.subr.bf16.mxu0 0
  %1976 = vmatpush1.bf16.msra.mxu0 0
  %1977 = vmatprep.subr.bf16.mxu0 0
  %1978 = vmatpush1.bf16.msra.mxu0 0
  %1979 = vmatprep.subr.bf16.mxu0 0
  %1980 = vmatpush1.bf16.msra.mxu0 0
  %1981 = vmatprep.subr.bf16.mxu0 0
  %1982 = vmatpush1.bf16.msra.mxu0 0
  %1983 = vmatprep.subr.bf16.mxu0 0
  %1984 = vmatpush1.bf16.msra.mxu0 0
  %1985 = vmatprep.subr.bf16.mxu0 0
  %1986 = vmatpush1.bf16.msra.mxu0 0
  %1987 = vmatprep.mubr.bf16.mxu0 0
  %1988 = vmatmul.mubr.bf16.gmra.mrb[0].mxu0 %v1953
  %v1989 = vpop.f32.mrb[0].mxu0
  %v1990 = vadd.f32 %v1938, %v1989
  %v1991 = vpop.f32.mrb[0].mxu0
  %v1992 = vpop.f32.mrb[0].mxu0
  %v1993 = vadd.f32 %v1938, %v1992
  %v1994 = vpop.f32.mrb[0].mxu0
  %1995 = vdwg.mxu0
  %v1996 = vmul.f32 %v1990, 0.5
  %v1997 = vmul.f32 %v1993, 0.5
  %v1998 = vmul.f32 %v1990, 0.044715
  %v1999 = vmul.f32 %v1993, 0.044715
  %v2000 = vmul.f32 %v1998, %v1990
  %v2001 = vmul.f32 %v1999, %v1993
  %v2002 = vmul.f32 %v2000, %v1990
  %v2003 = vmul.f32 %v2001, %v1993
  %v2004 = vadd.f32 %v1990, %v2002
  %v2005 = vadd.f32 %v1993, %v2003
  %v2006 = vmul.f32 %v2004, 0.7978846
  %v2007 = vmul.f32 %v2005, 0.7978846
  %v2008 = vtanh.pop %v2006
  %v2009 = vtanh.pop %v2007
  %v2010 = vadd.f32 %v2008, 1.0
  %v2011 = vadd.f32 %v2009, 1.0
  %v2012 = vmul.f32 %v1996, %v2010
  %v2013 = vmul.f32 %v1997, %v2011
  %v2014 = vpack.c.bf16 %v2013, %v2012
  %s2015 = scalar_lea.vmem %s16, 32
  %v2016 = vld [vmem:[%s2015] sm:$0xf]
  %v2017 = vld [vmem:[%s2015 + $0x4] sm:$0xf]
  %v2018 = vld [vmem:[%s2015 + $0x8] sm:$0xf]
  %v2019 = vld [vmem:[%s2015 + $0xc] sm:$0xf]
  %v2020 = vld [vmem:[%s2015 + $0x10] sm:$0xf]
  %v2021 = vld [vmem:[%s2015 + $0x14] sm:$0xf]
  %v2022 = vld [vmem:[%s2015 + $0x18] sm:$0xf]
  %v2023 = vld [vmem:[%s2015 + $0x1c] sm:$0xf]
  %s2024 = scalar_lea.vmem %s17, 1
  %v2025 = vld [vmem:[%s2024] sm:$0x1]
  %v2027 = vlaneseq
  %v2028 = vshrl.u32 %v2027, 7
  %v2029 = vsub.s32 0, %v2028
  %v2030 = vrot.slane %v2025, %v2029
  %v2040 = vunpack.c.l.b16 %v2016
  %v2041 = vunpack.c.l.b16 %v2017
  %v2042 = vunpack.c.l.b16 %v2018
  %v2043 = vunpack.c.l.b16 %v2019
  %v2044 = vunpack.c.l.b16 %v2020
  %v2045 = vunpack.c.l.b16 %v2021
  %v2046 = vunpack.c.l.b16 %v2022
  %v2047 = vunpack.c.l.b16 %v2023
  %v2048 = vpack.c.b16 %v2041, %v2040
  %v2049 = vpack.c.b16 %v2043, %v2042
  %v2050 = vpack.c.b16 %v2045, %v2044
  %v2051 = vpack.c.b16 %v2047, %v2046
  %v2057 = vsel %vm1057, %v2014, 0
  %2059 = vmatprep.subr.bf16.mxu0 0
  %2060 = vmatpush1.bf16.msra.mxu0 %v2048
  %2061 = vmatprep.subr.bf16.mxu0 0
  %2062 = vmatpush1.bf16.msra.mxu0 %v2049
  %2063 = vmatprep.subr.bf16.mxu0 0
  %2064 = vmatpush1.bf16.msra.mxu0 %v2050
  %2065 = vmatprep.subr.bf16.mxu0 0
  %2066 = vmatpush1.bf16.msra.mxu0 %v2051
  %2067 = vmatprep.subr.bf16.mxu0 0
  %2068 = vmatpush1.bf16.msra.mxu0 0
  %2069 = vmatprep.subr.bf16.mxu0 0
  %2070 = vmatpush1.bf16.msra.mxu0 0
  %2071 = vmatprep.subr.bf16.mxu0 0
  %2072 = vmatpush1.bf16.msra.mxu0 0
  %2073 = vmatprep.subr.bf16.mxu0 0
  %2074 = vmatpush1.bf16.msra.mxu0 0
  %2075 = vmatprep.subr.bf16.mxu0 0
  %2076 = vmatpush1.bf16.msra.mxu0 0
  %2077 = vmatprep.subr.bf16.mxu0 0
  %2078 = vmatpush1.bf16.msra.mxu0 0
  %2079 = vmatprep.subr.bf16.mxu0 0
  %2080 = vmatpush1.bf16.msra.mxu0 0
  %2081 = vmatprep.subr.bf16.mxu0 0
  %2082 = vmatpush1.bf16.msra.mxu0 0
  %2083 = vmatprep.subr.bf16.mxu0 0
  %2084 = vmatpush1.bf16.msra.mxu0 0
  %2085 = vmatprep.subr.bf16.mxu0 0
  %2086 = vmatpush1.bf16.msra.mxu0 0
  %2087 = vmatprep.subr.bf16.mxu0 0
  %2088 = vmatpush1.bf16.msra.mxu0 0
  %2089 = vmatprep.subr.bf16.mxu0 0
  %2090 = vmatpush1.bf16.msra.mxu0 0
  %2091 = vmatprep.mubr.bf16.mxu0 0
  %2092 = vmatmul.mubr.bf16.gmra.mrb[0].mxu0 %v2057
  %v2093 = vpop.f32.mrb[0].mxu0
  %v2094 = vadd.f32 %v2030, %v2093
  %v2095 = vpop.f32.mrb[0].mxu0
  %v2096 = vpop.f32.mrb[0].mxu0
  %v2097 = vadd.f32 %v2030, %v2096
  %v2098 = vpop.f32.mrb[0].mxu0
  %2099 = vdwg.mxu0
  %v2100 = vadd.f32 %v2094, %v1924
  %v2101 = vadd.f32 %v2097, %v1925
  %s2102 = scalar_lea.vmem %s18, 1
  %v2103 = vld [vmem:[%s2102] sm:$0x1]
  %s2104 = scalar_lea.vmem %s19, 1
  %v2105 = vld [vmem:[%s2104] sm:$0x1]
  %v2106 = vsel %vm82, %v2100, 0.0
  %2107 = vadd.xlane.f32.xlu0 %v2106
  %v2108 = vpop.xlane.xlu0 %2107
  %v2109 = vsel %vm82, %v2101, 0.0
  %2110 = vadd.xlane.f32.xlu0 %v2109
  %v2111 = vpop.xlane.xlu0 %2110
  %v2112 = vmul.f32 %v2108, %v89
  %v2113 = vmul.f32 %v2111, %v89
  %v2114 = vsub.f32 %v2100, %v2112
  %v2115 = vsub.f32 %v2101, %v2113
  %v2116 = vmul.f32 %v2114, %v2114
  %v2117 = vmul.f32 %v2115, %v2115
  %v2118 = vsel %vm82, %v2116, 0.0
  %2119 = vadd.xlane.f32.xlu0 %v2118
  %v2120 = vpop.xlane.xlu0 %2119
  %v2121 = vsel %vm82, %v2117, 0.0
  %2122 = vadd.xlane.f32.xlu0 %v2121
  %v2123 = vpop.xlane.xlu0 %2122
  %v2124 = vmul.f32 %v2120, %v89
  %v2125 = vmul.f32 %v2123, %v89
  %v2126 = vadd.f32 %v2124, 1e-12
  %v2127 = vadd.f32 %v2125, 1e-12
  %v2128 = vrsqrt.pop %v2126
  %v2129 = vrsqrt.pop %v2127
  %v2130 = vmul.f32 %v2114, %v2128
  %v2131 = vmul.f32 %v2115, %v2129
  %v2133 = vlaneseq
  %v2134 = vshrl.u32 %v2133, 7
  %v2135 = vsub.s32 0, %v2134
  %v2136 = vrot.slane %v2103, %v2135
  %v2138 = vmul.f32 %v2130, %v2136
  %v2139 = vmul.f32 %v2131, %v2136
  %v2141 = vlaneseq
  %v2142 = vshrl.u32 %v2141, 7
  %v2143 = vsub.s32 0, %v2142
  %v2144 = vrot.slane %v2105, %v2143
  %v2146 = vadd.f32 %v2138, %v2144
  %v2147 = vadd.f32 %v2139, %v2144
  %v2148 = vlaneseq
  %v2149 = vshrl.u32 %v2148, 7
  %v2150 = vlaneseq
  %v2151 = vand.u32 %v2150, 127
  %v2152 = vmul.u32 %v2149, 8
  %vm2153 = vcmp.eq.s32.totalorder %v2151, %v2152
  %vm2154 = vcmp.lt.s32.totalorder %v2149, 2
  %vm2155 = vmand %vm2153, %vm2154
  %v2156 = vsel %vm2155, 1.0, 0.0
  %v2157 = vpack.c.bf16 %v2156, %v2156
  %v2158 = vpack.c.bf16 %v2147, %v2146
  %v2160 = vsel %vm352, %v2157, 0
  %2162 = vmatprep.subr.bf16.mxu0 0
  %2163 = vmatpush1.bf16.msra.mxu0 %v2158
  %2164 = vmatprep.subr.bf16.mxu0 0
  %2165 = vmatpush1.bf16.msra.mxu0 0
  %2166 = vmatprep.subr.bf16.mxu0 0
  %2167 = vmatpush1.bf16.msra.mxu0 0
  %2168 = vmatprep.subr.bf16.mxu0 0
  %2169 = vmatpush1.bf16.msra.mxu0 0
  %2170 = vmatprep.subr.bf16.mxu0 0
  %2171 = vmatpush1.bf16.msra.mxu0 0
  %2172 = vmatprep.subr.bf16.mxu0 0
  %2173 = vmatpush1.bf16.msra.mxu0 0
  %2174 = vmatprep.subr.bf16.mxu0 0
  %2175 = vmatpush1.bf16.msra.mxu0 0
  %2176 = vmatprep.subr.bf16.mxu0 0
  %2177 = vmatpush1.bf16.msra.mxu0 0
  %2178 = vmatprep.subr.bf16.mxu0 0
  %2179 = vmatpush1.bf16.msra.mxu0 0
  %2180 = vmatprep.subr.bf16.mxu0 0
  %2181 = vmatpush1.bf16.msra.mxu0 0
  %2182 = vmatprep.subr.bf16.mxu0 0
  %2183 = vmatpush1.bf16.msra.mxu0 0
  %2184 = vmatprep.subr.bf16.mxu0 0
  %2185 = vmatpush1.bf16.msra.mxu0 0
  %2186 = vmatprep.subr.bf16.mxu0 0
  %2187 = vmatpush1.bf16.msra.mxu0 0
  %2188 = vmatprep.subr.bf16.mxu0 0
  %2189 = vmatpush1.bf16.msra.mxu0 0
  %2190 = vmatprep.subr.bf16.mxu0 0
  %2191 = vmatpush1.bf16.msra.mxu0 0
  %2192 = vmatprep.subr.bf16.mxu0 0
  %2193 = vmatpush1.bf16.msra.mxu0 0
  %2194 = vmatprep.mubr.bf16.mxu0 0
  %2195 = vmatmul.mubr.bf16.gmra.mrb[0].mxu0 %v2160
  %v2196 = vpop.f32.mrb[0].mxu0
  %v2197 = vadd.f32 0.0, %v2196
  %v2198 = vpop.f32.mrb[0].mxu0
  %v2199 = vpop.f32.mrb[0].mxu0
  %v2200 = vpop.f32.mrb[0].mxu0
  %2201 = vdwg.mxu0
  %v2202 = vpack.c.bf16 %v2197, %v2197
  %v2203 = vld [vmem:[%s20] sm:$0xf]
  %v2204 = vld [vmem:[%s20 + $0x4] sm:$0xf]
  %v2205 = vld [vmem:[%s20 + $0x8] sm:$0xf]
  %v2206 = vld [vmem:[%s20 + $0xc] sm:$0xf]
  %v2207 = vld [vmem:[%s21] sm:$0x1]
  %v2209 = vlaneseq
  %v2210 = vshrl.u32 %v2209, 7
  %v2211 = vsub.s32 0, %v2210
  %v2212 = vrot.slane %v2207, %v2211
  %v2218 = vunpack.c.l.b16 %v2203
  %v2219 = vunpack.c.l.b16 %v2204
  %v2220 = vunpack.c.l.b16 %v2205
  %v2221 = vunpack.c.l.b16 %v2206
  %v2222 = vpack.c.b16 %v2219, %v2218
  %v2223 = vpack.c.b16 %v2221, %v2220
  %v2227 = vsel %vm82, %v2202, 0
  %2229 = vmatprep.subr.bf16.mxu0 0
  %2230 = vmatpush1.bf16.msra.mxu0 %v2222
  %2231 = vmatprep.subr.bf16.mxu0 0
  %2232 = vmatpush1.bf16.msra.mxu0 %v2223
  %2233 = vmatprep.subr.bf16.mxu0 0
  %2234 = vmatpush1.bf16.msra.mxu0 0
  %2235 = vmatprep.subr.bf16.mxu0 0
  %2236 = vmatpush1.bf16.msra.mxu0 0
  %2237 = vmatprep.subr.bf16.mxu0 0
  %2238 = vmatpush1.bf16.msra.mxu0 0
  %2239 = vmatprep.subr.bf16.mxu0 0
  %2240 = vmatpush1.bf16.msra.mxu0 0
  %2241 = vmatprep.subr.bf16.mxu0 0
  %2242 = vmatpush1.bf16.msra.mxu0 0
  %2243 = vmatprep.subr.bf16.mxu0 0
  %2244 = vmatpush1.bf16.msra.mxu0 0
  %2245 = vmatprep.subr.bf16.mxu0 0
  %2246 = vmatpush1.bf16.msra.mxu0 0
  %2247 = vmatprep.subr.bf16.mxu0 0
  %2248 = vmatpush1.bf16.msra.mxu0 0
  %2249 = vmatprep.subr.bf16.mxu0 0
  %2250 = vmatpush1.bf16.msra.mxu0 0
  %2251 = vmatprep.subr.bf16.mxu0 0
  %2252 = vmatpush1.bf16.msra.mxu0 0
  %2253 = vmatprep.subr.bf16.mxu0 0
  %2254 = vmatpush1.bf16.msra.mxu0 0
  %2255 = vmatprep.subr.bf16.mxu0 0
  %2256 = vmatpush1.bf16.msra.mxu0 0
  %2257 = vmatprep.subr.bf16.mxu0 0
  %2258 = vmatpush1.bf16.msra.mxu0 0
  %2259 = vmatprep.subr.bf16.mxu0 0
  %2260 = vmatpush1.bf16.msra.mxu0 0
  %2261 = vmatprep.mubr.bf16.mxu0 0
  %2262 = vmatmul.mubr.bf16.gmra.mrb[0].mxu0 %v2227
  %v2263 = vpop.f32.mrb[0].mxu0
  %v2264 = vadd.f32 %v2212, %v2263
  %v2265 = vpop.f32.mrb[0].mxu0
  %v2266 = vpop.f32.mrb[0].mxu0
  %v2267 = vpop.f32.mrb[0].mxu0
  %2268 = vdwg.mxu0
  %v2269 = vtanh.pop %v2264
  %v2270 = vpack.c.bf16 %v2269, %v2269
  %v2271 = vld [vmem:[%s22] sm:$0xf]
  %v2272 = vld [vmem:[%s22 + $0x4] sm:$0xf]
  %v2273 = vld [vmem:[%s22 + $0x8] sm:$0xf]
  %v2274 = vld [vmem:[%s22 + $0xc] sm:$0xf]
  %v2275 = vld [vmem:[%s23] sm:$0x1]
  %v2277 = vlaneseq
  %v2278 = vshrl.u32 %v2277, 7
  %v2279 = vsub.s32 0, %v2278
  %v2280 = vrot.slane %v2275, %v2279
  %v2286 = vunpack.c.l.b16 %v2271
  %v2287 = vunpack.c.l.b16 %v2272
  %v2288 = vunpack.c.l.b16 %v2273
  %v2289 = vunpack.c.l.b16 %v2274
  %v2290 = vpack.c.b16 %v2287, %v2286
  %v2291 = vpack.c.b16 %v2289, %v2288
  %v2295 = vsel %vm82, %v2270, 0
  %2297 = vmatprep.subr.bf16.mxu0 0
  %2298 = vmatpush1.bf16.msra.mxu0 %v2290
  %2299 = vmatprep.subr.bf16.mxu0 0
  %2300 = vmatpush1.bf16.msra.mxu0 %v2291
  %2301 = vmatprep.subr.bf16.mxu0 0
  %2302 = vmatpush1.bf16.msra.mxu0 0
  %2303 = vmatprep.subr.bf16.mxu0 0
  %2304 = vmatpush1.bf16.msra.mxu0 0
  %2305 = vmatprep.subr.bf16.mxu0 0
  %2306 = vmatpush1.bf16.msra.mxu0 0
  %2307 = vmatprep.subr.bf16.mxu0 0
  %2308 = vmatpush1.bf16.msra.mxu0 0
  %2309 = vmatprep.subr.bf16.mxu0 0
  %2310 = vmatpush1.bf16.msra.mxu0 0
  %2311 = vmatprep.subr.bf16.mxu0 0
  %2312 = vmatpush1.bf16.msra.mxu0 0
  %2313 = vmatprep.subr.bf16.mxu0 0
  %2314 = vmatpush1.bf16.msra.mxu0 0
  %2315 = vmatprep.subr.bf16.mxu0 0
  %2316 = vmatpush1.bf16.msra.mxu0 0
  %2317 = vmatprep.subr.bf16.mxu0 0
  %2318 = vmatpush1.bf16.msra.mxu0 0
  %2319 = vmatprep.subr.bf16.mxu0 0
  %2320 = vmatpush1.bf16.msra.mxu0 0
  %2321 = vmatprep.subr.bf16.mxu0 0
  %2322 = vmatpush1.bf16.msra.mxu0 0
  %2323 = vmatprep.subr.bf16.mxu0 0
  %2324 = vmatpush1.bf16.msra.mxu0 0
  %2325 = vmatprep.subr.bf16.mxu0 0
  %2326 = vmatpush1.bf16.msra.mxu0 0
  %2327 = vmatprep.subr.bf16.mxu0 0
  %2328 = vmatpush1.bf16.msra.mxu0 0
  %2329 = vmatprep.mubr.bf16.mxu0 0
  %2330 = vmatmul.mubr.bf16.gmra.mrb[0].mxu0 %v2295
  %v2331 = vpop.f32.mrb[0].mxu0
  %v2332 = vadd.f32 %v2280, %v2331
  %v2333 = vpop.f32.mrb[0].mxu0
  %v2334 = vpop.f32.mrb[0].mxu0
  %v2335 = vpop.f32.mrb[0].mxu0
  %2336 = vdwg.mxu0
  %v2337 = vmax.f32 %v2332, 0.0
  %2338 = vst [vmem:[%s24] sm:$0xff] %v2337
  // Predicated region
  $region98: #{bert_classifier_forward.1} parent=0 // pred_check
    _
  $region99: #{bert_classifier_forward.1} parent=0 // pred_check_branch
    %2340 = sbr.rel (0) target = $region101
  $region100: #{bert_classifier_forward.1} parent=0 // pred_region
    _
  $region101: #{bert_classifier_forward.1} parent=0 // pred_fallthru
    _
  // Predicated region
  $region102: #{bert_classifier_forward.1} parent=0 // pred_check
    _
  $region103: #{bert_classifier_forward.1} parent=0 // pred_check_branch
    %2342 = sbr.rel (0) target = $region105
  $region104: #{bert_classifier_forward.1} parent=0 // pred_region
    _
  $region105: #{bert_classifier_forward.1} parent=0 // pred_fallthru
    _

</llo_original>
